<compile_context>
chip_gen: v5e
topology: v5e:2x2
jax: 0.10.0
libtpu: 0.0.40
codegen_flags: <defaults>
</compile_context>

<pallas_src>
import jax
import jax.numpy as jnp
import numpy as np
from jax.experimental import pallas as pl
from jax.experimental.pallas import tpu as pltpu

EPS = 1e-5          # BatchNorm2d default eps
NEG_SLOPE = 0.2     # LeakyReLU negative_slope
_PHASES = ((0, 0), (0, 1), (1, 0), (1, 1))


def _taps(p):
    # (dy, ky) pairs contributing to output sub-pixel phase p
    # (from oy = 2*iy - 1 + ky with oy = 2*a + p, ky in [0, 4))
    return ((0, 1), (-1, 3)) if p == 0 else ((0, 2), (1, 0))


def _gather_windows(x_ref):
    """Load the 9 distinct (dy, dx) shifted windows once (ref slices, reused by
    all 4 phases) as (M, Cin) matmul operands."""
    tile_n, Hp, Wp, Cin = x_ref.shape
    H, W = Hp - 2, Wp - 2
    M = tile_n * H * W
    win = {}
    for dy in (-1, 0, 1):
        for dx in (-1, 0, 1):
            v = x_ref[:, 1 + dy:1 + dy + H, 1 + dx:1 + dx + W, :]
            win[(dy, dx)] = v.reshape(M, Cin)
    return win, M


def _phase_matmul(win, w_ref, p, py, px):
    """One output sub-pixel phase as a single fused (M, 4*Cin) x (4*Cin, Cout)
    MXU matmul with f32 accumulation."""
    parts = [win[(dy, dx)] for dy, _ in _taps(py) for dx, _ in _taps(px)]
    lhs = jnp.concatenate(parts, axis=-1)                  # (M, 4*Cin)
    wp = w_ref[p]                                          # (4*Cin, Cout)
    if lhs.dtype != wp.dtype:
        lhs = lhs.astype(wp.dtype)                         # bf16 MXU knob
    return jnp.dot(lhs, wp, preferred_element_type=jnp.float32)


def _deconv_stats_kernel(x_ref, w_ref, stats_ref):
    """Per batch-block BN partial statistics of the pre-BN activations.

    x_ref:     (tile_n, H+2, W+2, Cin)   padded NHWC input block
    w_ref:     (4, 4*Cin, Cout)          tap-fused per-phase weights
    stats_ref: (1, 2, Cout)              per-block [sum, sumsq] partials
    """
    cout = w_ref.shape[-1]
    win, _ = _gather_windows(x_ref)
    s_sum = jnp.zeros((1, cout), jnp.float32)
    s_sq = jnp.zeros((1, cout), jnp.float32)
    for p, (py, px) in enumerate(_PHASES):
        acc = _phase_matmul(win, w_ref, p, py, px)         # (M, Cout) f32
        s_sum = s_sum + jnp.sum(acc, axis=0, keepdims=True)
        s_sq = s_sq + jnp.sum(acc * acc, axis=0, keepdims=True)
    # TODO(synk): sum/sumsq variance can cancel in f32 for large-mean data;
    # switch to per-block mean/M2 partials (Chan et al.) if that regime matters.
    stats_ref[0, 0:1, :] = s_sum
    stats_ref[0, 1:2, :] = s_sq


def _deconv_bn_lrelu_kernel(x_ref, w_ref, scale_ref, shift_ref, o_ref):
    """Recompute the transposed conv, apply BN affine + LeakyReLU, and store the
    sub-pixel phases already interleaved.

    o_ref: (tile_n, H, 2, W, 2*Cout) ; index order (h, py, w, (px, c)) so the
    result reshapes for free to NHWC (N, 2H, 2W, Cout).
    """
    tile_n, Hp, Wp, _ = x_ref.shape
    H, W = Hp - 2, Wp - 2
    cout = w_ref.shape[-1]
    scale = scale_ref[...]                                 # (1, Cout)
    shift = shift_ref[...]                                 # (1, Cout)
    win, _ = _gather_windows(x_ref)
    for py in range(2):
        cols = []
        for px in range(2):
            p = 2 * py + px
            acc = _phase_matmul(win, w_ref, p, py, px)     # (M, Cout) f32
            z = acc * scale + shift
            z = jnp.where(z >= 0, z, NEG_SLOPE * z)
            cols.append(z.reshape(tile_n, H, W, cout))
        # full-width (W, 2*Cout) store; lane-dense whenever 2*Cout >= 128
        o_ref[:, :, py, :, :] = jnp.concatenate(cols, axis=-1)


def _vmem_cap_bytes():
    """Generation-aware VMEM cap: ~80% of physical, never above 112 MiB.
    v5e/v6e (128 MiB) -> ~102 MiB;  v7x (64 MiB/TC) -> ~51 MiB."""
    try:
        phys = int(pltpu.get_tpu_info().vmem_capacity_bytes)
    except Exception:
        phys = 128 << 20
    return min(phys * 4 // 5, 112 << 20)


def _vmem_limit(block_bytes):
    need = 2 * block_bytes + (8 << 20)                     # double-buffer + slack
    return int(min(max(need, 32 << 20), _vmem_cap_bytes()))


def deconv_block_forward(x, weight, bias, gamma, beta, *,
                         tile_n=1, compute_dtype=jnp.float32):
    """x: (N, Cin, H, W) f32; weight: (Cin, Cout, 4, 4) (PyTorch layout).

    `bias` is accepted for API parity but not added: training-mode BatchNorm
    removes any per-channel constant (mean absorbs it, variance is invariant),
    so the forward output is unchanged.
    `compute_dtype=jnp.bfloat16` enables the bf16 MXU path (v6e/v7x throughput,
    reduced precision).
    """
    del bias
    N, Cin, H, W = x.shape
    Cout = weight.shape[1]
    if tile_n < 1 or N % tile_n:
        tile_n = 1
    NB = N // tile_n                                       # >= 2 for megacore when N >= 2
    f32 = jnp.float32

    # ---- glue: NCHW -> padded NHWC (X-sized, small vs. output traffic)
    x_pad = jnp.pad(jnp.transpose(x, (0, 2, 3, 1)),
                    ((0, 0), (1, 1), (1, 1), (0, 0)))

    # ---- glue: tap-fused per-phase weights, K = 4*Cin (ordering matches kernel)
    w_phase = []
    for py, px in _PHASES:
        mats = [weight[:, :, ky, kx]
                for _dy, ky in _taps(py) for _dx, kx in _taps(px)]
        w_phase.append(jnp.concatenate(mats, axis=0))      # (4*Cin, Cout)
    Wm = jnp.stack(w_phase, axis=0).astype(compute_dtype)  # (4, 4*Cin, Cout)

    # per-block VMEM estimates (input block, weights, temporaries, output block)
    M = tile_n * H * W
    in_block = tile_n * (H + 2) * (W + 2) * Cin * 4
    w_block = 4 * 4 * Cin * Cout * jnp.dtype(compute_dtype).itemsize
    tmp = (9 * M * Cin + M * 4 * Cin + M * Cout) * 4
    out_block = tile_n * H * 2 * W * 2 * Cout * 4

    # ---- kernel 1: BN partial statistics only (no pre-BN HBM intermediate)
    stats = pl.pallas_call(
        _deconv_stats_kernel,
        out_shape=jax.ShapeDtypeStruct((NB, 2, Cout), f32),
        grid=(NB,),
        in_specs=[
            pl.BlockSpec((tile_n, H + 2, W + 2, Cin), lambda nb: (nb, 0, 0, 0)),
            pl.BlockSpec((4, 4 * Cin, Cout), lambda nb: (0, 0, 0)),
        ],
        out_specs=pl.BlockSpec((1, 2, Cout), lambda nb: (nb, 0, 0)),
        compiler_params=pltpu.CompilerParams(
            dimension_semantics=("parallel",),
            vmem_limit_bytes=_vmem_limit(in_block + w_block + tmp)),
    )(x_pad, Wm)

    # ---- glue: finish training-mode BN statistics (biased variance, clamped)
    count = float(N * 2 * H * 2 * W)
    s = jnp.sum(stats, axis=0)                             # (2, Cout)
    mean = s[0] / count
    var = jnp.maximum(s[1] / count - mean * mean, 0.0)
    scale = gamma / jnp.sqrt(var + EPS)
    shift = beta - mean * scale
    # TODO(synk): PyTorch training-mode BN also updates running_mean/var as a
    # side effect; the forward value does not depend on it, so it is skipped.

    # ---- kernel 2: recompute conv + BN affine + LeakyReLU + phase interleave
    out = pl.pallas_call(
        _deconv_bn_lrelu_kernel,
        out_shape=jax.ShapeDtypeStruct((N, H, 2, W, 2 * Cout), f32),
        grid=(NB,),
        in_specs=[
            pl.BlockSpec((tile_n, H + 2, W + 2, Cin), lambda nb: (nb, 0, 0, 0)),
            pl.BlockSpec((4, 4 * Cin, Cout), lambda nb: (0, 0, 0)),
            pl.BlockSpec((1, Cout), lambda nb: (0, 0)),
            pl.BlockSpec((1, Cout), lambda nb: (0, 0)),
        ],
        out_specs=pl.BlockSpec((tile_n, H, 2, W, 2 * Cout),
                               lambda nb: (nb, 0, 0, 0, 0)),
        compiler_params=pltpu.CompilerParams(
            dimension_semantics=("parallel",),
            vmem_limit_bytes=_vmem_limit(in_block + w_block + tmp + out_block)),
    )(x_pad, Wm, scale.reshape(1, Cout), shift.reshape(1, Cout))

    # ---- glue: (N, H, 2, W, 2*Cout) -> NHWC is a free reshape; one transpose to NCHW
    out_nhwc = out.reshape(N, 2 * H, 2 * W, Cout)
    return jnp.transpose(out_nhwc, (0, 3, 1, 2))


def _reference(x, weight, bias, gamma, beta):
    """Pure-JAX reference: ConvTranspose2d via dilated conv, train-mode BN, LeakyReLU."""
    w_conv = jnp.flip(weight, axis=(2, 3)).transpose(1, 0, 2, 3)  # (Cout, Cin, 4, 4)
    y = jax.lax.conv_general_dilated(
        x, w_conv, window_strides=(1, 1), padding=((2, 2), (2, 2)),
        lhs_dilation=(2, 2), rhs_dilation=(1, 1),
        dimension_numbers=("NCHW", "OIHW", "NCHW"))
    y = y + bias.reshape(1, -1, 1, 1)
    mean = jnp.mean(y, axis=(0, 2, 3), keepdims=True)
    var = jnp.var(y, axis=(0, 2, 3), keepdims=True)        # biased, training mode
    z = (y - mean) / jnp.sqrt(var + EPS)
    z = z * gamma.reshape(1, -1, 1, 1) + beta.reshape(1, -1, 1, 1)
    return jnp.where(z >= 0, z, NEG_SLOPE * z)


if __name__ == "__main__":
    key = jax.random.PRNGKey(0)
    k1, k2, k3, k4, k5 = jax.random.split(key, 5)

    N, Cin, Cout, H, W = 2, 4, 8, 16, 16
    x = jax.random.normal(k1, (N, Cin, H, W), dtype=jnp.float32)
    # Shapes match nn.ConvTranspose2d(4, 8, 4, 2, 1) + BatchNorm2d(8, affine=True)
    weight = 0.1 * jax.random.normal(k2, (Cin, Cout, 4, 4), dtype=jnp.float32)
    bias = 0.1 * jax.random.normal(k3, (Cout,), dtype=jnp.float32)
    gamma = 1.0 + 0.1 * jax.random.normal(k4, (Cout,), dtype=jnp.float32)
    beta = 0.1 * jax.random.normal(k5, (Cout,), dtype=jnp.float32)

    fwd = jax.jit(deconv_block_forward)
    out = jax.block_until_ready(fwd(x, weight, bias, gamma, beta))
    ref = _reference(x, weight, bias, gamma, beta)
    np.testing.assert_allclose(np.asarray(out), np.asarray(ref), rtol=1e-4, atol=1e-4)
    print("KERNEL_OK")
</pallas_src>

<mosaic_0001>
module attributes {stable_mosaic.version = 11 : i64} {
  func.func @_deconv_stats_kernel(%arg0: i32, %arg1: memref<1x18x18x4xf32, #tpu.memory_space<vmem>>, %arg2: memref<4x16x8xf32, #tpu.memory_space<vmem>>, %arg3: memref<1x2x8xf32, #tpu.memory_space<vmem>>) attributes {dimension_semantics = [#tpu.dimension_semantics<parallel>], iteration_bounds = array<i64: 2>, scalar_prefetch = 0 : i64, scratch_operands = 0 : i64, tpu.core_type = #tpu.core_type<tc>, window_params = [{transform_indices = @transform_0, window_bounds = array<i64: 1, 18, 18, 4>}, {pipeline_mode = #tpu.pipeline_mode<synchronous>, transform_indices = @transform_1, window_bounds = array<i64: 4, 16, 8>}, {transform_indices = @transform_2, window_bounds = array<i64: 1, 2, 8>}]} {
    %c0 = arith.constant 0 : index
    %c0_0 = arith.constant 0 : index
    %c0_1 = arith.constant 0 : index
    %c0_2 = arith.constant 0 : index
    %0 = vector.load %arg1[%c0, %c0_0, %c0_1, %c0_2] : memref<1x18x18x4xf32, #tpu.memory_space<vmem>>, vector<1x16x16x4xf32>
    %1 = vector.shape_cast %0 : vector<1x16x16x4xf32> to vector<256x4xf32>
    %c0_3 = arith.constant 0 : index
    %c0_4 = arith.constant 0 : index
    %c1 = arith.constant 1 : index
    %c0_5 = arith.constant 0 : index
    %2 = vector.load %arg1[%c0_3, %c0_4, %c1, %c0_5] : memref<1x18x18x4xf32, #tpu.memory_space<vmem>>, vector<1x16x16x4xf32>
    %3 = vector.shape_cast %2 : vector<1x16x16x4xf32> to vector<256x4xf32>
    %c0_6 = arith.constant 0 : index
    %c0_7 = arith.constant 0 : index
    %c2 = arith.constant 2 : index
    %c0_8 = arith.constant 0 : index
    %4 = vector.load %arg1[%c0_6, %c0_7, %c2, %c0_8] : memref<1x18x18x4xf32, #tpu.memory_space<vmem>>, vector<1x16x16x4xf32>
    %5 = vector.shape_cast %4 : vector<1x16x16x4xf32> to vector<256x4xf32>
    %c0_9 = arith.constant 0 : index
    %c1_10 = arith.constant 1 : index
    %c0_11 = arith.constant 0 : index
    %c0_12 = arith.constant 0 : index
    %6 = vector.load %arg1[%c0_9, %c1_10, %c0_11, %c0_12] : memref<1x18x18x4xf32, #tpu.memory_space<vmem>>, vector<1x16x16x4xf32>
    %7 = vector.shape_cast %6 : vector<1x16x16x4xf32> to vector<256x4xf32>
    %c0_13 = arith.constant 0 : index
    %c1_14 = arith.constant 1 : index
    %c1_15 = arith.constant 1 : index
    %c0_16 = arith.constant 0 : index
    %8 = vector.load %arg1[%c0_13, %c1_14, %c1_15, %c0_16] : memref<1x18x18x4xf32, #tpu.memory_space<vmem>>, vector<1x16x16x4xf32>
    %9 = vector.shape_cast %8 : vector<1x16x16x4xf32> to vector<256x4xf32>
    %c0_17 = arith.constant 0 : index
    %c1_18 = arith.constant 1 : index
    %c2_19 = arith.constant 2 : index
    %c0_20 = arith.constant 0 : index
    %10 = vector.load %arg1[%c0_17, %c1_18, %c2_19, %c0_20] : memref<1x18x18x4xf32, #tpu.memory_space<vmem>>, vector<1x16x16x4xf32>
    %11 = vector.shape_cast %10 : vector<1x16x16x4xf32> to vector<256x4xf32>
    %c0_21 = arith.constant 0 : index
    %c2_22 = arith.constant 2 : index
    %c0_23 = arith.constant 0 : index
    %c0_24 = arith.constant 0 : index
    %12 = vector.load %arg1[%c0_21, %c2_22, %c0_23, %c0_24] : memref<1x18x18x4xf32, #tpu.memory_space<vmem>>, vector<1x16x16x4xf32>
    %13 = vector.shape_cast %12 : vector<1x16x16x4xf32> to vector<256x4xf32>
    %c0_25 = arith.constant 0 : index
    %c2_26 = arith.constant 2 : index
    %c1_27 = arith.constant 1 : index
    %c0_28 = arith.constant 0 : index
    %14 = vector.load %arg1[%c0_25, %c2_26, %c1_27, %c0_28] : memref<1x18x18x4xf32, #tpu.memory_space<vmem>>, vector<1x16x16x4xf32>
    %15 = vector.shape_cast %14 : vector<1x16x16x4xf32> to vector<256x4xf32>
    %c0_29 = arith.constant 0 : index
    %c2_30 = arith.constant 2 : index
    %c2_31 = arith.constant 2 : index
    %c0_32 = arith.constant 0 : index
    %16 = vector.load %arg1[%c0_29, %c2_30, %c2_31, %c0_32] : memref<1x18x18x4xf32, #tpu.memory_space<vmem>>, vector<1x16x16x4xf32>
    %17 = vector.shape_cast %16 : vector<1x16x16x4xf32> to vector<256x4xf32>
    %cst = arith.constant 0.000000e+00 : f32
    %18 = vector.broadcast %cst : f32 to vector<1x8xf32>
    %cst_33 = arith.constant 0.000000e+00 : f32
    %19 = vector.broadcast %cst_33 : f32 to vector<1x8xf32>
    %20 = tpu.concatenate %9, %7, %3, %1 in 1 : vector<256x4xf32>, vector<256x4xf32>, vector<256x4xf32>, vector<256x4xf32> -> vector<256x16xf32>
    %c0_34 = arith.constant 0 : index
    %c0_35 = arith.constant 0 : index
    %c0_36 = arith.constant 0 : index
    %21 = vector.load %arg2[%c0_34, %c0_35, %c0_36] : memref<4x16x8xf32, #tpu.memory_space<vmem>>, vector<1x16x8xf32>
    %22 = vector.shape_cast %21 : vector<1x16x8xf32> to vector<16x8xf32>
    %cst_37 = arith.constant dense<0.000000e+00> : vector<256x8xf32>
    %23 = tpu.matmul %20, %22, %cst_37 {dimension_numbers = #tpu.dot_dimension_numbers<[1], [0], [0], [1], [0, 0, 1, 1], [], []>} : vector<256x16xf32>, vector<16x8xf32>, vector<256x8xf32> -> vector<256x8xf32>
    %cst_38 = arith.constant dense<0.000000e+00> : vector<8xf32>
    %24 = vector.multi_reduction <add>, %23, %cst_38 [0] : vector<256x8xf32> to vector<8xf32>
    %25 = vector.shape_cast %24 : vector<8xf32> to vector<1x8xf32>
    %26 = arith.addf %18, %25 : vector<1x8xf32>
    %27 = arith.mulf %23, %23 : vector<256x8xf32>
    %cst_39 = arith.constant dense<0.000000e+00> : vector<8xf32>
    %28 = vector.multi_reduction <add>, %27, %cst_39 [0] : vector<256x8xf32> to vector<8xf32>
    %29 = vector.shape_cast %28 : vector<8xf32> to vector<1x8xf32>
    %30 = arith.addf %19, %29 : vector<1x8xf32>
    %31 = tpu.concatenate %9, %11, %3, %5 in 1 : vector<256x4xf32>, vector<256x4xf32>, vector<256x4xf32>, vector<256x4xf32> -> vector<256x16xf32>
    %c1_40 = arith.constant 1 : index
    %c0_41 = arith.constant 0 : index
    %c0_42 = arith.constant 0 : index
    %32 = vector.load %arg2[%c1_40, %c0_41, %c0_42] : memref<4x16x8xf32, #tpu.memory_space<vmem>>, vector<1x16x8xf32>
    %33 = vector.shape_cast %32 : vector<1x16x8xf32> to vector<16x8xf32>
    %cst_43 = arith.constant dense<0.000000e+00> : vector<256x8xf32>
    %34 = tpu.matmul %31, %33, %cst_43 {dimension_numbers = #tpu.dot_dimension_numbers<[1], [0], [0], [1], [0, 0, 1, 1], [], []>} : vector<256x16xf32>, vector<16x8xf32>, vector<256x8xf32> -> vector<256x8xf32>
    %cst_44 = arith.constant dense<0.000000e+00> : vector<8xf32>
    %35 = vector.multi_reduction <add>, %34, %cst_44 [0] : vector<256x8xf32> to vector<8xf32>
    %36 = vector.shape_cast %35 : vector<8xf32> to vector<1x8xf32>
    %37 = arith.addf %26, %36 : vector<1x8xf32>
    %38 = arith.mulf %34, %34 : vector<256x8xf32>
    %cst_45 = arith.constant dense<0.000000e+00> : vector<8xf32>
    %39 = vector.multi_reduction <add>, %38, %cst_45 [0] : vector<256x8xf32> to vector<8xf32>
    %40 = vector.shape_cast %39 : vector<8xf32> to vector<1x8xf32>
    %41 = arith.addf %30, %40 : vector<1x8xf32>
    %42 = tpu.concatenate %9, %7, %15, %13 in 1 : vector<256x4xf32>, vector<256x4xf32>, vector<256x4xf32>, vector<256x4xf32> -> vector<256x16xf32>
    %c2_46 = arith.constant 2 : index
    %c0_47 = arith.constant 0 : index
    %c0_48 = arith.constant 0 : index
    %43 = vector.load %arg2[%c2_46, %c0_47, %c0_48] : memref<4x16x8xf32, #tpu.memory_space<vmem>>, vector<1x16x8xf32>
    %44 = vector.shape_cast %43 : vector<1x16x8xf32> to vector<16x8xf32>
    %cst_49 = arith.constant dense<0.000000e+00> : vector<256x8xf32>
    %45 = tpu.matmul %42, %44, %cst_49 {dimension_numbers = #tpu.dot_dimension_numbers<[1], [0], [0], [1], [0, 0, 1, 1], [], []>} : vector<256x16xf32>, vector<16x8xf32>, vector<256x8xf32> -> vector<256x8xf32>
    %cst_50 = arith.constant dense<0.000000e+00> : vector<8xf32>
    %46 = vector.multi_reduction <add>, %45, %cst_50 [0] : vector<256x8xf32> to vector<8xf32>
    %47 = vector.shape_cast %46 : vector<8xf32> to vector<1x8xf32>
    %48 = arith.addf %37, %47 : vector<1x8xf32>
    %49 = arith.mulf %45, %45 : vector<256x8xf32>
    %cst_51 = arith.constant dense<0.000000e+00> : vector<8xf32>
    %50 = vector.multi_reduction <add>, %49, %cst_51 [0] : vector<256x8xf32> to vector<8xf32>
    %51 = vector.shape_cast %50 : vector<8xf32> to vector<1x8xf32>
    %52 = arith.addf %41, %51 : vector<1x8xf32>
    %53 = tpu.concatenate %9, %11, %15, %17 in 1 : vector<256x4xf32>, vector<256x4xf32>, vector<256x4xf32>, vector<256x4xf32> -> vector<256x16xf32>
    %c3 = arith.constant 3 : index
    %c0_52 = arith.constant 0 : index
    %c0_53 = arith.constant 0 : index
    %54 = vector.load %arg2[%c3, %c0_52, %c0_53] : memref<4x16x8xf32, #tpu.memory_space<vmem>>, vector<1x16x8xf32>
    %55 = vector.shape_cast %54 : vector<1x16x8xf32> to vector<16x8xf32>
    %cst_54 = arith.constant dense<0.000000e+00> : vector<256x8xf32>
    %56 = tpu.matmul %53, %55, %cst_54 {dimension_numbers = #tpu.dot_dimension_numbers<[1], [0], [0], [1], [0, 0, 1, 1], [], []>} : vector<256x16xf32>, vector<16x8xf32>, vector<256x8xf32> -> vector<256x8xf32>
    %cst_55 = arith.constant dense<0.000000e+00> : vector<8xf32>
    %57 = vector.multi_reduction <add>, %56, %cst_55 [0] : vector<256x8xf32> to vector<8xf32>
    %58 = vector.shape_cast %57 : vector<8xf32> to vector<1x8xf32>
    %59 = arith.addf %48, %58 : vector<1x8xf32>
    %60 = arith.mulf %56, %56 : vector<256x8xf32>
    %cst_56 = arith.constant dense<0.000000e+00> : vector<8xf32>
    %61 = vector.multi_reduction <add>, %60, %cst_56 [0] : vector<256x8xf32> to vector<8xf32>
    %62 = vector.shape_cast %61 : vector<8xf32> to vector<1x8xf32>
    %63 = arith.addf %52, %62 : vector<1x8xf32>
    %c0_57 = arith.constant 0 : index
    %c0_58 = arith.constant 0 : index
    %c0_59 = arith.constant 0 : index
    %64 = vector.load %arg3[%c0_57, %c0_58, %c0_59] : memref<1x2x8xf32, #tpu.memory_space<vmem>>, vector<1x1x8xf32>
    %65 = vector.shape_cast %64 : vector<1x1x8xf32> to vector<1x8xf32>
    %66 = vector.shape_cast %59 : vector<1x8xf32> to vector<1x1x8xf32>
    tpu.vector_store %arg3[%c0_57, %c0_58, %c0_59], %66 {strides = array<i32>} : memref<1x2x8xf32, #tpu.memory_space<vmem>>, vector<1x1x8xf32>,
    %c0_60 = arith.constant 0 : index
    %c1_61 = arith.constant 1 : index
    %c0_62 = arith.constant 0 : index
    %67 = vector.load %arg3[%c0_60, %c1_61, %c0_62] : memref<1x2x8xf32, #tpu.memory_space<vmem>>, vector<1x1x8xf32>
    %68 = vector.shape_cast %67 : vector<1x1x8xf32> to vector<1x8xf32>
    %69 = vector.shape_cast %63 : vector<1x8xf32> to vector<1x1x8xf32>
    tpu.vector_store %arg3[%c0_60, %c1_61, %c0_62], %69 {strides = array<i32>} : memref<1x2x8xf32, #tpu.memory_space<vmem>>, vector<1x1x8xf32>,
    return
  }
  func.func @transform_0(%arg0: i32) -> (i32, i32, i32, i32) {
    %c0_i32 = arith.constant 0 : i32
    %c0_i32_0 = arith.constant 0 : i32
    %c0_i32_1 = arith.constant 0 : i32
    %c0_i32_2 = arith.constant 0 : i32
    return %arg0, %c0_i32, %c0_i32_0, %c0_i32_1 : i32, i32, i32, i32
  }
  func.func @transform_1(%arg0: i32) -> (i32, i32, i32) {
    %c0_i32 = arith.constant 0 : i32
    %c0_i32_0 = arith.constant 0 : i32
    %c0_i32_1 = arith.constant 0 : i32
    %c0_i32_2 = arith.constant 0 : i32
    return %c0_i32, %c0_i32_0, %c0_i32_1 : i32, i32, i32
  }
  func.func @transform_2(%arg0: i32) -> (i32, i32, i32) {
    %c0_i32 = arith.constant 0 : i32
    %c0_i32_0 = arith.constant 0 : i32
    %c0_i32_1 = arith.constant 0 : i32
    return %arg0, %c0_i32, %c0_i32_0 : i32, i32, i32
  }
}

module attributes {stable_mosaic.version = 11 : i64} {
  func.func @_deconv_bn_lrelu_kernel(%arg0: i32, %arg1: memref<1x18x18x4xf32, #tpu.memory_space<vmem>>, %arg2: memref<4x16x8xf32, #tpu.memory_space<vmem>>, %arg3: memref<1x8xf32, #tpu.memory_space<vmem>>, %arg4: memref<1x8xf32, #tpu.memory_space<vmem>>, %arg5: memref<1x16x2x16x16xf32, #tpu.memory_space<vmem>>) attributes {dimension_semantics = [#tpu.dimension_semantics<parallel>], iteration_bounds = array<i64: 2>, scalar_prefetch = 0 : i64, scratch_operands = 0 : i64, tpu.core_type = #tpu.core_type<tc>, window_params = [{transform_indices = @transform_0, window_bounds = array<i64: 1, 18, 18, 4>}, {pipeline_mode = #tpu.pipeline_mode<synchronous>, transform_indices = @transform_1, window_bounds = array<i64: 4, 16, 8>}, {pipeline_mode = #tpu.pipeline_mode<synchronous>, transform_indices = @transform_2, window_bounds = array<i64: 1, 8>}, {pipeline_mode = #tpu.pipeline_mode<synchronous>, transform_indices = @transform_3, window_bounds = array<i64: 1, 8>}, {transform_indices = @transform_4, window_bounds = array<i64: 1, 16, 2, 16, 16>}]} {
    %c0 = arith.constant 0 : index
    %c0_0 = arith.constant 0 : index
    %0 = vector.load %arg3[%c0, %c0_0] : memref<1x8xf32, #tpu.memory_space<vmem>>, vector<1x8xf32>
    %c0_1 = arith.constant 0 : index
    %c0_2 = arith.constant 0 : index
    %1 = vector.load %arg4[%c0_1, %c0_2] : memref<1x8xf32, #tpu.memory_space<vmem>>, vector<1x8xf32>
    %c0_3 = arith.constant 0 : index
    %c0_4 = arith.constant 0 : index
    %c0_5 = arith.constant 0 : index
    %c0_6 = arith.constant 0 : index
    %2 = vector.load %arg1[%c0_3, %c0_4, %c0_5, %c0_6] : memref<1x18x18x4xf32, #tpu.memory_space<vmem>>, vector<1x16x16x4xf32>
    %3 = vector.shape_cast %2 : vector<1x16x16x4xf32> to vector<256x4xf32>
    %c0_7 = arith.constant 0 : index
    %c0_8 = arith.constant 0 : index
    %c1 = arith.constant 1 : index
    %c0_9 = arith.constant 0 : index
    %4 = vector.load %arg1[%c0_7, %c0_8, %c1, %c0_9] : memref<1x18x18x4xf32, #tpu.memory_space<vmem>>, vector<1x16x16x4xf32>
    %5 = vector.shape_cast %4 : vector<1x16x16x4xf32> to vector<256x4xf32>
    %c0_10 = arith.constant 0 : index
    %c0_11 = arith.constant 0 : index
    %c2 = arith.constant 2 : index
    %c0_12 = arith.constant 0 : index
    %6 = vector.load %arg1[%c0_10, %c0_11, %c2, %c0_12] : memref<1x18x18x4xf32, #tpu.memory_space<vmem>>, vector<1x16x16x4xf32>
    %7 = vector.shape_cast %6 : vector<1x16x16x4xf32> to vector<256x4xf32>
    %c0_13 = arith.constant 0 : index
    %c1_14 = arith.constant 1 : index
    %c0_15 = arith.constant 0 : index
    %c0_16 = arith.constant 0 : index
    %8 = vector.load %arg1[%c0_13, %c1_14, %c0_15, %c0_16] : memref<1x18x18x4xf32, #tpu.memory_space<vmem>>, vector<1x16x16x4xf32>
    %9 = vector.shape_cast %8 : vector<1x16x16x4xf32> to vector<256x4xf32>
    %c0_17 = arith.constant 0 : index
    %c1_18 = arith.constant 1 : index
    %c1_19 = arith.constant 1 : index
    %c0_20 = arith.constant 0 : index
    %10 = vector.load %arg1[%c0_17, %c1_18, %c1_19, %c0_20] : memref<1x18x18x4xf32, #tpu.memory_space<vmem>>, vector<1x16x16x4xf32>
    %11 = vector.shape_cast %10 : vector<1x16x16x4xf32> to vector<256x4xf32>
    %c0_21 = arith.constant 0 : index
    %c1_22 = arith.constant 1 : index
    %c2_23 = arith.constant 2 : index
    %c0_24 = arith.constant 0 : index
    %12 = vector.load %arg1[%c0_21, %c1_22, %c2_23, %c0_24] : memref<1x18x18x4xf32, #tpu.memory_space<vmem>>, vector<1x16x16x4xf32>
    %13 = vector.shape_cast %12 : vector<1x16x16x4xf32> to vector<256x4xf32>
    %c0_25 = arith.constant 0 : index
    %c2_26 = arith.constant 2 : index
    %c0_27 = arith.constant 0 : index
    %c0_28 = arith.constant 0 : index
    %14 = vector.load %arg1[%c0_25, %c2_26, %c0_27, %c0_28] : memref<1x18x18x4xf32, #tpu.memory_space<vmem>>, vector<1x16x16x4xf32>
    %15 = vector.shape_cast %14 : vector<1x16x16x4xf32> to vector<256x4xf32>
    %c0_29 = arith.constant 0 : index
    %c2_30 = arith.constant 2 : index
    %c1_31 = arith.constant 1 : index
    %c0_32 = arith.constant 0 : index
    %16 = vector.load %arg1[%c0_29, %c2_30, %c1_31, %c0_32] : memref<1x18x18x4xf32, #tpu.memory_space<vmem>>, vector<1x16x16x4xf32>
    %17 = vector.shape_cast %16 : vector<1x16x16x4xf32> to vector<256x4xf32>
    %c0_33 = arith.constant 0 : index
    %c2_34 = arith.constant 2 : index
    %c2_35 = arith.constant 2 : index
    %c0_36 = arith.constant 0 : index
    %18 = vector.load %arg1[%c0_33, %c2_34, %c2_35, %c0_36] : memref<1x18x18x4xf32, #tpu.memory_space<vmem>>, vector<1x16x16x4xf32>
    %19 = vector.shape_cast %18 : vector<1x16x16x4xf32> to vector<256x4xf32>
    %20 = tpu.concatenate %11, %9, %5, %3 in 1 : vector<256x4xf32>, vector<256x4xf32>, vector<256x4xf32>, vector<256x4xf32> -> vector<256x16xf32>
    %c0_37 = arith.constant 0 : index
    %c0_38 = arith.constant 0 : index
    %c0_39 = arith.constant 0 : index
    %21 = vector.load %arg2[%c0_37, %c0_38, %c0_39] : memref<4x16x8xf32, #tpu.memory_space<vmem>>, vector<1x16x8xf32>
    %22 = vector.shape_cast %21 : vector<1x16x8xf32> to vector<16x8xf32>
    %cst = arith.constant dense<0.000000e+00> : vector<256x8xf32>
    %23 = tpu.matmul %20, %22, %cst {dimension_numbers = #tpu.dot_dimension_numbers<[1], [0], [0], [1], [0, 0, 1, 1], [], []>} : vector<256x16xf32>, vector<16x8xf32>, vector<256x8xf32> -> vector<256x8xf32>
    %24 = vector.broadcast %0 : vector<1x8xf32> to vector<256x8xf32>
    %25 = arith.mulf %23, %24 : vector<256x8xf32>
    %26 = vector.broadcast %1 : vector<1x8xf32> to vector<256x8xf32>
    %27 = arith.addf %25, %26 : vector<256x8xf32>
    %cst_40 = arith.constant 0.000000e+00 : f32
    %28 = vector.broadcast %cst_40 : f32 to vector<256x8xf32>
    %29 = arith.cmpf oge, %27, %28 : vector<256x8xf32>
    %cst_41 = arith.constant 2.000000e-01 : f32
    %30 = vector.broadcast %cst_41 : f32 to vector<256x8xf32>
    %31 = arith.mulf %30, %27 : vector<256x8xf32>
    %32 = arith.select %29, %27, %31 : vector<256x8xi1>, vector<256x8xf32>
    %33 = vector.shape_cast %32 : vector<256x8xf32> to vector<1x16x16x8xf32>
    %34 = tpu.concatenate %11, %13, %5, %7 in 1 : vector<256x4xf32>, vector<256x4xf32>, vector<256x4xf32>, vector<256x4xf32> -> vector<256x16xf32>
    %c1_42 = arith.constant 1 : index
    %c0_43 = arith.constant 0 : index
    %c0_44 = arith.constant 0 : index
    %35 = vector.load %arg2[%c1_42, %c0_43, %c0_44] : memref<4x16x8xf32, #tpu.memory_space<vmem>>, vector<1x16x8xf32>
    %36 = vector.shape_cast %35 : vector<1x16x8xf32> to vector<16x8xf32>
    %cst_45 = arith.constant dense<0.000000e+00> : vector<256x8xf32>
    %37 = tpu.matmul %34, %36, %cst_45 {dimension_numbers = #tpu.dot_dimension_numbers<[1], [0], [0], [1], [0, 0, 1, 1], [], []>} : vector<256x16xf32>, vector<16x8xf32>, vector<256x8xf32> -> vector<256x8xf32>
    %38 = vector.broadcast %0 : vector<1x8xf32> to vector<256x8xf32>
    %39 = arith.mulf %37, %38 : vector<256x8xf32>
    %40 = vector.broadcast %1 : vector<1x8xf32> to vector<256x8xf32>
    %41 = arith.addf %39, %40 : vector<256x8xf32>
    %cst_46 = arith.constant 0.000000e+00 : f32
    %42 = vector.broadcast %cst_46 : f32 to vector<256x8xf32>
    %43 = arith.cmpf oge, %41, %42 : vector<256x8xf32>
    %cst_47 = arith.constant 2.000000e-01 : f32
    %44 = vector.broadcast %cst_47 : f32 to vector<256x8xf32>
    %45 = arith.mulf %44, %41 : vector<256x8xf32>
    %46 = arith.select %43, %41, %45 : vector<256x8xi1>, vector<256x8xf32>
    %47 = vector.shape_cast %46 : vector<256x8xf32> to vector<1x16x16x8xf32>
    %48 = tpu.concatenate %33, %47 in 3 : vector<1x16x16x8xf32>, vector<1x16x16x8xf32> -> vector<1x16x16x16xf32>
    %c0_48 = arith.constant 0 : index
    %c0_49 = arith.constant 0 : index
    %c0_50 = arith.constant 0 : index
    %c0_51 = arith.constant 0 : index
    %c0_52 = arith.constant 0 : index
    %49 = vector.load %arg5[%c0_48, %c0_49, %c0_50, %c0_51, %c0_52] : memref<1x16x2x16x16xf32, #tpu.memory_space<vmem>>, vector<1x16x1x16x16xf32>
    %50 = vector.shape_cast %49 : vector<1x16x1x16x16xf32> to vector<1x16x16x16xf32>
    %51 = vector.shape_cast %48 : vector<1x16x16x16xf32> to vector<1x16x1x16x16xf32>
    tpu.vector_store %arg5[%c0_48, %c0_49, %c0_50, %c0_51, %c0_52], %51 {strides = array<i32>} : memref<1x16x2x16x16xf32, #tpu.memory_space<vmem>>, vector<1x16x1x16x16xf32>,
    %52 = tpu.concatenate %11, %9, %17, %15 in 1 : vector<256x4xf32>, vector<256x4xf32>, vector<256x4xf32>, vector<256x4xf32> -> vector<256x16xf32>
    %c2_53 = arith.constant 2 : index
    %c0_54 = arith.constant 0 : index
    %c0_55 = arith.constant 0 : index
    %53 = vector.load %arg2[%c2_53, %c0_54, %c0_55] : memref<4x16x8xf32, #tpu.memory_space<vmem>>, vector<1x16x8xf32>
    %54 = vector.shape_cast %53 : vector<1x16x8xf32> to vector<16x8xf32>
    %cst_56 = arith.constant dense<0.000000e+00> : vector<256x8xf32>
    %55 = tpu.matmul %52, %54, %cst_56 {dimension_numbers = #tpu.dot_dimension_numbers<[1], [0], [0], [1], [0, 0, 1, 1], [], []>} : vector<256x16xf32>, vector<16x8xf32>, vector<256x8xf32> -> vector<256x8xf32>
    %56 = vector.broadcast %0 : vector<1x8xf32> to vector<256x8xf32>
    %57 = arith.mulf %55, %56 : vector<256x8xf32>
    %58 = vector.broadcast %1 : vector<1x8xf32> to vector<256x8xf32>
    %59 = arith.addf %57, %58 : vector<256x8xf32>
    %cst_57 = arith.constant 0.000000e+00 : f32
    %60 = vector.broadcast %cst_57 : f32 to vector<256x8xf32>
    %61 = arith.cmpf oge, %59, %60 : vector<256x8xf32>
    %cst_58 = arith.constant 2.000000e-01 : f32
    %62 = vector.broadcast %cst_58 : f32 to vector<256x8xf32>
    %63 = arith.mulf %62, %59 : vector<256x8xf32>
    %64 = arith.select %61, %59, %63 : vector<256x8xi1>, vector<256x8xf32>
    %65 = vector.shape_cast %64 : vector<256x8xf32> to vector<1x16x16x8xf32>
    %66 = tpu.concatenate %11, %13, %17, %19 in 1 : vector<256x4xf32>, vector<256x4xf32>, vector<256x4xf32>, vector<256x4xf32> -> vector<256x16xf32>
    %c3 = arith.constant 3 : index
    %c0_59 = arith.constant 0 : index
    %c0_60 = arith.constant 0 : index
    %67 = vector.load %arg2[%c3, %c0_59, %c0_60] : memref<4x16x8xf32, #tpu.memory_space<vmem>>, vector<1x16x8xf32>
    %68 = vector.shape_cast %67 : vector<1x16x8xf32> to vector<16x8xf32>
    %cst_61 = arith.constant dense<0.000000e+00> : vector<256x8xf32>
    %69 = tpu.matmul %66, %68, %cst_61 {dimension_numbers = #tpu.dot_dimension_numbers<[1], [0], [0], [1], [0, 0, 1, 1], [], []>} : vector<256x16xf32>, vector<16x8xf32>, vector<256x8xf32> -> vector<256x8xf32>
    %70 = vector.broadcast %0 : vector<1x8xf32> to vector<256x8xf32>
    %71 = arith.mulf %69, %70 : vector<256x8xf32>
    %72 = vector.broadcast %1 : vector<1x8xf32> to vector<256x8xf32>
    %73 = arith.addf %71, %72 : vector<256x8xf32>
    %cst_62 = arith.constant 0.000000e+00 : f32
    %74 = vector.broadcast %cst_62 : f32 to vector<256x8xf32>
    %75 = arith.cmpf oge, %73, %74 : vector<256x8xf32>
    %cst_63 = arith.constant 2.000000e-01 : f32
    %76 = vector.broadcast %cst_63 : f32 to vector<256x8xf32>
    %77 = arith.mulf %76, %73 : vector<256x8xf32>
    %78 = arith.select %75, %73, %77 : vector<256x8xi1>, vector<256x8xf32>
    %79 = vector.shape_cast %78 : vector<256x8xf32> to vector<1x16x16x8xf32>
    %80 = tpu.concatenate %65, %79 in 3 : vector<1x16x16x8xf32>, vector<1x16x16x8xf32> -> vector<1x16x16x16xf32>
    %c0_64 = arith.constant 0 : index
    %c0_65 = arith.constant 0 : index
    %c1_66 = arith.constant 1 : index
    %c0_67 = arith.constant 0 : index
    %c0_68 = arith.constant 0 : index
    %81 = vector.load %arg5[%c0_64, %c0_65, %c1_66, %c0_67, %c0_68] : memref<1x16x2x16x16xf32, #tpu.memory_space<vmem>>, vector<1x16x1x16x16xf32>
    %82 = vector.shape_cast %81 : vector<1x16x1x16x16xf32> to vector<1x16x16x16xf32>
    %83 = vector.shape_cast %80 : vector<1x16x16x16xf32> to vector<1x16x1x16x16xf32>
    tpu.vector_store %arg5[%c0_64, %c0_65, %c1_66, %c0_67, %c0_68], %83 {strides = array<i32>} : memref<1x16x2x16x16xf32, #tpu.memory_space<vmem>>, vector<1x16x1x16x16xf32>,
    return
  }
  func.func @transform_0(%arg0: i32) -> (i32, i32, i32, i32) {
    %c0_i32 = arith.constant 0 : i32
    %c0_i32_0 = arith.constant 0 : i32
    %c0_i32_1 = arith.constant 0 : i32
    %c0_i32_2 = arith.constant 0 : i32
    return %arg0, %c0_i32, %c0_i32_0, %c0_i32_1 : i32, i32, i32, i32
  }
  func.func @transform_1(%arg0: i32) -> (i32, i32, i32) {
    %c0_i32 = arith.constant 0 : i32
    %c0_i32_0 = arith.constant 0 : i32
    %c0_i32_1 = arith.constant 0 : i32
    %c0_i32_2 = arith.constant 0 : i32
    return %c0_i32, %c0_i32_0, %c0_i32_1 : i32, i32, i32
  }
  func.func @transform_2(%arg0: i32) -> (i32, i32) {
    %c0_i32 = arith.constant 0 : i32
    %c0_i32_0 = arith.constant 0 : i32
    %c0_i32_1 = arith.constant 0 : i32
    return %c0_i32, %c0_i32_0 : i32, i32
  }
  func.func @transform_3(%arg0: i32) -> (i32, i32) {
    %c0_i32 = arith.constant 0 : i32
    %c0_i32_0 = arith.constant 0 : i32
    %c0_i32_1 = arith.constant 0 : i32
    return %c0_i32, %c0_i32_0 : i32, i32
  }
  func.func @transform_4(%arg0: i32) -> (i32, i32, i32, i32, i32) {
    %c0_i32 = arith.constant 0 : i32
    %c0_i32_0 = arith.constant 0 : i32
    %c0_i32_1 = arith.constant 0 : i32
    %c0_i32_2 = arith.constant 0 : i32
    %c0_i32_3 = arith.constant 0 : i32
    return %arg0, %c0_i32, %c0_i32_0, %c0_i32_1, %c0_i32_2 : i32, i32, i32, i32, i32
  }
}

</mosaic_0001>

<llo_original>
// kernel: deconv_block_forward.2
$region0: #{deconv_block_forward.2}
  #allocation0 [shape = 'u32[]', space=smem, size = 0x4, offset = 0x4, fixed_abs, tag = 'smem constant byte address 0x4 - core index']
  #allocation1 [shape = 'u32[72,128]{1,0:T(1,128)}', space=vmem, size = 0x9000, scoped, tag = 'internal scratch']
  %s0 = inlined_call_operand.vmem [shape: f32[2,18,18,4], index: 0, kind: input, shape index: {}]
  %s1 = inlined_call_operand.vmem [shape: f32[4,16,8], index: 1, kind: input, shape index: {}]
  %s2 = inlined_call_operand.vmem [shape: f32[2,2,8], index: 2, kind: output, shape index: {}]
  %s3 = sld [smem:[#allocation0]]
  $region41: #{deconv_block_forward.2} parent=0
    _
  %s5 = ssub.s32 1, %s3
  %s6 = scalar_select 0, %s5, %s3
  loop: start=0, step=1, limit=4
  $region2: #{deconv_block_forward.2} parent=0 // loop_pre_header
    _
  $region3: #{deconv_block_forward.2} parent=0 // loop_header
    %s8 = sphi 0, %s12
    %p9 = scmp.ge.s32.totalorder %s8, 4
    %s18 = sphi 0, %s20
    %s21 = sphi 0, %s18
    %s22 = sphi 0, %s21
    %s38 = sphi 0, %s22
    %s42 = sphi 0, %s42
    %s44 = sphi 0, %s42
    %s45 = sphi 0, %s44
    %s59 = sphi 0, %s45
    %s65 = sphi 0, %s67
    %s68 = sphi 0, %s65
    %s69 = sphi 0, %s68
    %s85 = sphi 0, %s69
  $region4: #{deconv_block_forward.2} parent=0 // loop_header_branch
    %11 = sbr.rel (%p9) target = $region8
  $region5: #{deconv_block_forward.2} parent=0 // loop_body
    %s13 = ssub.s32 %s8, 1
    %s14 = ssub.s32 %s8, 2
    %s15 = sadd.s32 %s8, 1
    %s16 = ssub.s32 %s8, %s15
    %p17 = scmp.eq.s32.totalorder %s16, 0
    %s19 = sadd.s32 %s18, 1
    %s20 = scalar_select %p17, %s18, %s19
    %p23 = pneg %p17
    %p24 = scmp.eq.s32.totalorder %s8, 1
    %p25 = por %p23, %p24
    %p26 = scmp.ne.s32.totalorder %s18, %s21
    %p27 = scmp.eq.s32.totalorder %s8, 0
    %p28 = por %p26, %p27
    %p29 = scmp.ne.s32.totalorder %s18, %s21
    %p30 = scmp.eq.s32.totalorder %s13, 1
    %p31 = por %p29, %p30
    %p32 = scmp.ne.s32.totalorder %s21, %s22
    %p33 = scmp.eq.s32.totalorder %s13, 0
    %p34 = por %p32, %p33
    %p35 = scmp.ne.s32.totalorder %s21, %s22
    %p36 = scmp.eq.s32.totalorder %s14, 1
    %p37 = por %p35, %p36
    %p39 = scmp.ne.s32.totalorder %s22, %s38
    %p40 = scmp.eq.s32.totalorder %s14, 0
    %p41 = por %p39, %p40
    %s43 = sadd.s32 %s42, 1
    %p46 = scmp.eq.s32.totalorder %s8, 1
    %p47 = scmp.ne.s32.totalorder %s42, %s44
    %p48 = scmp.eq.s32.totalorder %s8, 0
    %p49 = por %p47, %p48
    %p50 = scmp.ne.s32.totalorder %s42, %s44
    %p51 = scmp.eq.s32.totalorder %s13, 1
    %p52 = por %p50, %p51
    %p53 = scmp.ne.s32.totalorder %s44, %s45
    %p54 = scmp.eq.s32.totalorder %s13, 0
    %p55 = por %p53, %p54
    %p56 = scmp.ne.s32.totalorder %s44, %s45
    %p57 = scmp.eq.s32.totalorder %s14, 1
    %p58 = por %p56, %p57
    %p60 = scmp.ne.s32.totalorder %s45, %s59
    %p61 = scmp.eq.s32.totalorder %s14, 0
    %p62 = por %p60, %p61
    %s63 = ssub.s32 %s8, %s15
    %p64 = scmp.eq.s32.totalorder %s63, 0
    %s66 = sadd.s32 %s65, 1
    %s67 = scalar_select %p64, %s65, %s66
    %p70 = pneg %p64
    %p71 = scmp.eq.s32.totalorder %s8, 1
    %p72 = por %p70, %p71
    %p73 = scmp.ne.s32.totalorder %s65, %s68
    %p74 = scmp.eq.s32.totalorder %s8, 0
    %p75 = por %p73, %p74
    %p76 = scmp.ne.s32.totalorder %s65, %s68
    %p77 = scmp.eq.s32.totalorder %s13, 1
    %p78 = por %p76, %p77
    %p79 = scmp.ne.s32.totalorder %s68, %s69
    %p80 = scmp.eq.s32.totalorder %s13, 0
    %p81 = por %p79, %p80
    %p82 = scmp.ne.s32.totalorder %s68, %s69
    %p83 = scmp.eq.s32.totalorder %s14, 1
    %p84 = por %p82, %p83
    %p86 = scmp.ne.s32.totalorder %s69, %s85
    %p87 = scmp.eq.s32.totalorder %s14, 0
    %p88 = por %p86, %p87
    %p89 = scmp.le.s32.totalorder 1, %s8
    %p90 = scmp.lt.s32.totalorder %s8, 3
    %p91 = pnand %p89, %p90
    %p92 = pneg %p91
    // Predicated region
    $region9: #{deconv_block_forward.2} parent=5 // pred_check
      _
    $region10: #{deconv_block_forward.2} parent=5 // pred_check_branch
      %94 = sbr.rel (%p91) target = $region12
    $region11: #{deconv_block_forward.2} parent=5 // pred_region
      %s95 = ssub.s32 %s8, 1
      // Predicated region
      $region13: #{deconv_block_forward.2} parent=11 // pred_check
        %p96 = pneg %p55
      $region14: #{deconv_block_forward.2} parent=11 // pred_check_branch
        %98 = sbr.rel (%p96) target = $region16
      $region15: #{deconv_block_forward.2} parent=11 // pred_region
        _
      $region16: #{deconv_block_forward.2} parent=11 // pred_fallthru
        _
    $region12: #{deconv_block_forward.2} parent=5 // pred_fallthru
      _
    %p99 = scmp.lt.s32.totalorder %s8, 2
    // Predicated region
    $region17: #{deconv_block_forward.2} parent=5 // pred_check
      %p100 = pneg %p99
    $region18: #{deconv_block_forward.2} parent=5 // pred_check_branch
      %102 = sbr.rel (%p100) target = $region20
    $region19: #{deconv_block_forward.2} parent=5 // pred_region
      // Predicated region
      $region21: #{deconv_block_forward.2} parent=19 // pred_check
        %p103 = pneg %p28
      $region22: #{deconv_block_forward.2} parent=19 // pred_check_branch
        %105 = sbr.rel (%p103) target = $region24
      $region23: #{deconv_block_forward.2} parent=19 // pred_region
        %p106 = scmp.lt.s32.totalorder %s8, 1
        %s107 = scalar_select %p106, %s8, 1
        %s108 = smul.addr %s107, 54
        %s109 = smul.addr %s108, 8
        %s110 = scalar_lea.vmem %s0, %s109
      $region24: #{deconv_block_forward.2} parent=19 // pred_fallthru
        _
    $region20: #{deconv_block_forward.2} parent=5 // pred_fallthru
      _
    %p111 = scmp.le.s32.totalorder 1, %s8
    %p112 = scmp.lt.s32.totalorder %s8, 3
    %p113 = pnand %p111, %p112
    %p114 = pneg %p113
    // Predicated region
    $region25: #{deconv_block_forward.2} parent=5 // pred_check
      _
    $region26: #{deconv_block_forward.2} parent=5 // pred_check_branch
      %116 = sbr.rel (%p113) target = $region28
    $region27: #{deconv_block_forward.2} parent=5 // pred_region
      %s117 = ssub.s32 %s8, 1
      %p118 = scmp.lt.s32.totalorder %s13, 1
      %s119 = scalar_select %p118, %s13, 1
      %s120 = smul.addr %s119, 54
      %s121 = smul.addr %s120, 8
      %s122 = scalar_lea.vmem %s0, %s121
      %p123 = pneg %p34
      %p124 = pneg %p31
      %p125 = pneg %p55
      %p126 = pneg %p52
      %p127 = pneg %p81
      %p128 = pneg %p78
      %p129 = scmp.lt.s32.totalorder %s13, 1
      %s130 = scalar_select %p129, %s13, 1
      %s131 = smul.addr %s130, 2
      %s132 = scalar_lea.vmem %s2, %s131
      %p133 = scmp.lt.s32.totalorder %s13, 1
      %s134 = scalar_select %p133, %s13, 1
      %s135 = smul.addr %s134, 54
      %s136 = smul.addr %s135, 8
      %s137 = scalar_lea.vmem %s0, %s136
      %p138 = scmp.lt.s32.totalorder %s13, 1
      %s139 = scalar_select %p138, %s13, 1
      %s140 = smul.addr %s139, 2
      %s141 = scalar_lea.vmem %s2, %s140
      %v142 = vld [vmem:[%s137] sm:$0xff]
      %v143 = vld [vmem:[%s137 + $0x8] sm:$0xff]
      %v144 = vld [vmem:[%s137 + $0x18] sm:$0xff]
      %v145 = vld [vmem:[%s137 + $0x20] sm:$0xff]
      %v146 = vld [vmem:[%s137 + $0x30] sm:$0xff]
      %v147 = vld [vmem:[%s137 + $0x38] sm:$0xff]
      %v148 = vld [vmem:[%s137 + $0x48] sm:$0xff]
      %v149 = vld [vmem:[%s137 + $0x50] sm:$0xff]
      %v150 = vld [vmem:[%s137 + $0x60] sm:$0xff]
      %v151 = vld [vmem:[%s137 + $0x68] sm:$0xff]
      %v152 = vld [vmem:[%s137 + $0x78] sm:$0xff]
      %v153 = vld [vmem:[%s137 + $0x80] sm:$0xff]
      %v154 = vld [vmem:[%s137 + $0x90] sm:$0xff]
      %v155 = vld [vmem:[%s137 + $0x98] sm:$0xff]
      %v156 = vld [vmem:[%s137 + $0xa8] sm:$0xff]
      %v157 = vld [vmem:[%s137 + $0xb0] sm:$0xff]
      %v158 = vld [vmem:[%s137 + $0xc0] sm:$0xff]
      %v159 = vld [vmem:[%s137 + $0xc8] sm:$0xff]
      %v160 = vld [vmem:[%s137 + $0xd8] sm:$0xff]
      %v161 = vld [vmem:[%s137 + $0xe0] sm:$0xff]
      %v162 = vld [vmem:[%s137 + $0xf0] sm:$0xff]
      %v163 = vld [vmem:[%s137 + $0xf8] sm:$0xff]
      %v164 = vld [vmem:[%s137 + $0x108] sm:$0xff]
      %v165 = vld [vmem:[%s137 + $0x110] sm:$0xff]
      %v166 = vld [vmem:[%s137 + $0x120] sm:$0xff]
      %v167 = vld [vmem:[%s137 + $0x128] sm:$0xff]
      %v168 = vld [vmem:[%s137 + $0x138] sm:$0xff]
      %v169 = vld [vmem:[%s137 + $0x140] sm:$0xff]
      %v170 = vld [vmem:[%s137 + $0x150] sm:$0xff]
      %v171 = vld [vmem:[%s137 + $0x158] sm:$0xff]
      %v172 = vld [vmem:[%s137 + $0x168] sm:$0xff]
      %v173 = vld [vmem:[%s137 + $0x170] sm:$0xff]
      %v174 = vld [vmem:[%s137 + $0x1] sm:$0xff]
      %v175 = vld [vmem:[%s137 + $0x9] sm:$0xff]
      %v176 = vld [vmem:[%s137 + $0x19] sm:$0xff]
      %v177 = vld [vmem:[%s137 + $0x21] sm:$0xff]
      %v178 = vld [vmem:[%s137 + $0x31] sm:$0xff]
      %v179 = vld [vmem:[%s137 + $0x39] sm:$0xff]
      %v180 = vld [vmem:[%s137 + $0x49] sm:$0xff]
      %v181 = vld [vmem:[%s137 + $0x51] sm:$0xff]
      %v182 = vld [vmem:[%s137 + $0x61] sm:$0xff]
      %v183 = vld [vmem:[%s137 + $0x69] sm:$0xff]
      %v184 = vld [vmem:[%s137 + $0x79] sm:$0xff]
      %v185 = vld [vmem:[%s137 + $0x81] sm:$0xff]
      %v186 = vld [vmem:[%s137 + $0x91] sm:$0xff]
      %v187 = vld [vmem:[%s137 + $0x99] sm:$0xff]
      %v188 = vld [vmem:[%s137 + $0xa9] sm:$0xff]
      %v189 = vld [vmem:[%s137 + $0xb1] sm:$0xff]
      %v190 = vld [vmem:[%s137 + $0xc1] sm:$0xff]
      %v191 = vld [vmem:[%s137 + $0xc9] sm:$0xff]
      %v192 = vld [vmem:[%s137 + $0xd9] sm:$0xff]
      %v193 = vld [vmem:[%s137 + $0xe1] sm:$0xff]
      %v194 = vld [vmem:[%s137 + $0xf1] sm:$0xff]
      %v195 = vld [vmem:[%s137 + $0xf9] sm:$0xff]
      %v196 = vld [vmem:[%s137 + $0x109] sm:$0xff]
      %v197 = vld [vmem:[%s137 + $0x111] sm:$0xff]
      %v198 = vld [vmem:[%s137 + $0x121] sm:$0xff]
      %v199 = vld [vmem:[%s137 + $0x129] sm:$0xff]
      %v200 = vld [vmem:[%s137 + $0x139] sm:$0xff]
      %v201 = vld [vmem:[%s137 + $0x141] sm:$0xff]
      %v202 = vld [vmem:[%s137 + $0x151] sm:$0xff]
      %v203 = vld [vmem:[%s137 + $0x159] sm:$0xff]
      %v204 = vld [vmem:[%s137 + $0x169] sm:$0xff]
      %v205 = vld [vmem:[%s137 + $0x171] sm:$0xff]
      %v206 = vld [vmem:[%s137 + $0x2] sm:$0xff]
      %v207 = vld [vmem:[%s137 + $0xa] sm:$0xff]
      %v208 = vld [vmem:[%s137 + $0x1a] sm:$0xff]
      %v209 = vld [vmem:[%s137 + $0x22] sm:$0xff]
      %v210 = vld [vmem:[%s137 + $0x32] sm:$0xff]
      %v211 = vld [vmem:[%s137 + $0x3a] sm:$0xff]
      %v212 = vld [vmem:[%s137 + $0x4a] sm:$0xff]
      %v213 = vld [vmem:[%s137 + $0x52] sm:$0xff]
      %v214 = vld [vmem:[%s137 + $0x62] sm:$0xff]
      %v215 = vld [vmem:[%s137 + $0x6a] sm:$0xff]
      %v216 = vld [vmem:[%s137 + $0x7a] sm:$0xff]
      %v217 = vld [vmem:[%s137 + $0x82] sm:$0xff]
      %v218 = vld [vmem:[%s137 + $0x92] sm:$0xff]
      %v219 = vld [vmem:[%s137 + $0x9a] sm:$0xff]
      %v220 = vld [vmem:[%s137 + $0xaa] sm:$0xff]
      %v221 = vld [vmem:[%s137 + $0xb2] sm:$0xff]
      %v222 = vld [vmem:[%s137 + $0xc2] sm:$0xff]
      %v223 = vld [vmem:[%s137 + $0xca] sm:$0xff]
      %v224 = vld [vmem:[%s137 + $0xda] sm:$0xff]
      %v225 = vld [vmem:[%s137 + $0xe2] sm:$0xff]
      %v226 = vld [vmem:[%s137 + $0xf2] sm:$0xff]
      %v227 = vld [vmem:[%s137 + $0xfa] sm:$0xff]
      %v228 = vld [vmem:[%s137 + $0x10a] sm:$0xff]
      %v229 = vld [vmem:[%s137 + $0x112] sm:$0xff]
      %v230 = vld [vmem:[%s137 + $0x122] sm:$0xff]
      %v231 = vld [vmem:[%s137 + $0x12a] sm:$0xff]
      %v232 = vld [vmem:[%s137 + $0x13a] sm:$0xff]
      %v233 = vld [vmem:[%s137 + $0x142] sm:$0xff]
      %v234 = vld [vmem:[%s137 + $0x152] sm:$0xff]
      %v235 = vld [vmem:[%s137 + $0x15a] sm:$0xff]
      %v236 = vld [vmem:[%s137 + $0x16a] sm:$0xff]
      %v237 = vld [vmem:[%s137 + $0x172] sm:$0xff]
      %s238 = scalar_lea.vmem %s137, 24
      %v239 = vld [vmem:[%s238] sm:$0xff]
      %v240 = vld [vmem:[%s238 + $0x8] sm:$0xff]
      %v241 = vld [vmem:[%s238 + $0x18] sm:$0xff]
      %v242 = vld [vmem:[%s238 + $0x20] sm:$0xff]
      %v243 = vld [vmem:[%s238 + $0x30] sm:$0xff]
      %v244 = vld [vmem:[%s238 + $0x38] sm:$0xff]
      %v245 = vld [vmem:[%s238 + $0x48] sm:$0xff]
      %v246 = vld [vmem:[%s238 + $0x50] sm:$0xff]
      %v247 = vld [vmem:[%s238 + $0x60] sm:$0xff]
      %v248 = vld [vmem:[%s238 + $0x68] sm:$0xff]
      %v249 = vld [vmem:[%s238 + $0x78] sm:$0xff]
      %v250 = vld [vmem:[%s238 + $0x80] sm:$0xff]
      %v251 = vld [vmem:[%s238 + $0x90] sm:$0xff]
      %v252 = vld [vmem:[%s238 + $0x98] sm:$0xff]
      %v253 = vld [vmem:[%s238 + $0xa8] sm:$0xff]
      %v254 = vld [vmem:[%s238 + $0xb0] sm:$0xff]
      %v255 = vld [vmem:[%s238 + $0xc0] sm:$0xff]
      %v256 = vld [vmem:[%s238 + $0xc8] sm:$0xff]
      %v257 = vld [vmem:[%s238 + $0xd8] sm:$0xff]
      %v258 = vld [vmem:[%s238 + $0xe0] sm:$0xff]
      %v259 = vld [vmem:[%s238 + $0xf0] sm:$0xff]
      %v260 = vld [vmem:[%s238 + $0xf8] sm:$0xff]
      %v261 = vld [vmem:[%s238 + $0x108] sm:$0xff]
      %v262 = vld [vmem:[%s238 + $0x110] sm:$0xff]
      %v263 = vld [vmem:[%s238 + $0x120] sm:$0xff]
      %v264 = vld [vmem:[%s238 + $0x128] sm:$0xff]
      %v265 = vld [vmem:[%s238 + $0x138] sm:$0xff]
      %v266 = vld [vmem:[%s238 + $0x140] sm:$0xff]
      %v267 = vld [vmem:[%s238 + $0x150] sm:$0xff]
      %v268 = vld [vmem:[%s238 + $0x158] sm:$0xff]
      %v269 = vld [vmem:[%s238 + $0x168] sm:$0xff]
      %v270 = vld [vmem:[%s238 + $0x170] sm:$0xff]
      %v271 = vld [vmem:[%s238 + $0x1] sm:$0xff]
      %v272 = vld [vmem:[%s238 + $0x9] sm:$0xff]
      %v273 = vld [vmem:[%s238 + $0x19] sm:$0xff]
      %v274 = vld [vmem:[%s238 + $0x21] sm:$0xff]
      %v275 = vld [vmem:[%s238 + $0x31] sm:$0xff]
      %v276 = vld [vmem:[%s238 + $0x39] sm:$0xff]
      %v277 = vld [vmem:[%s238 + $0x49] sm:$0xff]
      %v278 = vld [vmem:[%s238 + $0x51] sm:$0xff]
      %v279 = vld [vmem:[%s238 + $0x61] sm:$0xff]
      %v280 = vld [vmem:[%s238 + $0x69] sm:$0xff]
      %v281 = vld [vmem:[%s238 + $0x79] sm:$0xff]
      %v282 = vld [vmem:[%s238 + $0x81] sm:$0xff]
      %v283 = vld [vmem:[%s238 + $0x91] sm:$0xff]
      %v284 = vld [vmem:[%s238 + $0x99] sm:$0xff]
      %v285 = vld [vmem:[%s238 + $0xa9] sm:$0xff]
      %v286 = vld [vmem:[%s238 + $0xb1] sm:$0xff]
      %v287 = vld [vmem:[%s238 + $0xc1] sm:$0xff]
      %v288 = vld [vmem:[%s238 + $0xc9] sm:$0xff]
      %v289 = vld [vmem:[%s238 + $0xd9] sm:$0xff]
      %v290 = vld [vmem:[%s238 + $0xe1] sm:$0xff]
      %v291 = vld [vmem:[%s238 + $0xf1] sm:$0xff]
      %v292 = vld [vmem:[%s238 + $0xf9] sm:$0xff]
      %v293 = vld [vmem:[%s238 + $0x109] sm:$0xff]
      %v294 = vld [vmem:[%s238 + $0x111] sm:$0xff]
      %v295 = vld [vmem:[%s238 + $0x121] sm:$0xff]
      %v296 = vld [vmem:[%s238 + $0x129] sm:$0xff]
      %v297 = vld [vmem:[%s238 + $0x139] sm:$0xff]
      %v298 = vld [vmem:[%s238 + $0x141] sm:$0xff]
      %v299 = vld [vmem:[%s238 + $0x151] sm:$0xff]
      %v300 = vld [vmem:[%s238 + $0x159] sm:$0xff]
      %v301 = vld [vmem:[%s238 + $0x169] sm:$0xff]
      %v302 = vld [vmem:[%s238 + $0x171] sm:$0xff]
      %v303 = vld [vmem:[%s238 + $0x2] sm:$0xff]
      %v304 = vld [vmem:[%s238 + $0xa] sm:$0xff]
      %v305 = vld [vmem:[%s238 + $0x1a] sm:$0xff]
      %v306 = vld [vmem:[%s238 + $0x22] sm:$0xff]
      %v307 = vld [vmem:[%s238 + $0x32] sm:$0xff]
      %v308 = vld [vmem:[%s238 + $0x3a] sm:$0xff]
      %v309 = vld [vmem:[%s238 + $0x4a] sm:$0xff]
      %v310 = vld [vmem:[%s238 + $0x52] sm:$0xff]
      %v311 = vld [vmem:[%s238 + $0x62] sm:$0xff]
      %v312 = vld [vmem:[%s238 + $0x6a] sm:$0xff]
      %v313 = vld [vmem:[%s238 + $0x7a] sm:$0xff]
      %v314 = vld [vmem:[%s238 + $0x82] sm:$0xff]
      %v315 = vld [vmem:[%s238 + $0x92] sm:$0xff]
      %v316 = vld [vmem:[%s238 + $0x9a] sm:$0xff]
      %v317 = vld [vmem:[%s238 + $0xaa] sm:$0xff]
      %v318 = vld [vmem:[%s238 + $0xb2] sm:$0xff]
      %v319 = vld [vmem:[%s238 + $0xc2] sm:$0xff]
      %v320 = vld [vmem:[%s238 + $0xca] sm:$0xff]
      %v321 = vld [vmem:[%s238 + $0xda] sm:$0xff]
      %v322 = vld [vmem:[%s238 + $0xe2] sm:$0xff]
      %v323 = vld [vmem:[%s238 + $0xf2] sm:$0xff]
      %v324 = vld [vmem:[%s238 + $0xfa] sm:$0xff]
      %v325 = vld [vmem:[%s238 + $0x10a] sm:$0xff]
      %v326 = vld [vmem:[%s238 + $0x112] sm:$0xff]
      %v327 = vld [vmem:[%s238 + $0x122] sm:$0xff]
      %v328 = vld [vmem:[%s238 + $0x12a] sm:$0xff]
      %v329 = vld [vmem:[%s238 + $0x13a] sm:$0xff]
      %v330 = vld [vmem:[%s238 + $0x142] sm:$0xff]
      %v331 = vld [vmem:[%s238 + $0x152] sm:$0xff]
      %v332 = vld [vmem:[%s238 + $0x15a] sm:$0xff]
      %v333 = vld [vmem:[%s238 + $0x16a] sm:$0xff]
      %v334 = vld [vmem:[%s238 + $0x172] sm:$0xff]
      %s335 = scalar_lea.vmem %s137, 48
      %v336 = vld [vmem:[%s335] sm:$0xff]
      %v337 = vld [vmem:[%s335 + $0x8] sm:$0xff]
      %v338 = vld [vmem:[%s335 + $0x18] sm:$0xff]
      %v339 = vld [vmem:[%s335 + $0x20] sm:$0xff]
      %v340 = vld [vmem:[%s335 + $0x30] sm:$0xff]
      %v341 = vld [vmem:[%s335 + $0x38] sm:$0xff]
      %v342 = vld [vmem:[%s335 + $0x48] sm:$0xff]
      %v343 = vld [vmem:[%s335 + $0x50] sm:$0xff]
      %v344 = vld [vmem:[%s335 + $0x60] sm:$0xff]
      %v345 = vld [vmem:[%s335 + $0x68] sm:$0xff]
      %v346 = vld [vmem:[%s335 + $0x78] sm:$0xff]
      %v347 = vld [vmem:[%s335 + $0x80] sm:$0xff]
      %v348 = vld [vmem:[%s335 + $0x90] sm:$0xff]
      %v349 = vld [vmem:[%s335 + $0x98] sm:$0xff]
      %v350 = vld [vmem:[%s335 + $0xa8] sm:$0xff]
      %v351 = vld [vmem:[%s335 + $0xb0] sm:$0xff]
      %v352 = vld [vmem:[%s335 + $0xc0] sm:$0xff]
      %v353 = vld [vmem:[%s335 + $0xc8] sm:$0xff]
      %v354 = vld [vmem:[%s335 + $0xd8] sm:$0xff]
      %v355 = vld [vmem:[%s335 + $0xe0] sm:$0xff]
      %v356 = vld [vmem:[%s335 + $0xf0] sm:$0xff]
      %v357 = vld [vmem:[%s335 + $0xf8] sm:$0xff]
      %v358 = vld [vmem:[%s335 + $0x108] sm:$0xff]
      %v359 = vld [vmem:[%s335 + $0x110] sm:$0xff]
      %v360 = vld [vmem:[%s335 + $0x120] sm:$0xff]
      %v361 = vld [vmem:[%s335 + $0x128] sm:$0xff]
      %v362 = vld [vmem:[%s335 + $0x138] sm:$0xff]
      %v363 = vld [vmem:[%s335 + $0x140] sm:$0xff]
      %v364 = vld [vmem:[%s335 + $0x150] sm:$0xff]
      %v365 = vld [vmem:[%s335 + $0x158] sm:$0xff]
      %v366 = vld [vmem:[%s335 + $0x168] sm:$0xff]
      %v367 = vld [vmem:[%s335 + $0x170] sm:$0xff]
      %v368 = vld [vmem:[%s335 + $0x1] sm:$0xff]
      %v369 = vld [vmem:[%s335 + $0x9] sm:$0xff]
      %v370 = vld [vmem:[%s335 + $0x19] sm:$0xff]
      %v371 = vld [vmem:[%s335 + $0x21] sm:$0xff]
      %v372 = vld [vmem:[%s335 + $0x31] sm:$0xff]
      %v373 = vld [vmem:[%s335 + $0x39] sm:$0xff]
      %v374 = vld [vmem:[%s335 + $0x49] sm:$0xff]
      %v375 = vld [vmem:[%s335 + $0x51] sm:$0xff]
      %v376 = vld [vmem:[%s335 + $0x61] sm:$0xff]
      %v377 = vld [vmem:[%s335 + $0x69] sm:$0xff]
      %v378 = vld [vmem:[%s335 + $0x79] sm:$0xff]
      %v379 = vld [vmem:[%s335 + $0x81] sm:$0xff]
      %v380 = vld [vmem:[%s335 + $0x91] sm:$0xff]
      %v381 = vld [vmem:[%s335 + $0x99] sm:$0xff]
      %v382 = vld [vmem:[%s335 + $0xa9] sm:$0xff]
      %v383 = vld [vmem:[%s335 + $0xb1] sm:$0xff]
      %v384 = vld [vmem:[%s335 + $0xc1] sm:$0xff]
      %v385 = vld [vmem:[%s335 + $0xc9] sm:$0xff]
      %v386 = vld [vmem:[%s335 + $0xd9] sm:$0xff]
      %v387 = vld [vmem:[%s335 + $0xe1] sm:$0xff]
      %v388 = vld [vmem:[%s335 + $0xf1] sm:$0xff]
      %v389 = vld [vmem:[%s335 + $0xf9] sm:$0xff]
      %v390 = vld [vmem:[%s335 + $0x109] sm:$0xff]
      %v391 = vld [vmem:[%s335 + $0x111] sm:$0xff]
      %v392 = vld [vmem:[%s335 + $0x121] sm:$0xff]
      %v393 = vld [vmem:[%s335 + $0x129] sm:$0xff]
      %v394 = vld [vmem:[%s335 + $0x139] sm:$0xff]
      %v395 = vld [vmem:[%s335 + $0x141] sm:$0xff]
      %v396 = vld [vmem:[%s335 + $0x151] sm:$0xff]
      %v397 = vld [vmem:[%s335 + $0x159] sm:$0xff]
      %v398 = vld [vmem:[%s335 + $0x169] sm:$0xff]
      %v399 = vld [vmem:[%s335 + $0x171] sm:$0xff]
      %v400 = vld [vmem:[%s335 + $0x2] sm:$0xff]
      %v401 = vld [vmem:[%s335 + $0xa] sm:$0xff]
      %v402 = vld [vmem:[%s335 + $0x1a] sm:$0xff]
      %v403 = vld [vmem:[%s335 + $0x22] sm:$0xff]
      %v404 = vld [vmem:[%s335 + $0x32] sm:$0xff]
      %v405 = vld [vmem:[%s335 + $0x3a] sm:$0xff]
      %v406 = vld [vmem:[%s335 + $0x4a] sm:$0xff]
      %v407 = vld [vmem:[%s335 + $0x52] sm:$0xff]
      %v408 = vld [vmem:[%s335 + $0x62] sm:$0xff]
      %v409 = vld [vmem:[%s335 + $0x6a] sm:$0xff]
      %v410 = vld [vmem:[%s335 + $0x7a] sm:$0xff]
      %v411 = vld [vmem:[%s335 + $0x82] sm:$0xff]
      %v412 = vld [vmem:[%s335 + $0x92] sm:$0xff]
      %v413 = vld [vmem:[%s335 + $0x9a] sm:$0xff]
      %v414 = vld [vmem:[%s335 + $0xaa] sm:$0xff]
      %v415 = vld [vmem:[%s335 + $0xb2] sm:$0xff]
      %v416 = vld [vmem:[%s335 + $0xc2] sm:$0xff]
      %v417 = vld [vmem:[%s335 + $0xca] sm:$0xff]
      %v418 = vld [vmem:[%s335 + $0xda] sm:$0xff]
      %v419 = vld [vmem:[%s335 + $0xe2] sm:$0xff]
      %v420 = vld [vmem:[%s335 + $0xf2] sm:$0xff]
      %v421 = vld [vmem:[%s335 + $0xfa] sm:$0xff]
      %v422 = vld [vmem:[%s335 + $0x10a] sm:$0xff]
      %v423 = vld [vmem:[%s335 + $0x112] sm:$0xff]
      %v424 = vld [vmem:[%s335 + $0x122] sm:$0xff]
      %v425 = vld [vmem:[%s335 + $0x12a] sm:$0xff]
      %v426 = vld [vmem:[%s335 + $0x13a] sm:$0xff]
      %v427 = vld [vmem:[%s335 + $0x142] sm:$0xff]
      %v428 = vld [vmem:[%s335 + $0x152] sm:$0xff]
      %v429 = vld [vmem:[%s335 + $0x15a] sm:$0xff]
      %v430 = vld [vmem:[%s335 + $0x16a] sm:$0xff]
      %v431 = vld [vmem:[%s335 + $0x172] sm:$0xff]
      %464 = vrot.lane.b32.xlu0 %v239, 4
      %v465 = vpop.permute.xlu0 %464
      %466 = vrot.lane.b32.xlu0 %v240, 4
      %v467 = vpop.permute.xlu0 %466
      %468 = vrot.lane.b32.xlu0 %v241, 4
      %v469 = vpop.permute.xlu0 %468
      %470 = vrot.lane.b32.xlu0 %v242, 4
      %v471 = vpop.permute.xlu0 %470
      %472 = vrot.lane.b32.xlu0 %v243, 4
      %v473 = vpop.permute.xlu0 %472
      %474 = vrot.lane.b32.xlu0 %v244, 4
      %v475 = vpop.permute.xlu0 %474
      %476 = vrot.lane.b32.xlu0 %v245, 4
      %v477 = vpop.permute.xlu0 %476
      %478 = vrot.lane.b32.xlu0 %v246, 4
      %v479 = vpop.permute.xlu0 %478
      %480 = vrot.lane.b32.xlu0 %v247, 4
      %v481 = vpop.permute.xlu0 %480
      %482 = vrot.lane.b32.xlu0 %v248, 4
      %v483 = vpop.permute.xlu0 %482
      %484 = vrot.lane.b32.xlu0 %v249, 4
      %v485 = vpop.permute.xlu0 %484
      %486 = vrot.lane.b32.xlu0 %v250, 4
      %v487 = vpop.permute.xlu0 %486
      %488 = vrot.lane.b32.xlu0 %v251, 4
      %v489 = vpop.permute.xlu0 %488
      %490 = vrot.lane.b32.xlu0 %v252, 4
      %v491 = vpop.permute.xlu0 %490
      %492 = vrot.lane.b32.xlu0 %v253, 4
      %v493 = vpop.permute.xlu0 %492
      %494 = vrot.lane.b32.xlu0 %v254, 4
      %v495 = vpop.permute.xlu0 %494
      %496 = vrot.lane.b32.xlu0 %v255, 4
      %v497 = vpop.permute.xlu0 %496
      %498 = vrot.lane.b32.xlu0 %v256, 4
      %v499 = vpop.permute.xlu0 %498
      %500 = vrot.lane.b32.xlu0 %v257, 4
      %v501 = vpop.permute.xlu0 %500
      %502 = vrot.lane.b32.xlu0 %v258, 4
      %v503 = vpop.permute.xlu0 %502
      %504 = vrot.lane.b32.xlu0 %v259, 4
      %v505 = vpop.permute.xlu0 %504
      %506 = vrot.lane.b32.xlu0 %v260, 4
      %v507 = vpop.permute.xlu0 %506
      %508 = vrot.lane.b32.xlu0 %v261, 4
      %v509 = vpop.permute.xlu0 %508
      %510 = vrot.lane.b32.xlu0 %v262, 4
      %v511 = vpop.permute.xlu0 %510
      %512 = vrot.lane.b32.xlu0 %v263, 4
      %v513 = vpop.permute.xlu0 %512
      %514 = vrot.lane.b32.xlu0 %v264, 4
      %v515 = vpop.permute.xlu0 %514
      %516 = vrot.lane.b32.xlu0 %v265, 4
      %v517 = vpop.permute.xlu0 %516
      %518 = vrot.lane.b32.xlu0 %v266, 4
      %v519 = vpop.permute.xlu0 %518
      %520 = vrot.lane.b32.xlu0 %v267, 4
      %v521 = vpop.permute.xlu0 %520
      %522 = vrot.lane.b32.xlu0 %v268, 4
      %v523 = vpop.permute.xlu0 %522
      %524 = vrot.lane.b32.xlu0 %v269, 4
      %v525 = vpop.permute.xlu0 %524
      %526 = vrot.lane.b32.xlu0 %v270, 4
      %v527 = vpop.permute.xlu0 %526
      %592 = vrot.lane.b32.xlu0 %v174, 8
      %v593 = vpop.permute.xlu0 %592
      %594 = vrot.lane.b32.xlu0 %v175, 8
      %v595 = vpop.permute.xlu0 %594
      %596 = vrot.lane.b32.xlu0 %v176, 8
      %v597 = vpop.permute.xlu0 %596
      %598 = vrot.lane.b32.xlu0 %v177, 8
      %v599 = vpop.permute.xlu0 %598
      %600 = vrot.lane.b32.xlu0 %v178, 8
      %v601 = vpop.permute.xlu0 %600
      %602 = vrot.lane.b32.xlu0 %v179, 8
      %v603 = vpop.permute.xlu0 %602
      %604 = vrot.lane.b32.xlu0 %v180, 8
      %v605 = vpop.permute.xlu0 %604
      %606 = vrot.lane.b32.xlu0 %v181, 8
      %v607 = vpop.permute.xlu0 %606
      %608 = vrot.lane.b32.xlu0 %v182, 8
      %v609 = vpop.permute.xlu0 %608
      %610 = vrot.lane.b32.xlu0 %v183, 8
      %v611 = vpop.permute.xlu0 %610
      %612 = vrot.lane.b32.xlu0 %v184, 8
      %v613 = vpop.permute.xlu0 %612
      %614 = vrot.lane.b32.xlu0 %v185, 8
      %v615 = vpop.permute.xlu0 %614
      %616 = vrot.lane.b32.xlu0 %v186, 8
      %v617 = vpop.permute.xlu0 %616
      %618 = vrot.lane.b32.xlu0 %v187, 8
      %v619 = vpop.permute.xlu0 %618
      %620 = vrot.lane.b32.xlu0 %v188, 8
      %v621 = vpop.permute.xlu0 %620
      %622 = vrot.lane.b32.xlu0 %v189, 8
      %v623 = vpop.permute.xlu0 %622
      %624 = vrot.lane.b32.xlu0 %v190, 8
      %v625 = vpop.permute.xlu0 %624
      %626 = vrot.lane.b32.xlu0 %v191, 8
      %v627 = vpop.permute.xlu0 %626
      %628 = vrot.lane.b32.xlu0 %v192, 8
      %v629 = vpop.permute.xlu0 %628
      %630 = vrot.lane.b32.xlu0 %v193, 8
      %v631 = vpop.permute.xlu0 %630
      %632 = vrot.lane.b32.xlu0 %v194, 8
      %v633 = vpop.permute.xlu0 %632
      %634 = vrot.lane.b32.xlu0 %v195, 8
      %v635 = vpop.permute.xlu0 %634
      %636 = vrot.lane.b32.xlu0 %v196, 8
      %v637 = vpop.permute.xlu0 %636
      %638 = vrot.lane.b32.xlu0 %v197, 8
      %v639 = vpop.permute.xlu0 %638
      %640 = vrot.lane.b32.xlu0 %v198, 8
      %v641 = vpop.permute.xlu0 %640
      %642 = vrot.lane.b32.xlu0 %v199, 8
      %v643 = vpop.permute.xlu0 %642
      %644 = vrot.lane.b32.xlu0 %v200, 8
      %v645 = vpop.permute.xlu0 %644
      %646 = vrot.lane.b32.xlu0 %v201, 8
      %v647 = vpop.permute.xlu0 %646
      %648 = vrot.lane.b32.xlu0 %v202, 8
      %v649 = vpop.permute.xlu0 %648
      %650 = vrot.lane.b32.xlu0 %v203, 8
      %v651 = vpop.permute.xlu0 %650
      %652 = vrot.lane.b32.xlu0 %v204, 8
      %v653 = vpop.permute.xlu0 %652
      %654 = vrot.lane.b32.xlu0 %v205, 8
      %v655 = vpop.permute.xlu0 %654
      %720 = vrot.lane.b32.xlu0 %v142, 12
      %v721 = vpop.permute.xlu0 %720
      %722 = vrot.lane.b32.xlu0 %v143, 12
      %v723 = vpop.permute.xlu0 %722
      %724 = vrot.lane.b32.xlu0 %v144, 12
      %v725 = vpop.permute.xlu0 %724
      %726 = vrot.lane.b32.xlu0 %v145, 12
      %v727 = vpop.permute.xlu0 %726
      %728 = vrot.lane.b32.xlu0 %v146, 12
      %v729 = vpop.permute.xlu0 %728
      %730 = vrot.lane.b32.xlu0 %v147, 12
      %v731 = vpop.permute.xlu0 %730
      %732 = vrot.lane.b32.xlu0 %v148, 12
      %v733 = vpop.permute.xlu0 %732
      %734 = vrot.lane.b32.xlu0 %v149, 12
      %v735 = vpop.permute.xlu0 %734
      %736 = vrot.lane.b32.xlu0 %v150, 12
      %v737 = vpop.permute.xlu0 %736
      %738 = vrot.lane.b32.xlu0 %v151, 12
      %v739 = vpop.permute.xlu0 %738
      %740 = vrot.lane.b32.xlu0 %v152, 12
      %v741 = vpop.permute.xlu0 %740
      %742 = vrot.lane.b32.xlu0 %v153, 12
      %v743 = vpop.permute.xlu0 %742
      %744 = vrot.lane.b32.xlu0 %v154, 12
      %v745 = vpop.permute.xlu0 %744
      %746 = vrot.lane.b32.xlu0 %v155, 12
      %v747 = vpop.permute.xlu0 %746
      %748 = vrot.lane.b32.xlu0 %v156, 12
      %v749 = vpop.permute.xlu0 %748
      %750 = vrot.lane.b32.xlu0 %v157, 12
      %v751 = vpop.permute.xlu0 %750
      %752 = vrot.lane.b32.xlu0 %v158, 12
      %v753 = vpop.permute.xlu0 %752
      %754 = vrot.lane.b32.xlu0 %v159, 12
      %v755 = vpop.permute.xlu0 %754
      %756 = vrot.lane.b32.xlu0 %v160, 12
      %v757 = vpop.permute.xlu0 %756
      %758 = vrot.lane.b32.xlu0 %v161, 12
      %v759 = vpop.permute.xlu0 %758
      %760 = vrot.lane.b32.xlu0 %v162, 12
      %v761 = vpop.permute.xlu0 %760
      %762 = vrot.lane.b32.xlu0 %v163, 12
      %v763 = vpop.permute.xlu0 %762
      %764 = vrot.lane.b32.xlu0 %v164, 12
      %v765 = vpop.permute.xlu0 %764
      %766 = vrot.lane.b32.xlu0 %v165, 12
      %v767 = vpop.permute.xlu0 %766
      %768 = vrot.lane.b32.xlu0 %v166, 12
      %v769 = vpop.permute.xlu0 %768
      %770 = vrot.lane.b32.xlu0 %v167, 12
      %v771 = vpop.permute.xlu0 %770
      %772 = vrot.lane.b32.xlu0 %v168, 12
      %v773 = vpop.permute.xlu0 %772
      %774 = vrot.lane.b32.xlu0 %v169, 12
      %v775 = vpop.permute.xlu0 %774
      %776 = vrot.lane.b32.xlu0 %v170, 12
      %v777 = vpop.permute.xlu0 %776
      %778 = vrot.lane.b32.xlu0 %v171, 12
      %v779 = vpop.permute.xlu0 %778
      %780 = vrot.lane.b32.xlu0 %v172, 12
      %v781 = vpop.permute.xlu0 %780
      %782 = vrot.lane.b32.xlu0 %v173, 12
      %v783 = vpop.permute.xlu0 %782
      %vm816 = vcmask 31744
      %v817 = vsel %vm816, %v271, %v465
      %v818 = vsel %vm816, %v272, %v467
      %v819 = vsel %vm816, %v273, %v469
      %v820 = vsel %vm816, %v274, %v471
      %v821 = vsel %vm816, %v275, %v473
      %v822 = vsel %vm816, %v276, %v475
      %v823 = vsel %vm816, %v277, %v477
      %v824 = vsel %vm816, %v278, %v479
      %v825 = vsel %vm816, %v279, %v481
      %v826 = vsel %vm816, %v280, %v483
      %v827 = vsel %vm816, %v281, %v485
      %v828 = vsel %vm816, %v282, %v487
      %v829 = vsel %vm816, %v283, %v489
      %v830 = vsel %vm816, %v284, %v491
      %v831 = vsel %vm816, %v285, %v493
      %v832 = vsel %vm816, %v286, %v495
      %v833 = vsel %vm816, %v287, %v497
      %v834 = vsel %vm816, %v288, %v499
      %v835 = vsel %vm816, %v289, %v501
      %v836 = vsel %vm816, %v290, %v503
      %v837 = vsel %vm816, %v291, %v505
      %v838 = vsel %vm816, %v292, %v507
      %v839 = vsel %vm816, %v293, %v509
      %v840 = vsel %vm816, %v294, %v511
      %v841 = vsel %vm816, %v295, %v513
      %v842 = vsel %vm816, %v296, %v515
      %v843 = vsel %vm816, %v297, %v517
      %v844 = vsel %vm816, %v298, %v519
      %v845 = vsel %vm816, %v299, %v521
      %v846 = vsel %vm816, %v300, %v523
      %v847 = vsel %vm816, %v301, %v525
      %v848 = vsel %vm816, %v302, %v527
      %vm849 = vcmask 64512
      %v850 = vsel %vm849, %v817, %v593
      %v851 = vsel %vm849, %v818, %v595
      %v852 = vsel %vm849, %v819, %v597
      %v853 = vsel %vm849, %v820, %v599
      %v854 = vsel %vm849, %v821, %v601
      %v855 = vsel %vm849, %v822, %v603
      %v856 = vsel %vm849, %v823, %v605
      %v857 = vsel %vm849, %v824, %v607
      %v858 = vsel %vm849, %v825, %v609
      %v859 = vsel %vm849, %v826, %v611
      %v860 = vsel %vm849, %v827, %v613
      %v861 = vsel %vm849, %v828, %v615
      %v862 = vsel %vm849, %v829, %v617
      %v863 = vsel %vm849, %v830, %v619
      %v864 = vsel %vm849, %v831, %v621
      %v865 = vsel %vm849, %v832, %v623
      %v866 = vsel %vm849, %v833, %v625
      %v867 = vsel %vm849, %v834, %v627
      %v868 = vsel %vm849, %v835, %v629
      %v869 = vsel %vm849, %v836, %v631
      %v870 = vsel %vm849, %v837, %v633
      %v871 = vsel %vm849, %v838, %v635
      %v872 = vsel %vm849, %v839, %v637
      %v873 = vsel %vm849, %v840, %v639
      %v874 = vsel %vm849, %v841, %v641
      %v875 = vsel %vm849, %v842, %v643
      %v876 = vsel %vm849, %v843, %v645
      %v877 = vsel %vm849, %v844, %v647
      %v878 = vsel %vm849, %v845, %v649
      %v879 = vsel %vm849, %v846, %v651
      %v880 = vsel %vm849, %v847, %v653
      %v881 = vsel %vm849, %v848, %v655
      %vm882 = vcmask 97280
      %v883 = vsel %vm882, %v850, %v721
      %v884 = vsel %vm882, %v851, %v723
      %v885 = vsel %vm882, %v852, %v725
      %v886 = vsel %vm882, %v853, %v727
      %v887 = vsel %vm882, %v854, %v729
      %v888 = vsel %vm882, %v855, %v731
      %v889 = vsel %vm882, %v856, %v733
      %v890 = vsel %vm882, %v857, %v735
      %v891 = vsel %vm882, %v858, %v737
      %v892 = vsel %vm882, %v859, %v739
      %v893 = vsel %vm882, %v860, %v741
      %v894 = vsel %vm882, %v861, %v743
      %v895 = vsel %vm882, %v862, %v745
      %v896 = vsel %vm882, %v863, %v747
      %v897 = vsel %vm882, %v864, %v749
      %v898 = vsel %vm882, %v865, %v751
      %v899 = vsel %vm882, %v866, %v753
      %v900 = vsel %vm882, %v867, %v755
      %v901 = vsel %vm882, %v868, %v757
      %v902 = vsel %vm882, %v869, %v759
      %v903 = vsel %vm882, %v870, %v761
      %v904 = vsel %vm882, %v871, %v763
      %v905 = vsel %vm882, %v872, %v765
      %v906 = vsel %vm882, %v873, %v767
      %v907 = vsel %vm882, %v874, %v769
      %v908 = vsel %vm882, %v875, %v771
      %v909 = vsel %vm882, %v876, %v773
      %v910 = vsel %vm882, %v877, %v775
      %v911 = vsel %vm882, %v878, %v777
      %v912 = vsel %vm882, %v879, %v779
      %v913 = vsel %vm882, %v880, %v781
      %v914 = vsel %vm882, %v881, %v783
      %v915 = vld [vmem:[%s1] sm:$0xff]
      %v916 = vld [vmem:[%s1 + $0x8] sm:$0xff]
      %vm917 = vcmask 130048
      %v919 = vsel %vm917, %v883, 0
      %v922 = vsel %vm917, %v884, 0
      %v925 = vsel %vm917, %v885, 0
      %v928 = vsel %vm917, %v886, 0
      %v931 = vsel %vm917, %v887, 0
      %v934 = vsel %vm917, %v888, 0
      %v937 = vsel %vm917, %v889, 0
      %v940 = vsel %vm917, %v890, 0
      %v943 = vsel %vm917, %v891, 0
      %v946 = vsel %vm917, %v892, 0
      %v949 = vsel %vm917, %v893, 0
      %v952 = vsel %vm917, %v894, 0
      %v955 = vsel %vm917, %v895, 0
      %v958 = vsel %vm917, %v896, 0
      %v961 = vsel %vm917, %v897, 0
      %v964 = vsel %vm917, %v898, 0
      %v967 = vsel %vm917, %v899, 0
      %v970 = vsel %vm917, %v900, 0
      %v973 = vsel %vm917, %v901, 0
      %v976 = vsel %vm917, %v902, 0
      %v979 = vsel %vm917, %v903, 0
      %v982 = vsel %vm917, %v904, 0
      %v985 = vsel %vm917, %v905, 0
      %v988 = vsel %vm917, %v906, 0
      %v991 = vsel %vm917, %v907, 0
      %v994 = vsel %vm917, %v908, 0
      %v997 = vsel %vm917, %v909, 0
      %v1000 = vsel %vm917, %v910, 0
      %v1003 = vsel %vm917, %v911, 0
      %v1006 = vsel %vm917, %v912, 0
      %v1009 = vsel %vm917, %v913, 0
      %v1012 = vsel %vm917, %v914, 0
      %1014 = vmatpush.msra.mxu0 0.0
      %1015 = vmatpush.msra.mxu0 0.0
      %1016 = vmatpush.msra.mxu0 0.0
      %1017 = vmatpush.msra.mxu0 0.0
      %1018 = vmatpush.msra.mxu0 0.0
      %1019 = vmatpush.msra.mxu0 0.0
      %1020 = vmatpush.msra.mxu0 0.0
      %1021 = vmatpush.msra.mxu0 0.0
      %1022 = vmatpush.msra.mxu0 0.0
      %1023 = vmatpush.msra.mxu0 0.0
      %1024 = vmatpush.msra.mxu0 0.0
      %1025 = vmatpush.msra.mxu0 0.0
      %1026 = vmatpush.msra.mxu0 0.0
      %1027 = vmatpush.msra.mxu0 0.0
      %1028 = vmatpush.msra.mxu0 %v916
      %1029 = vmatpush.msra.mxu0 %v915
      %1030 = vmatmul.f32.gmra.mxu0 %v919
      %v1031 = vpop.f32.mrf.mxu0
      %v1032 = vadd.f32 0.0, %v1031
      %1033 = vmatmul.f32.gmra.mxu0 %v922
      %v1034 = vpop.f32.mrf.mxu0
      %v1035 = vadd.f32 0.0, %v1034
      %1036 = vmatmul.f32.gmra.mxu0 %v925
      %v1037 = vpop.f32.mrf.mxu0
      %v1038 = vadd.f32 0.0, %v1037
      %1039 = vmatmul.f32.gmra.mxu0 %v928
      %v1040 = vpop.f32.mrf.mxu0
      %v1041 = vadd.f32 0.0, %v1040
      %1042 = vmatmul.f32.gmra.mxu0 %v931
      %v1043 = vpop.f32.mrf.mxu0
      %v1044 = vadd.f32 0.0, %v1043
      %1045 = vmatmul.f32.gmra.mxu0 %v934
      %v1046 = vpop.f32.mrf.mxu0
      %v1047 = vadd.f32 0.0, %v1046
      %1048 = vmatmul.f32.gmra.mxu0 %v937
      %v1049 = vpop.f32.mrf.mxu0
      %v1050 = vadd.f32 0.0, %v1049
      %1051 = vmatmul.f32.gmra.mxu0 %v940
      %v1052 = vpop.f32.mrf.mxu0
      %v1053 = vadd.f32 0.0, %v1052
      %1054 = vmatmul.f32.gmra.mxu0 %v943
      %v1055 = vpop.f32.mrf.mxu0
      %v1056 = vadd.f32 0.0, %v1055
      %1057 = vmatmul.f32.gmra.mxu0 %v946
      %v1058 = vpop.f32.mrf.mxu0
      %v1059 = vadd.f32 0.0, %v1058
      %1060 = vmatmul.f32.gmra.mxu0 %v949
      %v1061 = vpop.f32.mrf.mxu0
      %v1062 = vadd.f32 0.0, %v1061
      %1063 = vmatmul.f32.gmra.mxu0 %v952
      %v1064 = vpop.f32.mrf.mxu0
      %v1065 = vadd.f32 0.0, %v1064
      %1066 = vmatmul.f32.gmra.mxu0 %v955
      %v1067 = vpop.f32.mrf.mxu0
      %v1068 = vadd.f32 0.0, %v1067
      %1069 = vmatmul.f32.gmra.mxu0 %v958
      %v1070 = vpop.f32.mrf.mxu0
      %v1071 = vadd.f32 0.0, %v1070
      %1072 = vmatmul.f32.gmra.mxu0 %v961
      %v1073 = vpop.f32.mrf.mxu0
      %v1074 = vadd.f32 0.0, %v1073
      %1075 = vmatmul.f32.gmra.mxu0 %v964
      %v1076 = vpop.f32.mrf.mxu0
      %v1077 = vadd.f32 0.0, %v1076
      %1078 = vmatmul.f32.gmra.mxu0 %v967
      %v1079 = vpop.f32.mrf.mxu0
      %v1080 = vadd.f32 0.0, %v1079
      %1081 = vmatmul.f32.gmra.mxu0 %v970
      %v1082 = vpop.f32.mrf.mxu0
      %v1083 = vadd.f32 0.0, %v1082
      %1084 = vmatmul.f32.gmra.mxu0 %v973
      %v1085 = vpop.f32.mrf.mxu0
      %v1086 = vadd.f32 0.0, %v1085
      %1087 = vmatmul.f32.gmra.mxu0 %v976
      %v1088 = vpop.f32.mrf.mxu0
      %v1089 = vadd.f32 0.0, %v1088
      %1090 = vmatmul.f32.gmra.mxu0 %v979
      %v1091 = vpop.f32.mrf.mxu0
      %v1092 = vadd.f32 0.0, %v1091
      %1093 = vmatmul.f32.gmra.mxu0 %v982
      %v1094 = vpop.f32.mrf.mxu0
      %v1095 = vadd.f32 0.0, %v1094
      %1096 = vmatmul.f32.gmra.mxu0 %v985
      %v1097 = vpop.f32.mrf.mxu0
      %v1098 = vadd.f32 0.0, %v1097
      %1099 = vmatmul.f32.gmra.mxu0 %v988
      %v1100 = vpop.f32.mrf.mxu0
      %v1101 = vadd.f32 0.0, %v1100
      %1102 = vmatmul.f32.gmra.mxu0 %v991
      %v1103 = vpop.f32.mrf.mxu0
      %v1104 = vadd.f32 0.0, %v1103
      %1105 = vmatmul.f32.gmra.mxu0 %v994
      %v1106 = vpop.f32.mrf.mxu0
      %v1107 = vadd.f32 0.0, %v1106
      %1108 = vmatmul.f32.gmra.mxu0 %v997
      %v1109 = vpop.f32.mrf.mxu0
      %v1110 = vadd.f32 0.0, %v1109
      %1111 = vmatmul.f32.gmra.mxu0 %v1000
      %v1112 = vpop.f32.mrf.mxu0
      %v1113 = vadd.f32 0.0, %v1112
      %1114 = vmatmul.f32.gmra.mxu0 %v1003
      %v1115 = vpop.f32.mrf.mxu0
      %v1116 = vadd.f32 0.0, %v1115
      %1117 = vmatmul.f32.gmra.mxu0 %v1006
      %v1118 = vpop.f32.mrf.mxu0
      %v1119 = vadd.f32 0.0, %v1118
      %1120 = vmatmul.f32.gmra.mxu0 %v1009
      %v1121 = vpop.f32.mrf.mxu0
      %v1122 = vadd.f32 0.0, %v1121
      %1123 = vmatmul.f32.gmra.mxu0 %v1012
      %v1124 = vpop.f32.mrf.mxu0
      %v1125 = vadd.f32 0.0, %v1124
      %1126 = vdwg.mxu0
      %v1127 = vsel %vm849, %v1032, 0.0
      %v1128 = vsel %vm849, %v1035, 0.0
      %v1129 = vadd.f32 %v1127, %v1128
      %v1130 = vsel %vm849, %v1038, 0.0
      %v1131 = vadd.f32 %v1129, %v1130
      %v1132 = vsel %vm849, %v1041, 0.0
      %v1133 = vadd.f32 %v1131, %v1132
      %v1134 = vsel %vm849, %v1044, 0.0
      %v1135 = vadd.f32 %v1133, %v1134
      %v1136 = vsel %vm849, %v1047, 0.0
      %v1137 = vadd.f32 %v1135, %v1136
      %v1138 = vsel %vm849, %v1050, 0.0
      %v1139 = vadd.f32 %v1137, %v1138
      %v1140 = vsel %vm849, %v1053, 0.0
      %v1141 = vadd.f32 %v1139, %v1140
      %v1142 = vsel %vm849, %v1056, 0.0
      %v1143 = vadd.f32 %v1141, %v1142
      %v1144 = vsel %vm849, %v1059, 0.0
      %v1145 = vadd.f32 %v1143, %v1144
      %v1146 = vsel %vm849, %v1062, 0.0
      %v1147 = vadd.f32 %v1145, %v1146
      %v1148 = vsel %vm849, %v1065, 0.0
      %v1149 = vadd.f32 %v1147, %v1148
      %v1150 = vsel %vm849, %v1068, 0.0
      %v1151 = vadd.f32 %v1149, %v1150
      %v1152 = vsel %vm849, %v1071, 0.0
      %v1153 = vadd.f32 %v1151, %v1152
      %v1154 = vsel %vm849, %v1074, 0.0
      %v1155 = vadd.f32 %v1153, %v1154
      %v1156 = vsel %vm849, %v1077, 0.0
      %v1157 = vadd.f32 %v1155, %v1156
      %v1158 = vsel %vm849, %v1080, 0.0
      %v1159 = vadd.f32 %v1157, %v1158
      %v1160 = vsel %vm849, %v1083, 0.0
      %v1161 = vadd.f32 %v1159, %v1160
      %v1162 = vsel %vm849, %v1086, 0.0
      %v1163 = vadd.f32 %v1161, %v1162
      %v1164 = vsel %vm849, %v1089, 0.0
      %v1165 = vadd.f32 %v1163, %v1164
      %v1166 = vsel %vm849, %v1092, 0.0
      %v1167 = vadd.f32 %v1165, %v1166
      %v1168 = vsel %vm849, %v1095, 0.0
      %v1169 = vadd.f32 %v1167, %v1168
      %v1170 = vsel %vm849, %v1098, 0.0
      %v1171 = vadd.f32 %v1169, %v1170
      %v1172 = vsel %vm849, %v1101, 0.0
      %v1173 = vadd.f32 %v1171, %v1172
      %v1174 = vsel %vm849, %v1104, 0.0
      %v1175 = vadd.f32 %v1173, %v1174
      %v1176 = vsel %vm849, %v1107, 0.0
      %v1177 = vadd.f32 %v1175, %v1176
      %v1178 = vsel %vm849, %v1110, 0.0
      %v1179 = vadd.f32 %v1177, %v1178
      %v1180 = vsel %vm849, %v1113, 0.0
      %v1181 = vadd.f32 %v1179, %v1180
      %v1182 = vsel %vm849, %v1116, 0.0
      %v1183 = vadd.f32 %v1181, %v1182
      %v1184 = vsel %vm849, %v1119, 0.0
      %v1185 = vadd.f32 %v1183, %v1184
      %v1186 = vsel %vm849, %v1122, 0.0
      %v1187 = vadd.f32 %v1185, %v1186
      %v1188 = vsel %vm849, %v1125, 0.0
      %v1189 = vadd.f32 %v1187, %v1188
      %v1190 = vrot.slane %v1189, 4
      %v1191 = vadd.f32 %v1189, %v1190
      %v1192 = vrot.slane %v1191, 2
      %v1193 = vadd.f32 %v1191, %v1192
      %v1194 = vrot.slane %v1193, 1
      %v1195 = vadd.f32 %v1193, %v1194
      %v1196 = vadd.f32 %v1195, 0.0
      %v1197 = vmul.f32 %v1032, %v1032
      %v1198 = vmul.f32 %v1035, %v1035
      %v1199 = vmul.f32 %v1038, %v1038
      %v1200 = vmul.f32 %v1041, %v1041
      %v1201 = vmul.f32 %v1044, %v1044
      %v1202 = vmul.f32 %v1047, %v1047
      %v1203 = vmul.f32 %v1050, %v1050
      %v1204 = vmul.f32 %v1053, %v1053
      %v1205 = vmul.f32 %v1056, %v1056
      %v1206 = vmul.f32 %v1059, %v1059
      %v1207 = vmul.f32 %v1062, %v1062
      %v1208 = vmul.f32 %v1065, %v1065
      %v1209 = vmul.f32 %v1068, %v1068
      %v1210 = vmul.f32 %v1071, %v1071
      %v1211 = vmul.f32 %v1074, %v1074
      %v1212 = vmul.f32 %v1077, %v1077
      %v1213 = vmul.f32 %v1080, %v1080
      %v1214 = vmul.f32 %v1083, %v1083
      %v1215 = vmul.f32 %v1086, %v1086
      %v1216 = vmul.f32 %v1089, %v1089
      %v1217 = vmul.f32 %v1092, %v1092
      %v1218 = vmul.f32 %v1095, %v1095
      %v1219 = vmul.f32 %v1098, %v1098
      %v1220 = vmul.f32 %v1101, %v1101
      %v1221 = vmul.f32 %v1104, %v1104
      %v1222 = vmul.f32 %v1107, %v1107
      %v1223 = vmul.f32 %v1110, %v1110
      %v1224 = vmul.f32 %v1113, %v1113
      %v1225 = vmul.f32 %v1116, %v1116
      %v1226 = vmul.f32 %v1119, %v1119
      %v1227 = vmul.f32 %v1122, %v1122
      %v1228 = vmul.f32 %v1125, %v1125
      %v1229 = vsel %vm849, %v1197, 0.0
      %v1230 = vsel %vm849, %v1198, 0.0
      %v1231 = vadd.f32 %v1229, %v1230
      %v1232 = vsel %vm849, %v1199, 0.0
      %v1233 = vadd.f32 %v1231, %v1232
      %v1234 = vsel %vm849, %v1200, 0.0
      %v1235 = vadd.f32 %v1233, %v1234
      %v1236 = vsel %vm849, %v1201, 0.0
      %v1237 = vadd.f32 %v1235, %v1236
      %v1238 = vsel %vm849, %v1202, 0.0
      %v1239 = vadd.f32 %v1237, %v1238
      %v1240 = vsel %vm849, %v1203, 0.0
      %v1241 = vadd.f32 %v1239, %v1240
      %v1242 = vsel %vm849, %v1204, 0.0
      %v1243 = vadd.f32 %v1241, %v1242
      %v1244 = vsel %vm849, %v1205, 0.0
      %v1245 = vadd.f32 %v1243, %v1244
      %v1246 = vsel %vm849, %v1206, 0.0
      %v1247 = vadd.f32 %v1245, %v1246
      %v1248 = vsel %vm849, %v1207, 0.0
      %v1249 = vadd.f32 %v1247, %v1248
      %v1250 = vsel %vm849, %v1208, 0.0
      %v1251 = vadd.f32 %v1249, %v1250
      %v1252 = vsel %vm849, %v1209, 0.0
      %v1253 = vadd.f32 %v1251, %v1252
      %v1254 = vsel %vm849, %v1210, 0.0
      %v1255 = vadd.f32 %v1253, %v1254
      %v1256 = vsel %vm849, %v1211, 0.0
      %v1257 = vadd.f32 %v1255, %v1256
      %v1258 = vsel %vm849, %v1212, 0.0
      %v1259 = vadd.f32 %v1257, %v1258
      %v1260 = vsel %vm849, %v1213, 0.0
      %v1261 = vadd.f32 %v1259, %v1260
      %v1262 = vsel %vm849, %v1214, 0.0
      %v1263 = vadd.f32 %v1261, %v1262
      %v1264 = vsel %vm849, %v1215, 0.0
      %v1265 = vadd.f32 %v1263, %v1264
      %v1266 = vsel %vm849, %v1216, 0.0
      %v1267 = vadd.f32 %v1265, %v1266
      %v1268 = vsel %vm849, %v1217, 0.0
      %v1269 = vadd.f32 %v1267, %v1268
      %v1270 = vsel %vm849, %v1218, 0.0
      %v1271 = vadd.f32 %v1269, %v1270
      %v1272 = vsel %vm849, %v1219, 0.0
      %v1273 = vadd.f32 %v1271, %v1272
      %v1274 = vsel %vm849, %v1220, 0.0
      %v1275 = vadd.f32 %v1273, %v1274
      %v1276 = vsel %vm849, %v1221, 0.0
      %v1277 = vadd.f32 %v1275, %v1276
      %v1278 = vsel %vm849, %v1222, 0.0
      %v1279 = vadd.f32 %v1277, %v1278
      %v1280 = vsel %vm849, %v1223, 0.0
      %v1281 = vadd.f32 %v1279, %v1280
      %v1282 = vsel %vm849, %v1224, 0.0
      %v1283 = vadd.f32 %v1281, %v1282
      %v1284 = vsel %vm849, %v1225, 0.0
      %v1285 = vadd.f32 %v1283, %v1284
      %v1286 = vsel %vm849, %v1226, 0.0
      %v1287 = vadd.f32 %v1285, %v1286
      %v1288 = vsel %vm849, %v1227, 0.0
      %v1289 = vadd.f32 %v1287, %v1288
      %v1290 = vsel %vm849, %v1228, 0.0
      %v1291 = vadd.f32 %v1289, %v1290
      %v1292 = vrot.slane %v1291, 4
      %v1293 = vadd.f32 %v1291, %v1292
      %v1294 = vrot.slane %v1293, 2
      %v1295 = vadd.f32 %v1293, %v1294
      %v1296 = vrot.slane %v1295, 1
      %v1297 = vadd.f32 %v1295, %v1296
      %v1298 = vadd.f32 %v1297, 0.0
      %1331 = vrot.lane.b32.xlu0 %v303, 4
      %v1332 = vpop.permute.xlu0 %1331
      %1333 = vrot.lane.b32.xlu0 %v304, 4
      %v1334 = vpop.permute.xlu0 %1333
      %1335 = vrot.lane.b32.xlu0 %v305, 4
      %v1336 = vpop.permute.xlu0 %1335
      %1337 = vrot.lane.b32.xlu0 %v306, 4
      %v1338 = vpop.permute.xlu0 %1337
      %1339 = vrot.lane.b32.xlu0 %v307, 4
      %v1340 = vpop.permute.xlu0 %1339
      %1341 = vrot.lane.b32.xlu0 %v308, 4
      %v1342 = vpop.permute.xlu0 %1341
      %1343 = vrot.lane.b32.xlu0 %v309, 4
      %v1344 = vpop.permute.xlu0 %1343
      %1345 = vrot.lane.b32.xlu0 %v310, 4
      %v1346 = vpop.permute.xlu0 %1345
      %1347 = vrot.lane.b32.xlu0 %v311, 4
      %v1348 = vpop.permute.xlu0 %1347
      %1349 = vrot.lane.b32.xlu0 %v312, 4
      %v1350 = vpop.permute.xlu0 %1349
      %1351 = vrot.lane.b32.xlu0 %v313, 4
      %v1352 = vpop.permute.xlu0 %1351
      %1353 = vrot.lane.b32.xlu0 %v314, 4
      %v1354 = vpop.permute.xlu0 %1353
      %1355 = vrot.lane.b32.xlu0 %v315, 4
      %v1356 = vpop.permute.xlu0 %1355
      %1357 = vrot.lane.b32.xlu0 %v316, 4
      %v1358 = vpop.permute.xlu0 %1357
      %1359 = vrot.lane.b32.xlu0 %v317, 4
      %v1360 = vpop.permute.xlu0 %1359
      %1361 = vrot.lane.b32.xlu0 %v318, 4
      %v1362 = vpop.permute.xlu0 %1361
      %1363 = vrot.lane.b32.xlu0 %v319, 4
      %v1364 = vpop.permute.xlu0 %1363
      %1365 = vrot.lane.b32.xlu0 %v320, 4
      %v1366 = vpop.permute.xlu0 %1365
      %1367 = vrot.lane.b32.xlu0 %v321, 4
      %v1368 = vpop.permute.xlu0 %1367
      %1369 = vrot.lane.b32.xlu0 %v322, 4
      %v1370 = vpop.permute.xlu0 %1369
      %1371 = vrot.lane.b32.xlu0 %v323, 4
      %v1372 = vpop.permute.xlu0 %1371
      %1373 = vrot.lane.b32.xlu0 %v324, 4
      %v1374 = vpop.permute.xlu0 %1373
      %1375 = vrot.lane.b32.xlu0 %v325, 4
      %v1376 = vpop.permute.xlu0 %1375
      %1377 = vrot.lane.b32.xlu0 %v326, 4
      %v1378 = vpop.permute.xlu0 %1377
      %1379 = vrot.lane.b32.xlu0 %v327, 4
      %v1380 = vpop.permute.xlu0 %1379
      %1381 = vrot.lane.b32.xlu0 %v328, 4
      %v1382 = vpop.permute.xlu0 %1381
      %1383 = vrot.lane.b32.xlu0 %v329, 4
      %v1384 = vpop.permute.xlu0 %1383
      %1385 = vrot.lane.b32.xlu0 %v330, 4
      %v1386 = vpop.permute.xlu0 %1385
      %1387 = vrot.lane.b32.xlu0 %v331, 4
      %v1388 = vpop.permute.xlu0 %1387
      %1389 = vrot.lane.b32.xlu0 %v332, 4
      %v1390 = vpop.permute.xlu0 %1389
      %1391 = vrot.lane.b32.xlu0 %v333, 4
      %v1392 = vpop.permute.xlu0 %1391
      %1393 = vrot.lane.b32.xlu0 %v334, 4
      %v1394 = vpop.permute.xlu0 %1393
      %1459 = vrot.lane.b32.xlu0 %v206, 12
      %v1460 = vpop.permute.xlu0 %1459
      %1461 = vrot.lane.b32.xlu0 %v207, 12
      %v1462 = vpop.permute.xlu0 %1461
      %1463 = vrot.lane.b32.xlu0 %v208, 12
      %v1464 = vpop.permute.xlu0 %1463
      %1465 = vrot.lane.b32.xlu0 %v209, 12
      %v1466 = vpop.permute.xlu0 %1465
      %1467 = vrot.lane.b32.xlu0 %v210, 12
      %v1468 = vpop.permute.xlu0 %1467
      %1469 = vrot.lane.b32.xlu0 %v211, 12
      %v1470 = vpop.permute.xlu0 %1469
      %1471 = vrot.lane.b32.xlu0 %v212, 12
      %v1472 = vpop.permute.xlu0 %1471
      %1473 = vrot.lane.b32.xlu0 %v213, 12
      %v1474 = vpop.permute.xlu0 %1473
      %1475 = vrot.lane.b32.xlu0 %v214, 12
      %v1476 = vpop.permute.xlu0 %1475
      %1477 = vrot.lane.b32.xlu0 %v215, 12
      %v1478 = vpop.permute.xlu0 %1477
      %1479 = vrot.lane.b32.xlu0 %v216, 12
      %v1480 = vpop.permute.xlu0 %1479
      %1481 = vrot.lane.b32.xlu0 %v217, 12
      %v1482 = vpop.permute.xlu0 %1481
      %1483 = vrot.lane.b32.xlu0 %v218, 12
      %v1484 = vpop.permute.xlu0 %1483
      %1485 = vrot.lane.b32.xlu0 %v219, 12
      %v1486 = vpop.permute.xlu0 %1485
      %1487 = vrot.lane.b32.xlu0 %v220, 12
      %v1488 = vpop.permute.xlu0 %1487
      %1489 = vrot.lane.b32.xlu0 %v221, 12
      %v1490 = vpop.permute.xlu0 %1489
      %1491 = vrot.lane.b32.xlu0 %v222, 12
      %v1492 = vpop.permute.xlu0 %1491
      %1493 = vrot.lane.b32.xlu0 %v223, 12
      %v1494 = vpop.permute.xlu0 %1493
      %1495 = vrot.lane.b32.xlu0 %v224, 12
      %v1496 = vpop.permute.xlu0 %1495
      %1497 = vrot.lane.b32.xlu0 %v225, 12
      %v1498 = vpop.permute.xlu0 %1497
      %1499 = vrot.lane.b32.xlu0 %v226, 12
      %v1500 = vpop.permute.xlu0 %1499
      %1501 = vrot.lane.b32.xlu0 %v227, 12
      %v1502 = vpop.permute.xlu0 %1501
      %1503 = vrot.lane.b32.xlu0 %v228, 12
      %v1504 = vpop.permute.xlu0 %1503
      %1505 = vrot.lane.b32.xlu0 %v229, 12
      %v1506 = vpop.permute.xlu0 %1505
      %1507 = vrot.lane.b32.xlu0 %v230, 12
      %v1508 = vpop.permute.xlu0 %1507
      %1509 = vrot.lane.b32.xlu0 %v231, 12
      %v1510 = vpop.permute.xlu0 %1509
      %1511 = vrot.lane.b32.xlu0 %v232, 12
      %v1512 = vpop.permute.xlu0 %1511
      %1513 = vrot.lane.b32.xlu0 %v233, 12
      %v1514 = vpop.permute.xlu0 %1513
      %1515 = vrot.lane.b32.xlu0 %v234, 12
      %v1516 = vpop.permute.xlu0 %1515
      %1517 = vrot.lane.b32.xlu0 %v235, 12
      %v1518 = vpop.permute.xlu0 %1517
      %1519 = vrot.lane.b32.xlu0 %v236, 12
      %v1520 = vpop.permute.xlu0 %1519
      %1521 = vrot.lane.b32.xlu0 %v237, 12
      %v1522 = vpop.permute.xlu0 %1521
      %v1555 = vsel %vm816, %v271, %v1332
      %v1556 = vsel %vm816, %v272, %v1334
      %v1557 = vsel %vm816, %v273, %v1336
      %v1558 = vsel %vm816, %v274, %v1338
      %v1559 = vsel %vm816, %v275, %v1340
      %v1560 = vsel %vm816, %v276, %v1342
      %v1561 = vsel %vm816, %v277, %v1344
      %v1562 = vsel %vm816, %v278, %v1346
      %v1563 = vsel %vm816, %v279, %v1348
      %v1564 = vsel %vm816, %v280, %v1350
      %v1565 = vsel %vm816, %v281, %v1352
      %v1566 = vsel %vm816, %v282, %v1354
      %v1567 = vsel %vm816, %v283, %v1356
      %v1568 = vsel %vm816, %v284, %v1358
      %v1569 = vsel %vm816, %v285, %v1360
      %v1570 = vsel %vm816, %v286, %v1362
      %v1571 = vsel %vm816, %v287, %v1364
      %v1572 = vsel %vm816, %v288, %v1366
      %v1573 = vsel %vm816, %v289, %v1368
      %v1574 = vsel %vm816, %v290, %v1370
      %v1575 = vsel %vm816, %v291, %v1372
      %v1576 = vsel %vm816, %v292, %v1374
      %v1577 = vsel %vm816, %v293, %v1376
      %v1578 = vsel %vm816, %v294, %v1378
      %v1579 = vsel %vm816, %v295, %v1380
      %v1580 = vsel %vm816, %v296, %v1382
      %v1581 = vsel %vm816, %v297, %v1384
      %v1582 = vsel %vm816, %v298, %v1386
      %v1583 = vsel %vm816, %v299, %v1388
      %v1584 = vsel %vm816, %v300, %v1390
      %v1585 = vsel %vm816, %v301, %v1392
      %v1586 = vsel %vm816, %v302, %v1394
      %v1587 = vsel %vm849, %v1555, %v593
      %v1588 = vsel %vm849, %v1556, %v595
      %v1589 = vsel %vm849, %v1557, %v597
      %v1590 = vsel %vm849, %v1558, %v599
      %v1591 = vsel %vm849, %v1559, %v601
      %v1592 = vsel %vm849, %v1560, %v603
      %v1593 = vsel %vm849, %v1561, %v605
      %v1594 = vsel %vm849, %v1562, %v607
      %v1595 = vsel %vm849, %v1563, %v609
      %v1596 = vsel %vm849, %v1564, %v611
      %v1597 = vsel %vm849, %v1565, %v613
      %v1598 = vsel %vm849, %v1566, %v615
      %v1599 = vsel %vm849, %v1567, %v617
      %v1600 = vsel %vm849, %v1568, %v619
      %v1601 = vsel %vm849, %v1569, %v621
      %v1602 = vsel %vm849, %v1570, %v623
      %v1603 = vsel %vm849, %v1571, %v625
      %v1604 = vsel %vm849, %v1572, %v627
      %v1605 = vsel %vm849, %v1573, %v629
      %v1606 = vsel %vm849, %v1574, %v631
      %v1607 = vsel %vm849, %v1575, %v633
      %v1608 = vsel %vm849, %v1576, %v635
      %v1609 = vsel %vm849, %v1577, %v637
      %v1610 = vsel %vm849, %v1578, %v639
      %v1611 = vsel %vm849, %v1579, %v641
      %v1612 = vsel %vm849, %v1580, %v643
      %v1613 = vsel %vm849, %v1581, %v645
      %v1614 = vsel %vm849, %v1582, %v647
      %v1615 = vsel %vm849, %v1583, %v649
      %v1616 = vsel %vm849, %v1584, %v651
      %v1617 = vsel %vm849, %v1585, %v653
      %v1618 = vsel %vm849, %v1586, %v655
      %v1619 = vsel %vm882, %v1587, %v1460
      %v1620 = vsel %vm882, %v1588, %v1462
      %v1621 = vsel %vm882, %v1589, %v1464
      %v1622 = vsel %vm882, %v1590, %v1466
      %v1623 = vsel %vm882, %v1591, %v1468
      %v1624 = vsel %vm882, %v1592, %v1470
      %v1625 = vsel %vm882, %v1593, %v1472
      %v1626 = vsel %vm882, %v1594, %v1474
      %v1627 = vsel %vm882, %v1595, %v1476
      %v1628 = vsel %vm882, %v1596, %v1478
      %v1629 = vsel %vm882, %v1597, %v1480
      %v1630 = vsel %vm882, %v1598, %v1482
      %v1631 = vsel %vm882, %v1599, %v1484
      %v1632 = vsel %vm882, %v1600, %v1486
      %v1633 = vsel %vm882, %v1601, %v1488
      %v1634 = vsel %vm882, %v1602, %v1490
      %v1635 = vsel %vm882, %v1603, %v1492
      %v1636 = vsel %vm882, %v1604, %v1494
      %v1637 = vsel %vm882, %v1605, %v1496
      %v1638 = vsel %vm882, %v1606, %v1498
      %v1639 = vsel %vm882, %v1607, %v1500
      %v1640 = vsel %vm882, %v1608, %v1502
      %v1641 = vsel %vm882, %v1609, %v1504
      %v1642 = vsel %vm882, %v1610, %v1506
      %v1643 = vsel %vm882, %v1611, %v1508
      %v1644 = vsel %vm882, %v1612, %v1510
      %v1645 = vsel %vm882, %v1613, %v1512
      %v1646 = vsel %vm882, %v1614, %v1514
      %v1647 = vsel %vm882, %v1615, %v1516
      %v1648 = vsel %vm882, %v1616, %v1518
      %v1649 = vsel %vm882, %v1617, %v1520
      %v1650 = vsel %vm882, %v1618, %v1522
      %s1651 = scalar_lea.vmem %s1, 16
      %v1652 = vld [vmem:[%s1651] sm:$0xff]
      %v1653 = vld [vmem:[%s1651 + $0x8] sm:$0xff]
      %v1655 = vsel %vm917, %v1619, 0
      %v1658 = vsel %vm917, %v1620, 0
      %v1661 = vsel %vm917, %v1621, 0
      %v1664 = vsel %vm917, %v1622, 0
      %v1667 = vsel %vm917, %v1623, 0
      %v1670 = vsel %vm917, %v1624, 0
      %v1673 = vsel %vm917, %v1625, 0
      %v1676 = vsel %vm917, %v1626, 0
      %v1679 = vsel %vm917, %v1627, 0
      %v1682 = vsel %vm917, %v1628, 0
      %v1685 = vsel %vm917, %v1629, 0
      %v1688 = vsel %vm917, %v1630, 0
      %v1691 = vsel %vm917, %v1631, 0
      %v1694 = vsel %vm917, %v1632, 0
      %v1697 = vsel %vm917, %v1633, 0
      %v1700 = vsel %vm917, %v1634, 0
      %v1703 = vsel %vm917, %v1635, 0
      %v1706 = vsel %vm917, %v1636, 0
      %v1709 = vsel %vm917, %v1637, 0
      %v1712 = vsel %vm917, %v1638, 0
      %v1715 = vsel %vm917, %v1639, 0
      %v1718 = vsel %vm917, %v1640, 0
      %v1721 = vsel %vm917, %v1641, 0
      %v1724 = vsel %vm917, %v1642, 0
      %v1727 = vsel %vm917, %v1643, 0
      %v1730 = vsel %vm917, %v1644, 0
      %v1733 = vsel %vm917, %v1645, 0
      %v1736 = vsel %vm917, %v1646, 0
      %v1739 = vsel %vm917, %v1647, 0
      %v1742 = vsel %vm917, %v1648, 0
      %v1745 = vsel %vm917, %v1649, 0
      %v1748 = vsel %vm917, %v1650, 0
      %1750 = vmatpush.msra.mxu0 0.0
      %1751 = vmatpush.msra.mxu0 0.0
      %1752 = vmatpush.msra.mxu0 0.0
      %1753 = vmatpush.msra.mxu0 0.0
      %1754 = vmatpush.msra.mxu0 0.0
      %1755 = vmatpush.msra.mxu0 0.0
      %1756 = vmatpush.msra.mxu0 0.0
      %1757 = vmatpush.msra.mxu0 0.0
      %1758 = vmatpush.msra.mxu0 0.0
      %1759 = vmatpush.msra.mxu0 0.0
      %1760 = vmatpush.msra.mxu0 0.0
      %1761 = vmatpush.msra.mxu0 0.0
      %1762 = vmatpush.msra.mxu0 0.0
      %1763 = vmatpush.msra.mxu0 0.0
      %1764 = vmatpush.msra.mxu0 %v1653
      %1765 = vmatpush.msra.mxu0 %v1652
      %1766 = vmatmul.f32.gmra.mxu0 %v1655
      %v1767 = vpop.f32.mrf.mxu0
      %v1768 = vadd.f32 0.0, %v1767
      %1769 = vmatmul.f32.gmra.mxu0 %v1658
      %v1770 = vpop.f32.mrf.mxu0
      %v1771 = vadd.f32 0.0, %v1770
      %1772 = vmatmul.f32.gmra.mxu0 %v1661
      %v1773 = vpop.f32.mrf.mxu0
      %v1774 = vadd.f32 0.0, %v1773
      %1775 = vmatmul.f32.gmra.mxu0 %v1664
      %v1776 = vpop.f32.mrf.mxu0
      %v1777 = vadd.f32 0.0, %v1776
      %1778 = vmatmul.f32.gmra.mxu0 %v1667
      %v1779 = vpop.f32.mrf.mxu0
      %v1780 = vadd.f32 0.0, %v1779
      %1781 = vmatmul.f32.gmra.mxu0 %v1670
      %v1782 = vpop.f32.mrf.mxu0
      %v1783 = vadd.f32 0.0, %v1782
      %1784 = vmatmul.f32.gmra.mxu0 %v1673
      %v1785 = vpop.f32.mrf.mxu0
      %v1786 = vadd.f32 0.0, %v1785
      %1787 = vmatmul.f32.gmra.mxu0 %v1676
      %v1788 = vpop.f32.mrf.mxu0
      %v1789 = vadd.f32 0.0, %v1788
      %1790 = vmatmul.f32.gmra.mxu0 %v1679
      %v1791 = vpop.f32.mrf.mxu0
      %v1792 = vadd.f32 0.0, %v1791
      %1793 = vmatmul.f32.gmra.mxu0 %v1682
      %v1794 = vpop.f32.mrf.mxu0
      %v1795 = vadd.f32 0.0, %v1794
      %1796 = vmatmul.f32.gmra.mxu0 %v1685
      %v1797 = vpop.f32.mrf.mxu0
      %v1798 = vadd.f32 0.0, %v1797
      %1799 = vmatmul.f32.gmra.mxu0 %v1688
      %v1800 = vpop.f32.mrf.mxu0
      %v1801 = vadd.f32 0.0, %v1800
      %1802 = vmatmul.f32.gmra.mxu0 %v1691
      %v1803 = vpop.f32.mrf.mxu0
      %v1804 = vadd.f32 0.0, %v1803
      %1805 = vmatmul.f32.gmra.mxu0 %v1694
      %v1806 = vpop.f32.mrf.mxu0
      %v1807 = vadd.f32 0.0, %v1806
      %1808 = vmatmul.f32.gmra.mxu0 %v1697
      %v1809 = vpop.f32.mrf.mxu0
      %v1810 = vadd.f32 0.0, %v1809
      %1811 = vmatmul.f32.gmra.mxu0 %v1700
      %v1812 = vpop.f32.mrf.mxu0
      %v1813 = vadd.f32 0.0, %v1812
      %1814 = vmatmul.f32.gmra.mxu0 %v1703
      %v1815 = vpop.f32.mrf.mxu0
      %v1816 = vadd.f32 0.0, %v1815
      %1817 = vmatmul.f32.gmra.mxu0 %v1706
      %v1818 = vpop.f32.mrf.mxu0
      %v1819 = vadd.f32 0.0, %v1818
      %1820 = vmatmul.f32.gmra.mxu0 %v1709
      %v1821 = vpop.f32.mrf.mxu0
      %v1822 = vadd.f32 0.0, %v1821
      %1823 = vmatmul.f32.gmra.mxu0 %v1712
      %v1824 = vpop.f32.mrf.mxu0
      %v1825 = vadd.f32 0.0, %v1824
      %1826 = vmatmul.f32.gmra.mxu0 %v1715
      %v1827 = vpop.f32.mrf.mxu0
      %v1828 = vadd.f32 0.0, %v1827
      %1829 = vmatmul.f32.gmra.mxu0 %v1718
      %v1830 = vpop.f32.mrf.mxu0
      %v1831 = vadd.f32 0.0, %v1830
      %1832 = vmatmul.f32.gmra.mxu0 %v1721
      %v1833 = vpop.f32.mrf.mxu0
      %v1834 = vadd.f32 0.0, %v1833
      %1835 = vmatmul.f32.gmra.mxu0 %v1724
      %v1836 = vpop.f32.mrf.mxu0
      %v1837 = vadd.f32 0.0, %v1836
      %1838 = vmatmul.f32.gmra.mxu0 %v1727
      %v1839 = vpop.f32.mrf.mxu0
      %v1840 = vadd.f32 0.0, %v1839
      %1841 = vmatmul.f32.gmra.mxu0 %v1730
      %v1842 = vpop.f32.mrf.mxu0
      %v1843 = vadd.f32 0.0, %v1842
      %1844 = vmatmul.f32.gmra.mxu0 %v1733
      %v1845 = vpop.f32.mrf.mxu0
      %v1846 = vadd.f32 0.0, %v1845
      %1847 = vmatmul.f32.gmra.mxu0 %v1736
      %v1848 = vpop.f32.mrf.mxu0
      %v1849 = vadd.f32 0.0, %v1848
      %1850 = vmatmul.f32.gmra.mxu0 %v1739
      %v1851 = vpop.f32.mrf.mxu0
      %v1852 = vadd.f32 0.0, %v1851
      %1853 = vmatmul.f32.gmra.mxu0 %v1742
      %v1854 = vpop.f32.mrf.mxu0
      %v1855 = vadd.f32 0.0, %v1854
      %1856 = vmatmul.f32.gmra.mxu0 %v1745
      %v1857 = vpop.f32.mrf.mxu0
      %v1858 = vadd.f32 0.0, %v1857
      %1859 = vmatmul.f32.gmra.mxu0 %v1748
      %v1860 = vpop.f32.mrf.mxu0
      %v1861 = vadd.f32 0.0, %v1860
      %1862 = vdwg.mxu0
      %v1863 = vsel %vm849, %v1768, 0.0
      %v1864 = vsel %vm849, %v1771, 0.0
      %v1865 = vadd.f32 %v1863, %v1864
      %v1866 = vsel %vm849, %v1774, 0.0
      %v1867 = vadd.f32 %v1865, %v1866
      %v1868 = vsel %vm849, %v1777, 0.0
      %v1869 = vadd.f32 %v1867, %v1868
      %v1870 = vsel %vm849, %v1780, 0.0
      %v1871 = vadd.f32 %v1869, %v1870
      %v1872 = vsel %vm849, %v1783, 0.0
      %v1873 = vadd.f32 %v1871, %v1872
      %v1874 = vsel %vm849, %v1786, 0.0
      %v1875 = vadd.f32 %v1873, %v1874
      %v1876 = vsel %vm849, %v1789, 0.0
      %v1877 = vadd.f32 %v1875, %v1876
      %v1878 = vsel %vm849, %v1792, 0.0
      %v1879 = vadd.f32 %v1877, %v1878
      %v1880 = vsel %vm849, %v1795, 0.0
      %v1881 = vadd.f32 %v1879, %v1880
      %v1882 = vsel %vm849, %v1798, 0.0
      %v1883 = vadd.f32 %v1881, %v1882
      %v1884 = vsel %vm849, %v1801, 0.0
      %v1885 = vadd.f32 %v1883, %v1884
      %v1886 = vsel %vm849, %v1804, 0.0
      %v1887 = vadd.f32 %v1885, %v1886
      %v1888 = vsel %vm849, %v1807, 0.0
      %v1889 = vadd.f32 %v1887, %v1888
      %v1890 = vsel %vm849, %v1810, 0.0
      %v1891 = vadd.f32 %v1889, %v1890
      %v1892 = vsel %vm849, %v1813, 0.0
      %v1893 = vadd.f32 %v1891, %v1892
      %v1894 = vsel %vm849, %v1816, 0.0
      %v1895 = vadd.f32 %v1893, %v1894
      %v1896 = vsel %vm849, %v1819, 0.0
      %v1897 = vadd.f32 %v1895, %v1896
      %v1898 = vsel %vm849, %v1822, 0.0
      %v1899 = vadd.f32 %v1897, %v1898
      %v1900 = vsel %vm849, %v1825, 0.0
      %v1901 = vadd.f32 %v1899, %v1900
      %v1902 = vsel %vm849, %v1828, 0.0
      %v1903 = vadd.f32 %v1901, %v1902
      %v1904 = vsel %vm849, %v1831, 0.0
      %v1905 = vadd.f32 %v1903, %v1904
      %v1906 = vsel %vm849, %v1834, 0.0
      %v1907 = vadd.f32 %v1905, %v1906
      %v1908 = vsel %vm849, %v1837, 0.0
      %v1909 = vadd.f32 %v1907, %v1908
      %v1910 = vsel %vm849, %v1840, 0.0
      %v1911 = vadd.f32 %v1909, %v1910
      %v1912 = vsel %vm849, %v1843, 0.0
      %v1913 = vadd.f32 %v1911, %v1912
      %v1914 = vsel %vm849, %v1846, 0.0
      %v1915 = vadd.f32 %v1913, %v1914
      %v1916 = vsel %vm849, %v1849, 0.0
      %v1917 = vadd.f32 %v1915, %v1916
      %v1918 = vsel %vm849, %v1852, 0.0
      %v1919 = vadd.f32 %v1917, %v1918
      %v1920 = vsel %vm849, %v1855, 0.0
      %v1921 = vadd.f32 %v1919, %v1920
      %v1922 = vsel %vm849, %v1858, 0.0
      %v1923 = vadd.f32 %v1921, %v1922
      %v1924 = vsel %vm849, %v1861, 0.0
      %v1925 = vadd.f32 %v1923, %v1924
      %v1926 = vrot.slane %v1925, 4
      %v1927 = vadd.f32 %v1925, %v1926
      %v1928 = vrot.slane %v1927, 2
      %v1929 = vadd.f32 %v1927, %v1928
      %v1930 = vrot.slane %v1929, 1
      %v1931 = vadd.f32 %v1929, %v1930
      %v1932 = vadd.f32 %v1196, %v1931
      %v1933 = vmul.f32 %v1768, %v1768
      %v1934 = vmul.f32 %v1771, %v1771
      %v1935 = vmul.f32 %v1774, %v1774
      %v1936 = vmul.f32 %v1777, %v1777
      %v1937 = vmul.f32 %v1780, %v1780
      %v1938 = vmul.f32 %v1783, %v1783
      %v1939 = vmul.f32 %v1786, %v1786
      %v1940 = vmul.f32 %v1789, %v1789
      %v1941 = vmul.f32 %v1792, %v1792
      %v1942 = vmul.f32 %v1795, %v1795
      %v1943 = vmul.f32 %v1798, %v1798
      %v1944 = vmul.f32 %v1801, %v1801
      %v1945 = vmul.f32 %v1804, %v1804
      %v1946 = vmul.f32 %v1807, %v1807
      %v1947 = vmul.f32 %v1810, %v1810
      %v1948 = vmul.f32 %v1813, %v1813
      %v1949 = vmul.f32 %v1816, %v1816
      %v1950 = vmul.f32 %v1819, %v1819
      %v1951 = vmul.f32 %v1822, %v1822
      %v1952 = vmul.f32 %v1825, %v1825
      %v1953 = vmul.f32 %v1828, %v1828
      %v1954 = vmul.f32 %v1831, %v1831
      %v1955 = vmul.f32 %v1834, %v1834
      %v1956 = vmul.f32 %v1837, %v1837
      %v1957 = vmul.f32 %v1840, %v1840
      %v1958 = vmul.f32 %v1843, %v1843
      %v1959 = vmul.f32 %v1846, %v1846
      %v1960 = vmul.f32 %v1849, %v1849
      %v1961 = vmul.f32 %v1852, %v1852
      %v1962 = vmul.f32 %v1855, %v1855
      %v1963 = vmul.f32 %v1858, %v1858
      %v1964 = vmul.f32 %v1861, %v1861
      %v1965 = vsel %vm849, %v1933, 0.0
      %v1966 = vsel %vm849, %v1934, 0.0
      %v1967 = vadd.f32 %v1965, %v1966
      %v1968 = vsel %vm849, %v1935, 0.0
      %v1969 = vadd.f32 %v1967, %v1968
      %v1970 = vsel %vm849, %v1936, 0.0
      %v1971 = vadd.f32 %v1969, %v1970
      %v1972 = vsel %vm849, %v1937, 0.0
      %v1973 = vadd.f32 %v1971, %v1972
      %v1974 = vsel %vm849, %v1938, 0.0
      %v1975 = vadd.f32 %v1973, %v1974
      %v1976 = vsel %vm849, %v1939, 0.0
      %v1977 = vadd.f32 %v1975, %v1976
      %v1978 = vsel %vm849, %v1940, 0.0
      %v1979 = vadd.f32 %v1977, %v1978
      %v1980 = vsel %vm849, %v1941, 0.0
      %v1981 = vadd.f32 %v1979, %v1980
      %v1982 = vsel %vm849, %v1942, 0.0
      %v1983 = vadd.f32 %v1981, %v1982
      %v1984 = vsel %vm849, %v1943, 0.0
      %v1985 = vadd.f32 %v1983, %v1984
      %v1986 = vsel %vm849, %v1944, 0.0
      %v1987 = vadd.f32 %v1985, %v1986
      %v1988 = vsel %vm849, %v1945, 0.0
      %v1989 = vadd.f32 %v1987, %v1988
      %v1990 = vsel %vm849, %v1946, 0.0
      %v1991 = vadd.f32 %v1989, %v1990
      %v1992 = vsel %vm849, %v1947, 0.0
      %v1993 = vadd.f32 %v1991, %v1992
      %v1994 = vsel %vm849, %v1948, 0.0
      %v1995 = vadd.f32 %v1993, %v1994
      %v1996 = vsel %vm849, %v1949, 0.0
      %v1997 = vadd.f32 %v1995, %v1996
      %v1998 = vsel %vm849, %v1950, 0.0
      %v1999 = vadd.f32 %v1997, %v1998
      %v2000 = vsel %vm849, %v1951, 0.0
      %v2001 = vadd.f32 %v1999, %v2000
      %v2002 = vsel %vm849, %v1952, 0.0
      %v2003 = vadd.f32 %v2001, %v2002
      %v2004 = vsel %vm849, %v1953, 0.0
      %v2005 = vadd.f32 %v2003, %v2004
      %v2006 = vsel %vm849, %v1954, 0.0
      %v2007 = vadd.f32 %v2005, %v2006
      %v2008 = vsel %vm849, %v1955, 0.0
      %v2009 = vadd.f32 %v2007, %v2008
      %v2010 = vsel %vm849, %v1956, 0.0
      %v2011 = vadd.f32 %v2009, %v2010
      %v2012 = vsel %vm849, %v1957, 0.0
      %v2013 = vadd.f32 %v2011, %v2012
      %v2014 = vsel %vm849, %v1958, 0.0
      %v2015 = vadd.f32 %v2013, %v2014
      %v2016 = vsel %vm849, %v1959, 0.0
      %v2017 = vadd.f32 %v2015, %v2016
      %v2018 = vsel %vm849, %v1960, 0.0
      %v2019 = vadd.f32 %v2017, %v2018
      %v2020 = vsel %vm849, %v1961, 0.0
      %v2021 = vadd.f32 %v2019, %v2020
      %v2022 = vsel %vm849, %v1962, 0.0
      %v2023 = vadd.f32 %v2021, %v2022
      %v2024 = vsel %vm849, %v1963, 0.0
      %v2025 = vadd.f32 %v2023, %v2024
      %v2026 = vsel %vm849, %v1964, 0.0
      %v2027 = vadd.f32 %v2025, %v2026
      %v2028 = vrot.slane %v2027, 4
      %v2029 = vadd.f32 %v2027, %v2028
      %v2030 = vrot.slane %v2029, 2
      %v2031 = vadd.f32 %v2029, %v2030
      %v2032 = vrot.slane %v2031, 1
      %v2033 = vadd.f32 %v2031, %v2032
      %v2034 = vadd.f32 %v1298, %v2033
      %2067 = vrot.lane.b32.xlu0 %v368, 8
      %v2068 = vpop.permute.xlu0 %2067
      %2069 = vrot.lane.b32.xlu0 %v369, 8
      %v2070 = vpop.permute.xlu0 %2069
      %2071 = vrot.lane.b32.xlu0 %v370, 8
      %v2072 = vpop.permute.xlu0 %2071
      %2073 = vrot.lane.b32.xlu0 %v371, 8
      %v2074 = vpop.permute.xlu0 %2073
      %2075 = vrot.lane.b32.xlu0 %v372, 8
      %v2076 = vpop.permute.xlu0 %2075
      %2077 = vrot.lane.b32.xlu0 %v373, 8
      %v2078 = vpop.permute.xlu0 %2077
      %2079 = vrot.lane.b32.xlu0 %v374, 8
      %v2080 = vpop.permute.xlu0 %2079
      %2081 = vrot.lane.b32.xlu0 %v375, 8
      %v2082 = vpop.permute.xlu0 %2081
      %2083 = vrot.lane.b32.xlu0 %v376, 8
      %v2084 = vpop.permute.xlu0 %2083
      %2085 = vrot.lane.b32.xlu0 %v377, 8
      %v2086 = vpop.permute.xlu0 %2085
      %2087 = vrot.lane.b32.xlu0 %v378, 8
      %v2088 = vpop.permute.xlu0 %2087
      %2089 = vrot.lane.b32.xlu0 %v379, 8
      %v2090 = vpop.permute.xlu0 %2089
      %2091 = vrot.lane.b32.xlu0 %v380, 8
      %v2092 = vpop.permute.xlu0 %2091
      %2093 = vrot.lane.b32.xlu0 %v381, 8
      %v2094 = vpop.permute.xlu0 %2093
      %2095 = vrot.lane.b32.xlu0 %v382, 8
      %v2096 = vpop.permute.xlu0 %2095
      %2097 = vrot.lane.b32.xlu0 %v383, 8
      %v2098 = vpop.permute.xlu0 %2097
      %2099 = vrot.lane.b32.xlu0 %v384, 8
      %v2100 = vpop.permute.xlu0 %2099
      %2101 = vrot.lane.b32.xlu0 %v385, 8
      %v2102 = vpop.permute.xlu0 %2101
      %2103 = vrot.lane.b32.xlu0 %v386, 8
      %v2104 = vpop.permute.xlu0 %2103
      %2105 = vrot.lane.b32.xlu0 %v387, 8
      %v2106 = vpop.permute.xlu0 %2105
      %2107 = vrot.lane.b32.xlu0 %v388, 8
      %v2108 = vpop.permute.xlu0 %2107
      %2109 = vrot.lane.b32.xlu0 %v389, 8
      %v2110 = vpop.permute.xlu0 %2109
      %2111 = vrot.lane.b32.xlu0 %v390, 8
      %v2112 = vpop.permute.xlu0 %2111
      %2113 = vrot.lane.b32.xlu0 %v391, 8
      %v2114 = vpop.permute.xlu0 %2113
      %2115 = vrot.lane.b32.xlu0 %v392, 8
      %v2116 = vpop.permute.xlu0 %2115
      %2117 = vrot.lane.b32.xlu0 %v393, 8
      %v2118 = vpop.permute.xlu0 %2117
      %2119 = vrot.lane.b32.xlu0 %v394, 8
      %v2120 = vpop.permute.xlu0 %2119
      %2121 = vrot.lane.b32.xlu0 %v395, 8
      %v2122 = vpop.permute.xlu0 %2121
      %2123 = vrot.lane.b32.xlu0 %v396, 8
      %v2124 = vpop.permute.xlu0 %2123
      %2125 = vrot.lane.b32.xlu0 %v397, 8
      %v2126 = vpop.permute.xlu0 %2125
      %2127 = vrot.lane.b32.xlu0 %v398, 8
      %v2128 = vpop.permute.xlu0 %2127
      %2129 = vrot.lane.b32.xlu0 %v399, 8
      %v2130 = vpop.permute.xlu0 %2129
      %2195 = vrot.lane.b32.xlu0 %v336, 12
      %v2196 = vpop.permute.xlu0 %2195
      %2197 = vrot.lane.b32.xlu0 %v337, 12
      %v2198 = vpop.permute.xlu0 %2197
      %2199 = vrot.lane.b32.xlu0 %v338, 12
      %v2200 = vpop.permute.xlu0 %2199
      %2201 = vrot.lane.b32.xlu0 %v339, 12
      %v2202 = vpop.permute.xlu0 %2201
      %2203 = vrot.lane.b32.xlu0 %v340, 12
      %v2204 = vpop.permute.xlu0 %2203
      %2205 = vrot.lane.b32.xlu0 %v341, 12
      %v2206 = vpop.permute.xlu0 %2205
      %2207 = vrot.lane.b32.xlu0 %v342, 12
      %v2208 = vpop.permute.xlu0 %2207
      %2209 = vrot.lane.b32.xlu0 %v343, 12
      %v2210 = vpop.permute.xlu0 %2209
      %2211 = vrot.lane.b32.xlu0 %v344, 12
      %v2212 = vpop.permute.xlu0 %2211
      %2213 = vrot.lane.b32.xlu0 %v345, 12
      %v2214 = vpop.permute.xlu0 %2213
      %2215 = vrot.lane.b32.xlu0 %v346, 12
      %v2216 = vpop.permute.xlu0 %2215
      %2217 = vrot.lane.b32.xlu0 %v347, 12
      %v2218 = vpop.permute.xlu0 %2217
      %2219 = vrot.lane.b32.xlu0 %v348, 12
      %v2220 = vpop.permute.xlu0 %2219
      %2221 = vrot.lane.b32.xlu0 %v349, 12
      %v2222 = vpop.permute.xlu0 %2221
      %2223 = vrot.lane.b32.xlu0 %v350, 12
      %v2224 = vpop.permute.xlu0 %2223
      %2225 = vrot.lane.b32.xlu0 %v351, 12
      %v2226 = vpop.permute.xlu0 %2225
      %2227 = vrot.lane.b32.xlu0 %v352, 12
      %v2228 = vpop.permute.xlu0 %2227
      %2229 = vrot.lane.b32.xlu0 %v353, 12
      %v2230 = vpop.permute.xlu0 %2229
      %2231 = vrot.lane.b32.xlu0 %v354, 12
      %v2232 = vpop.permute.xlu0 %2231
      %2233 = vrot.lane.b32.xlu0 %v355, 12
      %v2234 = vpop.permute.xlu0 %2233
      %2235 = vrot.lane.b32.xlu0 %v356, 12
      %v2236 = vpop.permute.xlu0 %2235
      %2237 = vrot.lane.b32.xlu0 %v357, 12
      %v2238 = vpop.permute.xlu0 %2237
      %2239 = vrot.lane.b32.xlu0 %v358, 12
      %v2240 = vpop.permute.xlu0 %2239
      %2241 = vrot.lane.b32.xlu0 %v359, 12
      %v2242 = vpop.permute.xlu0 %2241
      %2243 = vrot.lane.b32.xlu0 %v360, 12
      %v2244 = vpop.permute.xlu0 %2243
      %2245 = vrot.lane.b32.xlu0 %v361, 12
      %v2246 = vpop.permute.xlu0 %2245
      %2247 = vrot.lane.b32.xlu0 %v362, 12
      %v2248 = vpop.permute.xlu0 %2247
      %2249 = vrot.lane.b32.xlu0 %v363, 12
      %v2250 = vpop.permute.xlu0 %2249
      %2251 = vrot.lane.b32.xlu0 %v364, 12
      %v2252 = vpop.permute.xlu0 %2251
      %2253 = vrot.lane.b32.xlu0 %v365, 12
      %v2254 = vpop.permute.xlu0 %2253
      %2255 = vrot.lane.b32.xlu0 %v366, 12
      %v2256 = vpop.permute.xlu0 %2255
      %2257 = vrot.lane.b32.xlu0 %v367, 12
      %v2258 = vpop.permute.xlu0 %2257
      %v2291 = vsel %vm849, %v817, %v2068
      %v2292 = vsel %vm849, %v818, %v2070
      %v2293 = vsel %vm849, %v819, %v2072
      %v2294 = vsel %vm849, %v820, %v2074
      %v2295 = vsel %vm849, %v821, %v2076
      %v2296 = vsel %vm849, %v822, %v2078
      %v2297 = vsel %vm849, %v823, %v2080
      %v2298 = vsel %vm849, %v824, %v2082
      %v2299 = vsel %vm849, %v825, %v2084
      %v2300 = vsel %vm849, %v826, %v2086
      %v2301 = vsel %vm849, %v827, %v2088
      %v2302 = vsel %vm849, %v828, %v2090
      %v2303 = vsel %vm849, %v829, %v2092
      %v2304 = vsel %vm849, %v830, %v2094
      %v2305 = vsel %vm849, %v831, %v2096
      %v2306 = vsel %vm849, %v832, %v2098
      %v2307 = vsel %vm849, %v833, %v2100
      %v2308 = vsel %vm849, %v834, %v2102
      %v2309 = vsel %vm849, %v835, %v2104
      %v2310 = vsel %vm849, %v836, %v2106
      %v2311 = vsel %vm849, %v837, %v2108
      %v2312 = vsel %vm849, %v838, %v2110
      %v2313 = vsel %vm849, %v839, %v2112
      %v2314 = vsel %vm849, %v840, %v2114
      %v2315 = vsel %vm849, %v841, %v2116
      %v2316 = vsel %vm849, %v842, %v2118
      %v2317 = vsel %vm849, %v843, %v2120
      %v2318 = vsel %vm849, %v844, %v2122
      %v2319 = vsel %vm849, %v845, %v2124
      %v2320 = vsel %vm849, %v846, %v2126
      %v2321 = vsel %vm849, %v847, %v2128
      %v2322 = vsel %vm849, %v848, %v2130
      %v2323 = vsel %vm882, %v2291, %v2196
      %v2324 = vsel %vm882, %v2292, %v2198
      %v2325 = vsel %vm882, %v2293, %v2200
      %v2326 = vsel %vm882, %v2294, %v2202
      %v2327 = vsel %vm882, %v2295, %v2204
      %v2328 = vsel %vm882, %v2296, %v2206
      %v2329 = vsel %vm882, %v2297, %v2208
      %v2330 = vsel %vm882, %v2298, %v2210
      %v2331 = vsel %vm882, %v2299, %v2212
      %v2332 = vsel %vm882, %v2300, %v2214
      %v2333 = vsel %vm882, %v2301, %v2216
      %v2334 = vsel %vm882, %v2302, %v2218
      %v2335 = vsel %vm882, %v2303, %v2220
      %v2336 = vsel %vm882, %v2304, %v2222
      %v2337 = vsel %vm882, %v2305, %v2224
      %v2338 = vsel %vm882, %v2306, %v2226
      %v2339 = vsel %vm882, %v2307, %v2228
      %v2340 = vsel %vm882, %v2308, %v2230
      %v2341 = vsel %vm882, %v2309, %v2232
      %v2342 = vsel %vm882, %v2310, %v2234
      %v2343 = vsel %vm882, %v2311, %v2236
      %v2344 = vsel %vm882, %v2312, %v2238
      %v2345 = vsel %vm882, %v2313, %v2240
      %v2346 = vsel %vm882, %v2314, %v2242
      %v2347 = vsel %vm882, %v2315, %v2244
      %v2348 = vsel %vm882, %v2316, %v2246
      %v2349 = vsel %vm882, %v2317, %v2248
      %v2350 = vsel %vm882, %v2318, %v2250
      %v2351 = vsel %vm882, %v2319, %v2252
      %v2352 = vsel %vm882, %v2320, %v2254
      %v2353 = vsel %vm882, %v2321, %v2256
      %v2354 = vsel %vm882, %v2322, %v2258
      %s2355 = scalar_lea.vmem %s1, 32
      %v2356 = vld [vmem:[%s2355] sm:$0xff]
      %v2357 = vld [vmem:[%s2355 + $0x8] sm:$0xff]
      %v2359 = vsel %vm917, %v2323, 0
      %v2362 = vsel %vm917, %v2324, 0
      %v2365 = vsel %vm917, %v2325, 0
      %v2368 = vsel %vm917, %v2326, 0
      %v2371 = vsel %vm917, %v2327, 0
      %v2374 = vsel %vm917, %v2328, 0
      %v2377 = vsel %vm917, %v2329, 0
      %v2380 = vsel %vm917, %v2330, 0
      %v2383 = vsel %vm917, %v2331, 0
      %v2386 = vsel %vm917, %v2332, 0
      %v2389 = vsel %vm917, %v2333, 0
      %v2392 = vsel %vm917, %v2334, 0
      %v2395 = vsel %vm917, %v2335, 0
      %v2398 = vsel %vm917, %v2336, 0
      %v2401 = vsel %vm917, %v2337, 0
      %v2404 = vsel %vm917, %v2338, 0
      %v2407 = vsel %vm917, %v2339, 0
      %v2410 = vsel %vm917, %v2340, 0
      %v2413 = vsel %vm917, %v2341, 0
      %v2416 = vsel %vm917, %v2342, 0
      %v2419 = vsel %vm917, %v2343, 0
      %v2422 = vsel %vm917, %v2344, 0
      %v2425 = vsel %vm917, %v2345, 0
      %v2428 = vsel %vm917, %v2346, 0
      %v2431 = vsel %vm917, %v2347, 0
      %v2434 = vsel %vm917, %v2348, 0
      %v2437 = vsel %vm917, %v2349, 0
      %v2440 = vsel %vm917, %v2350, 0
      %v2443 = vsel %vm917, %v2351, 0
      %v2446 = vsel %vm917, %v2352, 0
      %v2449 = vsel %vm917, %v2353, 0
      %v2452 = vsel %vm917, %v2354, 0
      %2454 = vmatpush.msra.mxu0 0.0
      %2455 = vmatpush.msra.mxu0 0.0
      %2456 = vmatpush.msra.mxu0 0.0
      %2457 = vmatpush.msra.mxu0 0.0
      %2458 = vmatpush.msra.mxu0 0.0
      %2459 = vmatpush.msra.mxu0 0.0
      %2460 = vmatpush.msra.mxu0 0.0
      %2461 = vmatpush.msra.mxu0 0.0
      %2462 = vmatpush.msra.mxu0 0.0
      %2463 = vmatpush.msra.mxu0 0.0
      %2464 = vmatpush.msra.mxu0 0.0
      %2465 = vmatpush.msra.mxu0 0.0
      %2466 = vmatpush.msra.mxu0 0.0
      %2467 = vmatpush.msra.mxu0 0.0
      %2468 = vmatpush.msra.mxu0 %v2357
      %2469 = vmatpush.msra.mxu0 %v2356
      %2470 = vmatmul.f32.gmra.mxu0 %v2359
      %v2471 = vpop.f32.mrf.mxu0
      %v2472 = vadd.f32 0.0, %v2471
      %2473 = vmatmul.f32.gmra.mxu0 %v2362
      %v2474 = vpop.f32.mrf.mxu0
      %v2475 = vadd.f32 0.0, %v2474
      %2476 = vmatmul.f32.gmra.mxu0 %v2365
      %v2477 = vpop.f32.mrf.mxu0
      %v2478 = vadd.f32 0.0, %v2477
      %2479 = vmatmul.f32.gmra.mxu0 %v2368
      %v2480 = vpop.f32.mrf.mxu0
      %v2481 = vadd.f32 0.0, %v2480
      %2482 = vmatmul.f32.gmra.mxu0 %v2371
      %v2483 = vpop.f32.mrf.mxu0
      %v2484 = vadd.f32 0.0, %v2483
      %2485 = vmatmul.f32.gmra.mxu0 %v2374
      %v2486 = vpop.f32.mrf.mxu0
      %v2487 = vadd.f32 0.0, %v2486
      %2488 = vmatmul.f32.gmra.mxu0 %v2377
      %v2489 = vpop.f32.mrf.mxu0
      %v2490 = vadd.f32 0.0, %v2489
      %2491 = vmatmul.f32.gmra.mxu0 %v2380
      %v2492 = vpop.f32.mrf.mxu0
      %v2493 = vadd.f32 0.0, %v2492
      %2494 = vmatmul.f32.gmra.mxu0 %v2383
      %v2495 = vpop.f32.mrf.mxu0
      %v2496 = vadd.f32 0.0, %v2495
      %2497 = vmatmul.f32.gmra.mxu0 %v2386
      %v2498 = vpop.f32.mrf.mxu0
      %v2499 = vadd.f32 0.0, %v2498
      %2500 = vmatmul.f32.gmra.mxu0 %v2389
      %v2501 = vpop.f32.mrf.mxu0
      %v2502 = vadd.f32 0.0, %v2501
      %2503 = vmatmul.f32.gmra.mxu0 %v2392
      %v2504 = vpop.f32.mrf.mxu0
      %v2505 = vadd.f32 0.0, %v2504
      %2506 = vmatmul.f32.gmra.mxu0 %v2395
      %v2507 = vpop.f32.mrf.mxu0
      %v2508 = vadd.f32 0.0, %v2507
      %2509 = vmatmul.f32.gmra.mxu0 %v2398
      %v2510 = vpop.f32.mrf.mxu0
      %v2511 = vadd.f32 0.0, %v2510
      %2512 = vmatmul.f32.gmra.mxu0 %v2401
      %v2513 = vpop.f32.mrf.mxu0
      %v2514 = vadd.f32 0.0, %v2513
      %2515 = vmatmul.f32.gmra.mxu0 %v2404
      %v2516 = vpop.f32.mrf.mxu0
      %v2517 = vadd.f32 0.0, %v2516
      %2518 = vmatmul.f32.gmra.mxu0 %v2407
      %v2519 = vpop.f32.mrf.mxu0
      %v2520 = vadd.f32 0.0, %v2519
      %2521 = vmatmul.f32.gmra.mxu0 %v2410
      %v2522 = vpop.f32.mrf.mxu0
      %v2523 = vadd.f32 0.0, %v2522
      %2524 = vmatmul.f32.gmra.mxu0 %v2413
      %v2525 = vpop.f32.mrf.mxu0
      %v2526 = vadd.f32 0.0, %v2525
      %2527 = vmatmul.f32.gmra.mxu0 %v2416
      %v2528 = vpop.f32.mrf.mxu0
      %v2529 = vadd.f32 0.0, %v2528
      %2530 = vmatmul.f32.gmra.mxu0 %v2419
      %v2531 = vpop.f32.mrf.mxu0
      %v2532 = vadd.f32 0.0, %v2531
      %2533 = vmatmul.f32.gmra.mxu0 %v2422
      %v2534 = vpop.f32.mrf.mxu0
      %v2535 = vadd.f32 0.0, %v2534
      %2536 = vmatmul.f32.gmra.mxu0 %v2425
      %v2537 = vpop.f32.mrf.mxu0
      %v2538 = vadd.f32 0.0, %v2537
      %2539 = vmatmul.f32.gmra.mxu0 %v2428
      %v2540 = vpop.f32.mrf.mxu0
      %v2541 = vadd.f32 0.0, %v2540
      %2542 = vmatmul.f32.gmra.mxu0 %v2431
      %v2543 = vpop.f32.mrf.mxu0
      %v2544 = vadd.f32 0.0, %v2543
      %2545 = vmatmul.f32.gmra.mxu0 %v2434
      %v2546 = vpop.f32.mrf.mxu0
      %v2547 = vadd.f32 0.0, %v2546
      %2548 = vmatmul.f32.gmra.mxu0 %v2437
      %v2549 = vpop.f32.mrf.mxu0
      %v2550 = vadd.f32 0.0, %v2549
      %2551 = vmatmul.f32.gmra.mxu0 %v2440
      %v2552 = vpop.f32.mrf.mxu0
      %v2553 = vadd.f32 0.0, %v2552
      %2554 = vmatmul.f32.gmra.mxu0 %v2443
      %v2555 = vpop.f32.mrf.mxu0
      %v2556 = vadd.f32 0.0, %v2555
      %2557 = vmatmul.f32.gmra.mxu0 %v2446
      %v2558 = vpop.f32.mrf.mxu0
      %v2559 = vadd.f32 0.0, %v2558
      %2560 = vmatmul.f32.gmra.mxu0 %v2449
      %v2561 = vpop.f32.mrf.mxu0
      %v2562 = vadd.f32 0.0, %v2561
      %2563 = vmatmul.f32.gmra.mxu0 %v2452
      %v2564 = vpop.f32.mrf.mxu0
      %v2565 = vadd.f32 0.0, %v2564
      %2566 = vdwg.mxu0
      %v2567 = vsel %vm849, %v2472, 0.0
      %v2568 = vsel %vm849, %v2475, 0.0
      %v2569 = vadd.f32 %v2567, %v2568
      %v2570 = vsel %vm849, %v2478, 0.0
      %v2571 = vadd.f32 %v2569, %v2570
      %v2572 = vsel %vm849, %v2481, 0.0
      %v2573 = vadd.f32 %v2571, %v2572
      %v2574 = vsel %vm849, %v2484, 0.0
      %v2575 = vadd.f32 %v2573, %v2574
      %v2576 = vsel %vm849, %v2487, 0.0
      %v2577 = vadd.f32 %v2575, %v2576
      %v2578 = vsel %vm849, %v2490, 0.0
      %v2579 = vadd.f32 %v2577, %v2578
      %v2580 = vsel %vm849, %v2493, 0.0
      %v2581 = vadd.f32 %v2579, %v2580
      %v2582 = vsel %vm849, %v2496, 0.0
      %v2583 = vadd.f32 %v2581, %v2582
      %v2584 = vsel %vm849, %v2499, 0.0
      %v2585 = vadd.f32 %v2583, %v2584
      %v2586 = vsel %vm849, %v2502, 0.0
      %v2587 = vadd.f32 %v2585, %v2586
      %v2588 = vsel %vm849, %v2505, 0.0
      %v2589 = vadd.f32 %v2587, %v2588
      %v2590 = vsel %vm849, %v2508, 0.0
      %v2591 = vadd.f32 %v2589, %v2590
      %v2592 = vsel %vm849, %v2511, 0.0
      %v2593 = vadd.f32 %v2591, %v2592
      %v2594 = vsel %vm849, %v2514, 0.0
      %v2595 = vadd.f32 %v2593, %v2594
      %v2596 = vsel %vm849, %v2517, 0.0
      %v2597 = vadd.f32 %v2595, %v2596
      %v2598 = vsel %vm849, %v2520, 0.0
      %v2599 = vadd.f32 %v2597, %v2598
      %v2600 = vsel %vm849, %v2523, 0.0
      %v2601 = vadd.f32 %v2599, %v2600
      %v2602 = vsel %vm849, %v2526, 0.0
      %v2603 = vadd.f32 %v2601, %v2602
      %v2604 = vsel %vm849, %v2529, 0.0
      %v2605 = vadd.f32 %v2603, %v2604
      %v2606 = vsel %vm849, %v2532, 0.0
      %v2607 = vadd.f32 %v2605, %v2606
      %v2608 = vsel %vm849, %v2535, 0.0
      %v2609 = vadd.f32 %v2607, %v2608
      %v2610 = vsel %vm849, %v2538, 0.0
      %v2611 = vadd.f32 %v2609, %v2610
      %v2612 = vsel %vm849, %v2541, 0.0
      %v2613 = vadd.f32 %v2611, %v2612
      %v2614 = vsel %vm849, %v2544, 0.0
      %v2615 = vadd.f32 %v2613, %v2614
      %v2616 = vsel %vm849, %v2547, 0.0
      %v2617 = vadd.f32 %v2615, %v2616
      %v2618 = vsel %vm849, %v2550, 0.0
      %v2619 = vadd.f32 %v2617, %v2618
      %v2620 = vsel %vm849, %v2553, 0.0
      %v2621 = vadd.f32 %v2619, %v2620
      %v2622 = vsel %vm849, %v2556, 0.0
      %v2623 = vadd.f32 %v2621, %v2622
      %v2624 = vsel %vm849, %v2559, 0.0
      %v2625 = vadd.f32 %v2623, %v2624
      %v2626 = vsel %vm849, %v2562, 0.0
      %v2627 = vadd.f32 %v2625, %v2626
      %v2628 = vsel %vm849, %v2565, 0.0
      %v2629 = vadd.f32 %v2627, %v2628
      %v2630 = vrot.slane %v2629, 4
      %v2631 = vadd.f32 %v2629, %v2630
      %v2632 = vrot.slane %v2631, 2
      %v2633 = vadd.f32 %v2631, %v2632
      %v2634 = vrot.slane %v2633, 1
      %v2635 = vadd.f32 %v2633, %v2634
      %v2636 = vadd.f32 %v1932, %v2635
      %v2637 = vmul.f32 %v2472, %v2472
      %v2638 = vmul.f32 %v2475, %v2475
      %v2639 = vmul.f32 %v2478, %v2478
      %v2640 = vmul.f32 %v2481, %v2481
      %v2641 = vmul.f32 %v2484, %v2484
      %v2642 = vmul.f32 %v2487, %v2487
      %v2643 = vmul.f32 %v2490, %v2490
      %v2644 = vmul.f32 %v2493, %v2493
      %v2645 = vmul.f32 %v2496, %v2496
      %v2646 = vmul.f32 %v2499, %v2499
      %v2647 = vmul.f32 %v2502, %v2502
      %v2648 = vmul.f32 %v2505, %v2505
      %v2649 = vmul.f32 %v2508, %v2508
      %v2650 = vmul.f32 %v2511, %v2511
      %v2651 = vmul.f32 %v2514, %v2514
      %v2652 = vmul.f32 %v2517, %v2517
      %v2653 = vmul.f32 %v2520, %v2520
      %v2654 = vmul.f32 %v2523, %v2523
      %v2655 = vmul.f32 %v2526, %v2526
      %v2656 = vmul.f32 %v2529, %v2529
      %v2657 = vmul.f32 %v2532, %v2532
      %v2658 = vmul.f32 %v2535, %v2535
      %v2659 = vmul.f32 %v2538, %v2538
      %v2660 = vmul.f32 %v2541, %v2541
      %v2661 = vmul.f32 %v2544, %v2544
      %v2662 = vmul.f32 %v2547, %v2547
      %v2663 = vmul.f32 %v2550, %v2550
      %v2664 = vmul.f32 %v2553, %v2553
      %v2665 = vmul.f32 %v2556, %v2556
      %v2666 = vmul.f32 %v2559, %v2559
      %v2667 = vmul.f32 %v2562, %v2562
      %v2668 = vmul.f32 %v2565, %v2565
      %v2669 = vsel %vm849, %v2637, 0.0
      %v2670 = vsel %vm849, %v2638, 0.0
      %v2671 = vadd.f32 %v2669, %v2670
      %v2672 = vsel %vm849, %v2639, 0.0
      %v2673 = vadd.f32 %v2671, %v2672
      %v2674 = vsel %vm849, %v2640, 0.0
      %v2675 = vadd.f32 %v2673, %v2674
      %v2676 = vsel %vm849, %v2641, 0.0
      %v2677 = vadd.f32 %v2675, %v2676
      %v2678 = vsel %vm849, %v2642, 0.0
      %v2679 = vadd.f32 %v2677, %v2678
      %v2680 = vsel %vm849, %v2643, 0.0
      %v2681 = vadd.f32 %v2679, %v2680
      %v2682 = vsel %vm849, %v2644, 0.0
      %v2683 = vadd.f32 %v2681, %v2682
      %v2684 = vsel %vm849, %v2645, 0.0
      %v2685 = vadd.f32 %v2683, %v2684
      %v2686 = vsel %vm849, %v2646, 0.0
      %v2687 = vadd.f32 %v2685, %v2686
      %v2688 = vsel %vm849, %v2647, 0.0
      %v2689 = vadd.f32 %v2687, %v2688
      %v2690 = vsel %vm849, %v2648, 0.0
      %v2691 = vadd.f32 %v2689, %v2690
      %v2692 = vsel %vm849, %v2649, 0.0
      %v2693 = vadd.f32 %v2691, %v2692
      %v2694 = vsel %vm849, %v2650, 0.0
      %v2695 = vadd.f32 %v2693, %v2694
      %v2696 = vsel %vm849, %v2651, 0.0
      %v2697 = vadd.f32 %v2695, %v2696
      %v2698 = vsel %vm849, %v2652, 0.0
      %v2699 = vadd.f32 %v2697, %v2698
      %v2700 = vsel %vm849, %v2653, 0.0
      %v2701 = vadd.f32 %v2699, %v2700
      %v2702 = vsel %vm849, %v2654, 0.0
      %v2703 = vadd.f32 %v2701, %v2702
      %v2704 = vsel %vm849, %v2655, 0.0
      %v2705 = vadd.f32 %v2703, %v2704
      %v2706 = vsel %vm849, %v2656, 0.0
      %v2707 = vadd.f32 %v2705, %v2706
      %v2708 = vsel %vm849, %v2657, 0.0
      %v2709 = vadd.f32 %v2707, %v2708
      %v2710 = vsel %vm849, %v2658, 0.0
      %v2711 = vadd.f32 %v2709, %v2710
      %v2712 = vsel %vm849, %v2659, 0.0
      %v2713 = vadd.f32 %v2711, %v2712
      %v2714 = vsel %vm849, %v2660, 0.0
      %v2715 = vadd.f32 %v2713, %v2714
      %v2716 = vsel %vm849, %v2661, 0.0
      %v2717 = vadd.f32 %v2715, %v2716
      %v2718 = vsel %vm849, %v2662, 0.0
      %v2719 = vadd.f32 %v2717, %v2718
      %v2720 = vsel %vm849, %v2663, 0.0
      %v2721 = vadd.f32 %v2719, %v2720
      %v2722 = vsel %vm849, %v2664, 0.0
      %v2723 = vadd.f32 %v2721, %v2722
      %v2724 = vsel %vm849, %v2665, 0.0
      %v2725 = vadd.f32 %v2723, %v2724
      %v2726 = vsel %vm849, %v2666, 0.0
      %v2727 = vadd.f32 %v2725, %v2726
      %v2728 = vsel %vm849, %v2667, 0.0
      %v2729 = vadd.f32 %v2727, %v2728
      %v2730 = vsel %vm849, %v2668, 0.0
      %v2731 = vadd.f32 %v2729, %v2730
      %v2732 = vrot.slane %v2731, 4
      %v2733 = vadd.f32 %v2731, %v2732
      %v2734 = vrot.slane %v2733, 2
      %v2735 = vadd.f32 %v2733, %v2734
      %v2736 = vrot.slane %v2735, 1
      %v2737 = vadd.f32 %v2735, %v2736
      %v2738 = vadd.f32 %v2034, %v2737
      %2771 = vrot.lane.b32.xlu0 %v400, 12
      %v2772 = vpop.permute.xlu0 %2771
      %2773 = vrot.lane.b32.xlu0 %v401, 12
      %v2774 = vpop.permute.xlu0 %2773
      %2775 = vrot.lane.b32.xlu0 %v402, 12
      %v2776 = vpop.permute.xlu0 %2775
      %2777 = vrot.lane.b32.xlu0 %v403, 12
      %v2778 = vpop.permute.xlu0 %2777
      %2779 = vrot.lane.b32.xlu0 %v404, 12
      %v2780 = vpop.permute.xlu0 %2779
      %2781 = vrot.lane.b32.xlu0 %v405, 12
      %v2782 = vpop.permute.xlu0 %2781
      %2783 = vrot.lane.b32.xlu0 %v406, 12
      %v2784 = vpop.permute.xlu0 %2783
      %2785 = vrot.lane.b32.xlu0 %v407, 12
      %v2786 = vpop.permute.xlu0 %2785
      %2787 = vrot.lane.b32.xlu0 %v408, 12
      %v2788 = vpop.permute.xlu0 %2787
      %2789 = vrot.lane.b32.xlu0 %v409, 12
      %v2790 = vpop.permute.xlu0 %2789
      %2791 = vrot.lane.b32.xlu0 %v410, 12
      %v2792 = vpop.permute.xlu0 %2791
      %2793 = vrot.lane.b32.xlu0 %v411, 12
      %v2794 = vpop.permute.xlu0 %2793
      %2795 = vrot.lane.b32.xlu0 %v412, 12
      %v2796 = vpop.permute.xlu0 %2795
      %2797 = vrot.lane.b32.xlu0 %v413, 12
      %v2798 = vpop.permute.xlu0 %2797
      %2799 = vrot.lane.b32.xlu0 %v414, 12
      %v2800 = vpop.permute.xlu0 %2799
      %2801 = vrot.lane.b32.xlu0 %v415, 12
      %v2802 = vpop.permute.xlu0 %2801
      %2803 = vrot.lane.b32.xlu0 %v416, 12
      %v2804 = vpop.permute.xlu0 %2803
      %2805 = vrot.lane.b32.xlu0 %v417, 12
      %v2806 = vpop.permute.xlu0 %2805
      %2807 = vrot.lane.b32.xlu0 %v418, 12
      %v2808 = vpop.permute.xlu0 %2807
      %2809 = vrot.lane.b32.xlu0 %v419, 12
      %v2810 = vpop.permute.xlu0 %2809
      %2811 = vrot.lane.b32.xlu0 %v420, 12
      %v2812 = vpop.permute.xlu0 %2811
      %2813 = vrot.lane.b32.xlu0 %v421, 12
      %v2814 = vpop.permute.xlu0 %2813
      %2815 = vrot.lane.b32.xlu0 %v422, 12
      %v2816 = vpop.permute.xlu0 %2815
      %2817 = vrot.lane.b32.xlu0 %v423, 12
      %v2818 = vpop.permute.xlu0 %2817
      %2819 = vrot.lane.b32.xlu0 %v424, 12
      %v2820 = vpop.permute.xlu0 %2819
      %2821 = vrot.lane.b32.xlu0 %v425, 12
      %v2822 = vpop.permute.xlu0 %2821
      %2823 = vrot.lane.b32.xlu0 %v426, 12
      %v2824 = vpop.permute.xlu0 %2823
      %2825 = vrot.lane.b32.xlu0 %v427, 12
      %v2826 = vpop.permute.xlu0 %2825
      %2827 = vrot.lane.b32.xlu0 %v428, 12
      %v2828 = vpop.permute.xlu0 %2827
      %2829 = vrot.lane.b32.xlu0 %v429, 12
      %v2830 = vpop.permute.xlu0 %2829
      %2831 = vrot.lane.b32.xlu0 %v430, 12
      %v2832 = vpop.permute.xlu0 %2831
      %2833 = vrot.lane.b32.xlu0 %v431, 12
      %v2834 = vpop.permute.xlu0 %2833
      %v2867 = vsel %vm849, %v1555, %v2068
      %v2868 = vsel %vm849, %v1556, %v2070
      %v2869 = vsel %vm849, %v1557, %v2072
      %v2870 = vsel %vm849, %v1558, %v2074
      %v2871 = vsel %vm849, %v1559, %v2076
      %v2872 = vsel %vm849, %v1560, %v2078
      %v2873 = vsel %vm849, %v1561, %v2080
      %v2874 = vsel %vm849, %v1562, %v2082
      %v2875 = vsel %vm849, %v1563, %v2084
      %v2876 = vsel %vm849, %v1564, %v2086
      %v2877 = vsel %vm849, %v1565, %v2088
      %v2878 = vsel %vm849, %v1566, %v2090
      %v2879 = vsel %vm849, %v1567, %v2092
      %v2880 = vsel %vm849, %v1568, %v2094
      %v2881 = vsel %vm849, %v1569, %v2096
      %v2882 = vsel %vm849, %v1570, %v2098
      %v2883 = vsel %vm849, %v1571, %v2100
      %v2884 = vsel %vm849, %v1572, %v2102
      %v2885 = vsel %vm849, %v1573, %v2104
      %v2886 = vsel %vm849, %v1574, %v2106
      %v2887 = vsel %vm849, %v1575, %v2108
      %v2888 = vsel %vm849, %v1576, %v2110
      %v2889 = vsel %vm849, %v1577, %v2112
      %v2890 = vsel %vm849, %v1578, %v2114
      %v2891 = vsel %vm849, %v1579, %v2116
      %v2892 = vsel %vm849, %v1580, %v2118
      %v2893 = vsel %vm849, %v1581, %v2120
      %v2894 = vsel %vm849, %v1582, %v2122
      %v2895 = vsel %vm849, %v1583, %v2124
      %v2896 = vsel %vm849, %v1584, %v2126
      %v2897 = vsel %vm849, %v1585, %v2128
      %v2898 = vsel %vm849, %v1586, %v2130
      %v2899 = vsel %vm882, %v2867, %v2772
      %v2900 = vsel %vm882, %v2868, %v2774
      %v2901 = vsel %vm882, %v2869, %v2776
      %v2902 = vsel %vm882, %v2870, %v2778
      %v2903 = vsel %vm882, %v2871, %v2780
      %v2904 = vsel %vm882, %v2872, %v2782
      %v2905 = vsel %vm882, %v2873, %v2784
      %v2906 = vsel %vm882, %v2874, %v2786
      %v2907 = vsel %vm882, %v2875, %v2788
      %v2908 = vsel %vm882, %v2876, %v2790
      %v2909 = vsel %vm882, %v2877, %v2792
      %v2910 = vsel %vm882, %v2878, %v2794
      %v2911 = vsel %vm882, %v2879, %v2796
      %v2912 = vsel %vm882, %v2880, %v2798
      %v2913 = vsel %vm882, %v2881, %v2800
      %v2914 = vsel %vm882, %v2882, %v2802
      %v2915 = vsel %vm882, %v2883, %v2804
      %v2916 = vsel %vm882, %v2884, %v2806
      %v2917 = vsel %vm882, %v2885, %v2808
      %v2918 = vsel %vm882, %v2886, %v2810
      %v2919 = vsel %vm882, %v2887, %v2812
      %v2920 = vsel %vm882, %v2888, %v2814
      %v2921 = vsel %vm882, %v2889, %v2816
      %v2922 = vsel %vm882, %v2890, %v2818
      %v2923 = vsel %vm882, %v2891, %v2820
      %v2924 = vsel %vm882, %v2892, %v2822
      %v2925 = vsel %vm882, %v2893, %v2824
      %v2926 = vsel %vm882, %v2894, %v2826
      %v2927 = vsel %vm882, %v2895, %v2828
      %v2928 = vsel %vm882, %v2896, %v2830
      %v2929 = vsel %vm882, %v2897, %v2832
      %v2930 = vsel %vm882, %v2898, %v2834
      %s2931 = scalar_lea.vmem %s1, 48
      %v2932 = vld [vmem:[%s2931] sm:$0xff]
      %v2933 = vld [vmem:[%s2931 + $0x8] sm:$0xff]
      %v2935 = vsel %vm917, %v2899, 0
      %v2938 = vsel %vm917, %v2900, 0
      %v2941 = vsel %vm917, %v2901, 0
      %v2944 = vsel %vm917, %v2902, 0
      %v2947 = vsel %vm917, %v2903, 0
      %v2950 = vsel %vm917, %v2904, 0
      %v2953 = vsel %vm917, %v2905, 0
      %v2956 = vsel %vm917, %v2906, 0
      %v2959 = vsel %vm917, %v2907, 0
      %v2962 = vsel %vm917, %v2908, 0
      %v2965 = vsel %vm917, %v2909, 0
      %v2968 = vsel %vm917, %v2910, 0
      %v2971 = vsel %vm917, %v2911, 0
      %v2974 = vsel %vm917, %v2912, 0
      %v2977 = vsel %vm917, %v2913, 0
      %v2980 = vsel %vm917, %v2914, 0
      %v2983 = vsel %vm917, %v2915, 0
      %v2986 = vsel %vm917, %v2916, 0
      %v2989 = vsel %vm917, %v2917, 0
      %v2992 = vsel %vm917, %v2918, 0
      %v2995 = vsel %vm917, %v2919, 0
      %v2998 = vsel %vm917, %v2920, 0
      %v3001 = vsel %vm917, %v2921, 0
      %v3004 = vsel %vm917, %v2922, 0
      %v3007 = vsel %vm917, %v2923, 0
      %v3010 = vsel %vm917, %v2924, 0
      %v3013 = vsel %vm917, %v2925, 0
      %v3016 = vsel %vm917, %v2926, 0
      %v3019 = vsel %vm917, %v2927, 0
      %v3022 = vsel %vm917, %v2928, 0
      %v3025 = vsel %vm917, %v2929, 0
      %v3028 = vsel %vm917, %v2930, 0
      %3030 = vmatpush.msra.mxu0 0.0
      %3031 = vmatpush.msra.mxu0 0.0
      %3032 = vmatpush.msra.mxu0 0.0
      %3033 = vmatpush.msra.mxu0 0.0
      %3034 = vmatpush.msra.mxu0 0.0
      %3035 = vmatpush.msra.mxu0 0.0
      %3036 = vmatpush.msra.mxu0 0.0
      %3037 = vmatpush.msra.mxu0 0.0
      %3038 = vmatpush.msra.mxu0 0.0
      %3039 = vmatpush.msra.mxu0 0.0
      %3040 = vmatpush.msra.mxu0 0.0
      %3041 = vmatpush.msra.mxu0 0.0
      %3042 = vmatpush.msra.mxu0 0.0
      %3043 = vmatpush.msra.mxu0 0.0
      %3044 = vmatpush.msra.mxu0 %v2933
      %3045 = vmatpush.msra.mxu0 %v2932
      %3046 = vmatmul.f32.gmra.mxu0 %v2935
      %v3047 = vpop.f32.mrf.mxu0
      %v3048 = vadd.f32 0.0, %v3047
      %3049 = vmatmul.f32.gmra.mxu0 %v2938
      %v3050 = vpop.f32.mrf.mxu0
      %v3051 = vadd.f32 0.0, %v3050
      %3052 = vmatmul.f32.gmra.mxu0 %v2941
      %v3053 = vpop.f32.mrf.mxu0
      %v3054 = vadd.f32 0.0, %v3053
      %3055 = vmatmul.f32.gmra.mxu0 %v2944
      %v3056 = vpop.f32.mrf.mxu0
      %v3057 = vadd.f32 0.0, %v3056
      %3058 = vmatmul.f32.gmra.mxu0 %v2947
      %v3059 = vpop.f32.mrf.mxu0
      %v3060 = vadd.f32 0.0, %v3059
      %3061 = vmatmul.f32.gmra.mxu0 %v2950
      %v3062 = vpop.f32.mrf.mxu0
      %v3063 = vadd.f32 0.0, %v3062
      %3064 = vmatmul.f32.gmra.mxu0 %v2953
      %v3065 = vpop.f32.mrf.mxu0
      %v3066 = vadd.f32 0.0, %v3065
      %3067 = vmatmul.f32.gmra.mxu0 %v2956
      %v3068 = vpop.f32.mrf.mxu0
      %v3069 = vadd.f32 0.0, %v3068
      %3070 = vmatmul.f32.gmra.mxu0 %v2959
      %v3071 = vpop.f32.mrf.mxu0
      %v3072 = vadd.f32 0.0, %v3071
      %3073 = vmatmul.f32.gmra.mxu0 %v2962
      %v3074 = vpop.f32.mrf.mxu0
      %v3075 = vadd.f32 0.0, %v3074
      %3076 = vmatmul.f32.gmra.mxu0 %v2965
      %v3077 = vpop.f32.mrf.mxu0
      %v3078 = vadd.f32 0.0, %v3077
      %3079 = vmatmul.f32.gmra.mxu0 %v2968
      %v3080 = vpop.f32.mrf.mxu0
      %v3081 = vadd.f32 0.0, %v3080
      %3082 = vmatmul.f32.gmra.mxu0 %v2971
      %v3083 = vpop.f32.mrf.mxu0
      %v3084 = vadd.f32 0.0, %v3083
      %3085 = vmatmul.f32.gmra.mxu0 %v2974
      %v3086 = vpop.f32.mrf.mxu0
      %v3087 = vadd.f32 0.0, %v3086
      %3088 = vmatmul.f32.gmra.mxu0 %v2977
      %v3089 = vpop.f32.mrf.mxu0
      %v3090 = vadd.f32 0.0, %v3089
      %3091 = vmatmul.f32.gmra.mxu0 %v2980
      %v3092 = vpop.f32.mrf.mxu0
      %v3093 = vadd.f32 0.0, %v3092
      %3094 = vmatmul.f32.gmra.mxu0 %v2983
      %v3095 = vpop.f32.mrf.mxu0
      %v3096 = vadd.f32 0.0, %v3095
      %3097 = vmatmul.f32.gmra.mxu0 %v2986
      %v3098 = vpop.f32.mrf.mxu0
      %v3099 = vadd.f32 0.0, %v3098
      %3100 = vmatmul.f32.gmra.mxu0 %v2989
      %v3101 = vpop.f32.mrf.mxu0
      %v3102 = vadd.f32 0.0, %v3101
      %3103 = vmatmul.f32.gmra.mxu0 %v2992
      %v3104 = vpop.f32.mrf.mxu0
      %v3105 = vadd.f32 0.0, %v3104
      %3106 = vmatmul.f32.gmra.mxu0 %v2995
      %v3107 = vpop.f32.mrf.mxu0
      %v3108 = vadd.f32 0.0, %v3107
      %3109 = vmatmul.f32.gmra.mxu0 %v2998
      %v3110 = vpop.f32.mrf.mxu0
      %v3111 = vadd.f32 0.0, %v3110
      %3112 = vmatmul.f32.gmra.mxu0 %v3001
      %v3113 = vpop.f32.mrf.mxu0
      %v3114 = vadd.f32 0.0, %v3113
      %3115 = vmatmul.f32.gmra.mxu0 %v3004
      %v3116 = vpop.f32.mrf.mxu0
      %v3117 = vadd.f32 0.0, %v3116
      %3118 = vmatmul.f32.gmra.mxu0 %v3007
      %v3119 = vpop.f32.mrf.mxu0
      %v3120 = vadd.f32 0.0, %v3119
      %3121 = vmatmul.f32.gmra.mxu0 %v3010
      %v3122 = vpop.f32.mrf.mxu0
      %v3123 = vadd.f32 0.0, %v3122
      %3124 = vmatmul.f32.gmra.mxu0 %v3013
      %v3125 = vpop.f32.mrf.mxu0
      %v3126 = vadd.f32 0.0, %v3125
      %3127 = vmatmul.f32.gmra.mxu0 %v3016
      %v3128 = vpop.f32.mrf.mxu0
      %v3129 = vadd.f32 0.0, %v3128
      %3130 = vmatmul.f32.gmra.mxu0 %v3019
      %v3131 = vpop.f32.mrf.mxu0
      %v3132 = vadd.f32 0.0, %v3131
      %3133 = vmatmul.f32.gmra.mxu0 %v3022
      %v3134 = vpop.f32.mrf.mxu0
      %v3135 = vadd.f32 0.0, %v3134
      %3136 = vmatmul.f32.gmra.mxu0 %v3025
      %v3137 = vpop.f32.mrf.mxu0
      %v3138 = vadd.f32 0.0, %v3137
      %3139 = vmatmul.f32.gmra.mxu0 %v3028
      %v3140 = vpop.f32.mrf.mxu0
      %v3141 = vadd.f32 0.0, %v3140
      %3142 = vdwg.mxu0
      %v3143 = vsel %vm849, %v3048, 0.0
      %v3144 = vsel %vm849, %v3051, 0.0
      %v3145 = vadd.f32 %v3143, %v3144
      %v3146 = vsel %vm849, %v3054, 0.0
      %v3147 = vadd.f32 %v3145, %v3146
      %v3148 = vsel %vm849, %v3057, 0.0
      %v3149 = vadd.f32 %v3147, %v3148
      %v3150 = vsel %vm849, %v3060, 0.0
      %v3151 = vadd.f32 %v3149, %v3150
      %v3152 = vsel %vm849, %v3063, 0.0
      %v3153 = vadd.f32 %v3151, %v3152
      %v3154 = vsel %vm849, %v3066, 0.0
      %v3155 = vadd.f32 %v3153, %v3154
      %v3156 = vsel %vm849, %v3069, 0.0
      %v3157 = vadd.f32 %v3155, %v3156
      %v3158 = vsel %vm849, %v3072, 0.0
      %v3159 = vadd.f32 %v3157, %v3158
      %v3160 = vsel %vm849, %v3075, 0.0
      %v3161 = vadd.f32 %v3159, %v3160
      %v3162 = vsel %vm849, %v3078, 0.0
      %v3163 = vadd.f32 %v3161, %v3162
      %v3164 = vsel %vm849, %v3081, 0.0
      %v3165 = vadd.f32 %v3163, %v3164
      %v3166 = vsel %vm849, %v3084, 0.0
      %v3167 = vadd.f32 %v3165, %v3166
      %v3168 = vsel %vm849, %v3087, 0.0
      %v3169 = vadd.f32 %v3167, %v3168
      %v3170 = vsel %vm849, %v3090, 0.0
      %v3171 = vadd.f32 %v3169, %v3170
      %v3172 = vsel %vm849, %v3093, 0.0
      %v3173 = vadd.f32 %v3171, %v3172
      %v3174 = vsel %vm849, %v3096, 0.0
      %v3175 = vadd.f32 %v3173, %v3174
      %v3176 = vsel %vm849, %v3099, 0.0
      %v3177 = vadd.f32 %v3175, %v3176
      %v3178 = vsel %vm849, %v3102, 0.0
      %v3179 = vadd.f32 %v3177, %v3178
      %v3180 = vsel %vm849, %v3105, 0.0
      %v3181 = vadd.f32 %v3179, %v3180
      %v3182 = vsel %vm849, %v3108, 0.0
      %v3183 = vadd.f32 %v3181, %v3182
      %v3184 = vsel %vm849, %v3111, 0.0
      %v3185 = vadd.f32 %v3183, %v3184
      %v3186 = vsel %vm849, %v3114, 0.0
      %v3187 = vadd.f32 %v3185, %v3186
      %v3188 = vsel %vm849, %v3117, 0.0
      %v3189 = vadd.f32 %v3187, %v3188
      %v3190 = vsel %vm849, %v3120, 0.0
      %v3191 = vadd.f32 %v3189, %v3190
      %v3192 = vsel %vm849, %v3123, 0.0
      %v3193 = vadd.f32 %v3191, %v3192
      %v3194 = vsel %vm849, %v3126, 0.0
      %v3195 = vadd.f32 %v3193, %v3194
      %v3196 = vsel %vm849, %v3129, 0.0
      %v3197 = vadd.f32 %v3195, %v3196
      %v3198 = vsel %vm849, %v3132, 0.0
      %v3199 = vadd.f32 %v3197, %v3198
      %v3200 = vsel %vm849, %v3135, 0.0
      %v3201 = vadd.f32 %v3199, %v3200
      %v3202 = vsel %vm849, %v3138, 0.0
      %v3203 = vadd.f32 %v3201, %v3202
      %v3204 = vsel %vm849, %v3141, 0.0
      %v3205 = vadd.f32 %v3203, %v3204
      %v3206 = vrot.slane %v3205, 4
      %v3207 = vadd.f32 %v3205, %v3206
      %v3208 = vrot.slane %v3207, 2
      %v3209 = vadd.f32 %v3207, %v3208
      %v3210 = vrot.slane %v3209, 1
      %v3211 = vadd.f32 %v3209, %v3210
      %v3212 = vadd.f32 %v2636, %v3211
      %v3213 = vmul.f32 %v3048, %v3048
      %v3214 = vmul.f32 %v3051, %v3051
      %v3215 = vmul.f32 %v3054, %v3054
      %v3216 = vmul.f32 %v3057, %v3057
      %v3217 = vmul.f32 %v3060, %v3060
      %v3218 = vmul.f32 %v3063, %v3063
      %v3219 = vmul.f32 %v3066, %v3066
      %v3220 = vmul.f32 %v3069, %v3069
      %v3221 = vmul.f32 %v3072, %v3072
      %v3222 = vmul.f32 %v3075, %v3075
      %v3223 = vmul.f32 %v3078, %v3078
      %v3224 = vmul.f32 %v3081, %v3081
      %v3225 = vmul.f32 %v3084, %v3084
      %v3226 = vmul.f32 %v3087, %v3087
      %v3227 = vmul.f32 %v3090, %v3090
      %v3228 = vmul.f32 %v3093, %v3093
      %v3229 = vmul.f32 %v3096, %v3096
      %v3230 = vmul.f32 %v3099, %v3099
      %v3231 = vmul.f32 %v3102, %v3102
      %v3232 = vmul.f32 %v3105, %v3105
      %v3233 = vmul.f32 %v3108, %v3108
      %v3234 = vmul.f32 %v3111, %v3111
      %v3235 = vmul.f32 %v3114, %v3114
      %v3236 = vmul.f32 %v3117, %v3117
      %v3237 = vmul.f32 %v3120, %v3120
      %v3238 = vmul.f32 %v3123, %v3123
      %v3239 = vmul.f32 %v3126, %v3126
      %v3240 = vmul.f32 %v3129, %v3129
      %v3241 = vmul.f32 %v3132, %v3132
      %v3242 = vmul.f32 %v3135, %v3135
      %v3243 = vmul.f32 %v3138, %v3138
      %v3244 = vmul.f32 %v3141, %v3141
      %v3245 = vsel %vm849, %v3213, 0.0
      %v3246 = vsel %vm849, %v3214, 0.0
      %v3247 = vadd.f32 %v3245, %v3246
      %v3248 = vsel %vm849, %v3215, 0.0
      %v3249 = vadd.f32 %v3247, %v3248
      %v3250 = vsel %vm849, %v3216, 0.0
      %v3251 = vadd.f32 %v3249, %v3250
      %v3252 = vsel %vm849, %v3217, 0.0
      %v3253 = vadd.f32 %v3251, %v3252
      %v3254 = vsel %vm849, %v3218, 0.0
      %v3255 = vadd.f32 %v3253, %v3254
      %v3256 = vsel %vm849, %v3219, 0.0
      %v3257 = vadd.f32 %v3255, %v3256
      %v3258 = vsel %vm849, %v3220, 0.0
      %v3259 = vadd.f32 %v3257, %v3258
      %v3260 = vsel %vm849, %v3221, 0.0
      %v3261 = vadd.f32 %v3259, %v3260
      %v3262 = vsel %vm849, %v3222, 0.0
      %v3263 = vadd.f32 %v3261, %v3262
      %v3264 = vsel %vm849, %v3223, 0.0
      %v3265 = vadd.f32 %v3263, %v3264
      %v3266 = vsel %vm849, %v3224, 0.0
      %v3267 = vadd.f32 %v3265, %v3266
      %v3268 = vsel %vm849, %v3225, 0.0
      %v3269 = vadd.f32 %v3267, %v3268
      %v3270 = vsel %vm849, %v3226, 0.0
      %v3271 = vadd.f32 %v3269, %v3270
      %v3272 = vsel %vm849, %v3227, 0.0
      %v3273 = vadd.f32 %v3271, %v3272
      %v3274 = vsel %vm849, %v3228, 0.0
      %v3275 = vadd.f32 %v3273, %v3274
      %v3276 = vsel %vm849, %v3229, 0.0
      %v3277 = vadd.f32 %v3275, %v3276
      %v3278 = vsel %vm849, %v3230, 0.0
      %v3279 = vadd.f32 %v3277, %v3278
      %v3280 = vsel %vm849, %v3231, 0.0
      %v3281 = vadd.f32 %v3279, %v3280
      %v3282 = vsel %vm849, %v3232, 0.0
      %v3283 = vadd.f32 %v3281, %v3282
      %v3284 = vsel %vm849, %v3233, 0.0
      %v3285 = vadd.f32 %v3283, %v3284
      %v3286 = vsel %vm849, %v3234, 0.0
      %v3287 = vadd.f32 %v3285, %v3286
      %v3288 = vsel %vm849, %v3235, 0.0
      %v3289 = vadd.f32 %v3287, %v3288
      %v3290 = vsel %vm849, %v3236, 0.0
      %v3291 = vadd.f32 %v3289, %v3290
      %v3292 = vsel %vm849, %v3237, 0.0
      %v3293 = vadd.f32 %v3291, %v3292
      %v3294 = vsel %vm849, %v3238, 0.0
      %v3295 = vadd.f32 %v3293, %v3294
      %v3296 = vsel %vm849, %v3239, 0.0
      %v3297 = vadd.f32 %v3295, %v3296
      %v3298 = vsel %vm849, %v3240, 0.0
      %v3299 = vadd.f32 %v3297, %v3298
      %v3300 = vsel %vm849, %v3241, 0.0
      %v3301 = vadd.f32 %v3299, %v3300
      %v3302 = vsel %vm849, %v3242, 0.0
      %v3303 = vadd.f32 %v3301, %v3302
      %v3304 = vsel %vm849, %v3243, 0.0
      %v3305 = vadd.f32 %v3303, %v3304
      %v3306 = vsel %vm849, %v3244, 0.0
      %v3307 = vadd.f32 %v3305, %v3306
      %v3308 = vrot.slane %v3307, 4
      %v3309 = vadd.f32 %v3307, %v3308
      %v3310 = vrot.slane %v3309, 2
      %v3311 = vadd.f32 %v3309, %v3310
      %v3312 = vrot.slane %v3311, 1
      %v3313 = vadd.f32 %v3311, %v3312
      %v3314 = vadd.f32 %v2738, %v3313
      %vm3315 = vcmask 57344
      %3316 = vst.msk [vmem:[%s141] sm:$0x1] %vm3315, %v3212
      %3317 = vst.msk [vmem:[%s141 + $0x1] sm:$0x1] %vm3315, %v3314
      %p3318 = scmp.lt.s32.totalorder %s13, 1
      %s3319 = scalar_select %p3318, %s13, 1
      %s3320 = smul.addr %s3319, 2
      %s3321 = scalar_lea.vmem %s2, %s3320
      // Predicated region
      $region29: #{deconv_block_forward.2} parent=27 // pred_check
        %p3322 = pneg %p78
      $region30: #{deconv_block_forward.2} parent=27 // pred_check_branch
        %3324 = sbr.rel (%p3322) target = $region32
      $region31: #{deconv_block_forward.2} parent=27 // pred_region
        _
      $region32: #{deconv_block_forward.2} parent=27 // pred_fallthru
        _
    $region28: #{deconv_block_forward.2} parent=5 // pred_fallthru
      _
    %p3325 = scmp.le.s32.totalorder 2, %s8
    // Predicated region
    $region33: #{deconv_block_forward.2} parent=5 // pred_check
      %p3326 = pneg %p3325
    $region34: #{deconv_block_forward.2} parent=5 // pred_check_branch
      %3328 = sbr.rel (%p3326) target = $region36
    $region35: #{deconv_block_forward.2} parent=5 // pred_region
      %s3329 = ssub.s32 %s8, 2
      // Predicated region
      $region37: #{deconv_block_forward.2} parent=35 // pred_check
        %p3330 = pneg %p84
      $region38: #{deconv_block_forward.2} parent=35 // pred_check_branch
        %3332 = sbr.rel (%p3330) target = $region40
      $region39: #{deconv_block_forward.2} parent=35 // pred_region
        %p3333 = scmp.lt.s32.totalorder %s14, 1
        %s3334 = scalar_select %p3333, %s14, 1
        %s3335 = smul.addr %s3334, 2
        %s3336 = scalar_lea.vmem %s2, %s3335
      $region40: #{deconv_block_forward.2} parent=35 // pred_fallthru
        _
    $region36: #{deconv_block_forward.2} parent=5 // pred_fallthru
      _
  $region6: #{deconv_block_forward.2} parent=0 // loop_footer
    %s12 = sadd.s32 1, %s8
  $region7: #{deconv_block_forward.2} parent=0 // loop_footer_branch
    %7 = sbr.rel target = $region3
  $region8: #{deconv_block_forward.2} parent=0 // loop_exit
    _

// kernel: deconv_block_forward.3
$region0: #{deconv_block_forward.3}
  #allocation0 [shape = 'u32[]', space=smem, size = 0x4, offset = 0x4, fixed_abs, tag = 'smem constant byte address 0x4 - core index']
  #allocation1 [shape = 'u32[72,128]{1,0:T(1,128)}', space=vmem, size = 0x9000, scoped, tag = 'internal scratch']
  %s0 = inlined_call_operand.vmem [shape: f32[2,18,18,4], index: 0, kind: input, shape index: {}]
  %s1 = inlined_call_operand.vmem [shape: f32[4,16,8], index: 1, kind: input, shape index: {}]
  %s2 = inlined_call_operand.vmem [shape: f32[1,8], index: 2, kind: input, shape index: {}]
  %s3 = inlined_call_operand.vmem [shape: f32[1,8], index: 3, kind: input, shape index: {}]
  %s4 = inlined_call_operand.vmem [shape: f32[2,16,2,16,16], index: 4, kind: output, shape index: {}]
  %s5 = sld [smem:[#allocation0]]
  $region49: #{deconv_block_forward.3} parent=0
    _
  %s7 = ssub.s32 1, %s5
  %s8 = scalar_select 0, %s7, %s5
  loop: start=0, step=1, limit=4
  $region2: #{deconv_block_forward.3} parent=0 // loop_pre_header
    _
  $region3: #{deconv_block_forward.3} parent=0 // loop_header
    %s10 = sphi 0, %s14
    %p11 = scmp.ge.s32.totalorder %s10, 4
    %s20 = sphi 0, %s22
    %s23 = sphi 0, %s20
    %s24 = sphi 0, %s23
    %s40 = sphi 0, %s24
    %s44 = sphi 0, %s44
    %s46 = sphi 0, %s44
    %s47 = sphi 0, %s46
    %s61 = sphi 0, %s47
    %s65 = sphi 0, %s65
    %s67 = sphi 0, %s65
    %s68 = sphi 0, %s67
    %s82 = sphi 0, %s68
    %s86 = sphi 0, %s86
    %s88 = sphi 0, %s86
    %s89 = sphi 0, %s88
    %s103 = sphi 0, %s89
    %s109 = sphi 0, %s111
    %s112 = sphi 0, %s109
    %s113 = sphi 0, %s112
    %s129 = sphi 0, %s113
  $region4: #{deconv_block_forward.3} parent=0 // loop_header_branch
    %13 = sbr.rel (%p11) target = $region8
  $region5: #{deconv_block_forward.3} parent=0 // loop_body
    %s15 = ssub.s32 %s10, 1
    %s16 = ssub.s32 %s10, 2
    %s17 = sadd.s32 %s10, 1
    %s18 = ssub.s32 %s10, %s17
    %p19 = scmp.eq.s32.totalorder %s18, 0
    %s21 = sadd.s32 %s20, 1
    %s22 = scalar_select %p19, %s20, %s21
    %p25 = pneg %p19
    %p26 = scmp.eq.s32.totalorder %s10, 1
    %p27 = por %p25, %p26
    %p28 = scmp.ne.s32.totalorder %s20, %s23
    %p29 = scmp.eq.s32.totalorder %s10, 0
    %p30 = por %p28, %p29
    %p31 = scmp.ne.s32.totalorder %s20, %s23
    %p32 = scmp.eq.s32.totalorder %s15, 1
    %p33 = por %p31, %p32
    %p34 = scmp.ne.s32.totalorder %s23, %s24
    %p35 = scmp.eq.s32.totalorder %s15, 0
    %p36 = por %p34, %p35
    %p37 = scmp.ne.s32.totalorder %s23, %s24
    %p38 = scmp.eq.s32.totalorder %s16, 1
    %p39 = por %p37, %p38
    %p41 = scmp.ne.s32.totalorder %s24, %s40
    %p42 = scmp.eq.s32.totalorder %s16, 0
    %p43 = por %p41, %p42
    %s45 = sadd.s32 %s44, 1
    %p48 = scmp.eq.s32.totalorder %s10, 1
    %p49 = scmp.ne.s32.totalorder %s44, %s46
    %p50 = scmp.eq.s32.totalorder %s10, 0
    %p51 = por %p49, %p50
    %p52 = scmp.ne.s32.totalorder %s44, %s46
    %p53 = scmp.eq.s32.totalorder %s15, 1
    %p54 = por %p52, %p53
    %p55 = scmp.ne.s32.totalorder %s46, %s47
    %p56 = scmp.eq.s32.totalorder %s15, 0
    %p57 = por %p55, %p56
    %p58 = scmp.ne.s32.totalorder %s46, %s47
    %p59 = scmp.eq.s32.totalorder %s16, 1
    %p60 = por %p58, %p59
    %p62 = scmp.ne.s32.totalorder %s47, %s61
    %p63 = scmp.eq.s32.totalorder %s16, 0
    %p64 = por %p62, %p63
    %s66 = sadd.s32 %s65, 1
    %p69 = scmp.eq.s32.totalorder %s10, 1
    %p70 = scmp.ne.s32.totalorder %s65, %s67
    %p71 = scmp.eq.s32.totalorder %s10, 0
    %p72 = por %p70, %p71
    %p73 = scmp.ne.s32.totalorder %s65, %s67
    %p74 = scmp.eq.s32.totalorder %s15, 1
    %p75 = por %p73, %p74
    %p76 = scmp.ne.s32.totalorder %s67, %s68
    %p77 = scmp.eq.s32.totalorder %s15, 0
    %p78 = por %p76, %p77
    %p79 = scmp.ne.s32.totalorder %s67, %s68
    %p80 = scmp.eq.s32.totalorder %s16, 1
    %p81 = por %p79, %p80
    %p83 = scmp.ne.s32.totalorder %s68, %s82
    %p84 = scmp.eq.s32.totalorder %s16, 0
    %p85 = por %p83, %p84
    %s87 = sadd.s32 %s86, 1
    %p90 = scmp.eq.s32.totalorder %s10, 1
    %p91 = scmp.ne.s32.totalorder %s86, %s88
    %p92 = scmp.eq.s32.totalorder %s10, 0
    %p93 = por %p91, %p92
    %p94 = scmp.ne.s32.totalorder %s86, %s88
    %p95 = scmp.eq.s32.totalorder %s15, 1
    %p96 = por %p94, %p95
    %p97 = scmp.ne.s32.totalorder %s88, %s89
    %p98 = scmp.eq.s32.totalorder %s15, 0
    %p99 = por %p97, %p98
    %p100 = scmp.ne.s32.totalorder %s88, %s89
    %p101 = scmp.eq.s32.totalorder %s16, 1
    %p102 = por %p100, %p101
    %p104 = scmp.ne.s32.totalorder %s89, %s103
    %p105 = scmp.eq.s32.totalorder %s16, 0
    %p106 = por %p104, %p105
    %s107 = ssub.s32 %s10, %s17
    %p108 = scmp.eq.s32.totalorder %s107, 0
    %s110 = sadd.s32 %s109, 1
    %s111 = scalar_select %p108, %s109, %s110
    %p114 = pneg %p108
    %p115 = scmp.eq.s32.totalorder %s10, 1
    %p116 = por %p114, %p115
    %p117 = scmp.ne.s32.totalorder %s109, %s112
    %p118 = scmp.eq.s32.totalorder %s10, 0
    %p119 = por %p117, %p118
    %p120 = scmp.ne.s32.totalorder %s109, %s112
    %p121 = scmp.eq.s32.totalorder %s15, 1
    %p122 = por %p120, %p121
    %p123 = scmp.ne.s32.totalorder %s112, %s113
    %p124 = scmp.eq.s32.totalorder %s15, 0
    %p125 = por %p123, %p124
    %p126 = scmp.ne.s32.totalorder %s112, %s113
    %p127 = scmp.eq.s32.totalorder %s16, 1
    %p128 = por %p126, %p127
    %p130 = scmp.ne.s32.totalorder %s113, %s129
    %p131 = scmp.eq.s32.totalorder %s16, 0
    %p132 = por %p130, %p131
    %p133 = scmp.le.s32.totalorder 1, %s10
    %p134 = scmp.lt.s32.totalorder %s10, 3
    %p135 = pnand %p133, %p134
    %p136 = pneg %p135
    // Predicated region
    $region9: #{deconv_block_forward.3} parent=5 // pred_check
      _
    $region10: #{deconv_block_forward.3} parent=5 // pred_check_branch
      %138 = sbr.rel (%p135) target = $region12
    $region11: #{deconv_block_forward.3} parent=5 // pred_region
      %s139 = ssub.s32 %s10, 1
      // Predicated region
      $region13: #{deconv_block_forward.3} parent=11 // pred_check
        %p140 = pneg %p57
      $region14: #{deconv_block_forward.3} parent=11 // pred_check_branch
        %142 = sbr.rel (%p140) target = $region16
      $region15: #{deconv_block_forward.3} parent=11 // pred_region
        _
      $region16: #{deconv_block_forward.3} parent=11 // pred_fallthru
        _
      // Predicated region
      $region17: #{deconv_block_forward.3} parent=11 // pred_check
        %p143 = pneg %p78
      $region18: #{deconv_block_forward.3} parent=11 // pred_check_branch
        %145 = sbr.rel (%p143) target = $region20
      $region19: #{deconv_block_forward.3} parent=11 // pred_region
        _
      $region20: #{deconv_block_forward.3} parent=11 // pred_fallthru
        _
      // Predicated region
      $region21: #{deconv_block_forward.3} parent=11 // pred_check
        %p146 = pneg %p99
      $region22: #{deconv_block_forward.3} parent=11 // pred_check_branch
        %148 = sbr.rel (%p146) target = $region24
      $region23: #{deconv_block_forward.3} parent=11 // pred_region
        _
      $region24: #{deconv_block_forward.3} parent=11 // pred_fallthru
        _
    $region12: #{deconv_block_forward.3} parent=5 // pred_fallthru
      _
    %p149 = scmp.lt.s32.totalorder %s10, 2
    // Predicated region
    $region25: #{deconv_block_forward.3} parent=5 // pred_check
      %p150 = pneg %p149
    $region26: #{deconv_block_forward.3} parent=5 // pred_check_branch
      %152 = sbr.rel (%p150) target = $region28
    $region27: #{deconv_block_forward.3} parent=5 // pred_region
      // Predicated region
      $region29: #{deconv_block_forward.3} parent=27 // pred_check
        %p153 = pneg %p30
      $region30: #{deconv_block_forward.3} parent=27 // pred_check_branch
        %155 = sbr.rel (%p153) target = $region32
      $region31: #{deconv_block_forward.3} parent=27 // pred_region
        %p156 = scmp.lt.s32.totalorder %s10, 1
        %s157 = scalar_select %p156, %s10, 1
        %s158 = smul.addr %s157, 54
        %s159 = smul.addr %s158, 8
        %s160 = scalar_lea.vmem %s0, %s159
      $region32: #{deconv_block_forward.3} parent=27 // pred_fallthru
        _
    $region28: #{deconv_block_forward.3} parent=5 // pred_fallthru
      _
    %p161 = scmp.le.s32.totalorder 1, %s10
    %p162 = scmp.lt.s32.totalorder %s10, 3
    %p163 = pnand %p161, %p162
    %p164 = pneg %p163
    // Predicated region
    $region33: #{deconv_block_forward.3} parent=5 // pred_check
      _
    $region34: #{deconv_block_forward.3} parent=5 // pred_check_branch
      %166 = sbr.rel (%p163) target = $region36
    $region35: #{deconv_block_forward.3} parent=5 // pred_region
      %s167 = ssub.s32 %s10, 1
      %p168 = scmp.lt.s32.totalorder %s15, 1
      %s169 = scalar_select %p168, %s15, 1
      %s170 = smul.addr %s169, 54
      %s171 = smul.addr %s170, 8
      %s172 = scalar_lea.vmem %s0, %s171
      %p173 = pneg %p36
      %p174 = pneg %p33
      %p175 = pneg %p57
      %p176 = pneg %p54
      %p177 = pneg %p78
      %p178 = pneg %p75
      %p179 = pneg %p99
      %p180 = pneg %p96
      %p181 = pneg %p125
      %p182 = pneg %p122
      %p183 = scmp.lt.s32.totalorder %s15, 1
      %s184 = scalar_select %p183, %s15, 1
      %s185 = smul.addr %s184, 64
      %s186 = smul.addr %s185, 8
      %s187 = scalar_lea.vmem %s4, %s186
      %p188 = scmp.lt.s32.totalorder %s15, 1
      %s189 = scalar_select %p188, %s15, 1
      %s190 = smul.addr %s189, 54
      %s191 = smul.addr %s190, 8
      %s192 = scalar_lea.vmem %s0, %s191
      %p193 = scmp.lt.s32.totalorder %s15, 1
      %s194 = scalar_select %p193, %s15, 1
      %s195 = smul.addr %s194, 64
      %s196 = smul.addr %s195, 8
      %s197 = scalar_lea.vmem %s4, %s196
      %v198 = vld [vmem:[%s2] sm:$0x1]
      %v199 = vld [vmem:[%s3] sm:$0x1]
      %v200 = vld [vmem:[%s192] sm:$0xff]
      %v201 = vld [vmem:[%s192 + $0x8] sm:$0xff]
      %v202 = vld [vmem:[%s192 + $0x18] sm:$0xff]
      %v203 = vld [vmem:[%s192 + $0x20] sm:$0xff]
      %v204 = vld [vmem:[%s192 + $0x30] sm:$0xff]
      %v205 = vld [vmem:[%s192 + $0x38] sm:$0xff]
      %v206 = vld [vmem:[%s192 + $0x48] sm:$0xff]
      %v207 = vld [vmem:[%s192 + $0x50] sm:$0xff]
      %v208 = vld [vmem:[%s192 + $0x60] sm:$0xff]
      %v209 = vld [vmem:[%s192 + $0x68] sm:$0xff]
      %v210 = vld [vmem:[%s192 + $0x78] sm:$0xff]
      %v211 = vld [vmem:[%s192 + $0x80] sm:$0xff]
      %v212 = vld [vmem:[%s192 + $0x90] sm:$0xff]
      %v213 = vld [vmem:[%s192 + $0x98] sm:$0xff]
      %v214 = vld [vmem:[%s192 + $0xa8] sm:$0xff]
      %v215 = vld [vmem:[%s192 + $0xb0] sm:$0xff]
      %v216 = vld [vmem:[%s192 + $0xc0] sm:$0xff]
      %v217 = vld [vmem:[%s192 + $0xc8] sm:$0xff]
      %v218 = vld [vmem:[%s192 + $0xd8] sm:$0xff]
      %v219 = vld [vmem:[%s192 + $0xe0] sm:$0xff]
      %v220 = vld [vmem:[%s192 + $0xf0] sm:$0xff]
      %v221 = vld [vmem:[%s192 + $0xf8] sm:$0xff]
      %v222 = vld [vmem:[%s192 + $0x108] sm:$0xff]
      %v223 = vld [vmem:[%s192 + $0x110] sm:$0xff]
      %v224 = vld [vmem:[%s192 + $0x120] sm:$0xff]
      %v225 = vld [vmem:[%s192 + $0x128] sm:$0xff]
      %v226 = vld [vmem:[%s192 + $0x138] sm:$0xff]
      %v227 = vld [vmem:[%s192 + $0x140] sm:$0xff]
      %v228 = vld [vmem:[%s192 + $0x150] sm:$0xff]
      %v229 = vld [vmem:[%s192 + $0x158] sm:$0xff]
      %v230 = vld [vmem:[%s192 + $0x168] sm:$0xff]
      %v231 = vld [vmem:[%s192 + $0x170] sm:$0xff]
      %v232 = vld [vmem:[%s192 + $0x1] sm:$0xff]
      %v233 = vld [vmem:[%s192 + $0x9] sm:$0xff]
      %v234 = vld [vmem:[%s192 + $0x19] sm:$0xff]
      %v235 = vld [vmem:[%s192 + $0x21] sm:$0xff]
      %v236 = vld [vmem:[%s192 + $0x31] sm:$0xff]
      %v237 = vld [vmem:[%s192 + $0x39] sm:$0xff]
      %v238 = vld [vmem:[%s192 + $0x49] sm:$0xff]
      %v239 = vld [vmem:[%s192 + $0x51] sm:$0xff]
      %v240 = vld [vmem:[%s192 + $0x61] sm:$0xff]
      %v241 = vld [vmem:[%s192 + $0x69] sm:$0xff]
      %v242 = vld [vmem:[%s192 + $0x79] sm:$0xff]
      %v243 = vld [vmem:[%s192 + $0x81] sm:$0xff]
      %v244 = vld [vmem:[%s192 + $0x91] sm:$0xff]
      %v245 = vld [vmem:[%s192 + $0x99] sm:$0xff]
      %v246 = vld [vmem:[%s192 + $0xa9] sm:$0xff]
      %v247 = vld [vmem:[%s192 + $0xb1] sm:$0xff]
      %v248 = vld [vmem:[%s192 + $0xc1] sm:$0xff]
      %v249 = vld [vmem:[%s192 + $0xc9] sm:$0xff]
      %v250 = vld [vmem:[%s192 + $0xd9] sm:$0xff]
      %v251 = vld [vmem:[%s192 + $0xe1] sm:$0xff]
      %v252 = vld [vmem:[%s192 + $0xf1] sm:$0xff]
      %v253 = vld [vmem:[%s192 + $0xf9] sm:$0xff]
      %v254 = vld [vmem:[%s192 + $0x109] sm:$0xff]
      %v255 = vld [vmem:[%s192 + $0x111] sm:$0xff]
      %v256 = vld [vmem:[%s192 + $0x121] sm:$0xff]
      %v257 = vld [vmem:[%s192 + $0x129] sm:$0xff]
      %v258 = vld [vmem:[%s192 + $0x139] sm:$0xff]
      %v259 = vld [vmem:[%s192 + $0x141] sm:$0xff]
      %v260 = vld [vmem:[%s192 + $0x151] sm:$0xff]
      %v261 = vld [vmem:[%s192 + $0x159] sm:$0xff]
      %v262 = vld [vmem:[%s192 + $0x169] sm:$0xff]
      %v263 = vld [vmem:[%s192 + $0x171] sm:$0xff]
      %v264 = vld [vmem:[%s192 + $0x2] sm:$0xff]
      %v265 = vld [vmem:[%s192 + $0xa] sm:$0xff]
      %v266 = vld [vmem:[%s192 + $0x1a] sm:$0xff]
      %v267 = vld [vmem:[%s192 + $0x22] sm:$0xff]
      %v268 = vld [vmem:[%s192 + $0x32] sm:$0xff]
      %v269 = vld [vmem:[%s192 + $0x3a] sm:$0xff]
      %v270 = vld [vmem:[%s192 + $0x4a] sm:$0xff]
      %v271 = vld [vmem:[%s192 + $0x52] sm:$0xff]
      %v272 = vld [vmem:[%s192 + $0x62] sm:$0xff]
      %v273 = vld [vmem:[%s192 + $0x6a] sm:$0xff]
      %v274 = vld [vmem:[%s192 + $0x7a] sm:$0xff]
      %v275 = vld [vmem:[%s192 + $0x82] sm:$0xff]
      %v276 = vld [vmem:[%s192 + $0x92] sm:$0xff]
      %v277 = vld [vmem:[%s192 + $0x9a] sm:$0xff]
      %v278 = vld [vmem:[%s192 + $0xaa] sm:$0xff]
      %v279 = vld [vmem:[%s192 + $0xb2] sm:$0xff]
      %v280 = vld [vmem:[%s192 + $0xc2] sm:$0xff]
      %v281 = vld [vmem:[%s192 + $0xca] sm:$0xff]
      %v282 = vld [vmem:[%s192 + $0xda] sm:$0xff]
      %v283 = vld [vmem:[%s192 + $0xe2] sm:$0xff]
      %v284 = vld [vmem:[%s192 + $0xf2] sm:$0xff]
      %v285 = vld [vmem:[%s192 + $0xfa] sm:$0xff]
      %v286 = vld [vmem:[%s192 + $0x10a] sm:$0xff]
      %v287 = vld [vmem:[%s192 + $0x112] sm:$0xff]
      %v288 = vld [vmem:[%s192 + $0x122] sm:$0xff]
      %v289 = vld [vmem:[%s192 + $0x12a] sm:$0xff]
      %v290 = vld [vmem:[%s192 + $0x13a] sm:$0xff]
      %v291 = vld [vmem:[%s192 + $0x142] sm:$0xff]
      %v292 = vld [vmem:[%s192 + $0x152] sm:$0xff]
      %v293 = vld [vmem:[%s192 + $0x15a] sm:$0xff]
      %v294 = vld [vmem:[%s192 + $0x16a] sm:$0xff]
      %v295 = vld [vmem:[%s192 + $0x172] sm:$0xff]
      %s296 = scalar_lea.vmem %s192, 24
      %v297 = vld [vmem:[%s296] sm:$0xff]
      %v298 = vld [vmem:[%s296 + $0x8] sm:$0xff]
      %v299 = vld [vmem:[%s296 + $0x18] sm:$0xff]
      %v300 = vld [vmem:[%s296 + $0x20] sm:$0xff]
      %v301 = vld [vmem:[%s296 + $0x30] sm:$0xff]
      %v302 = vld [vmem:[%s296 + $0x38] sm:$0xff]
      %v303 = vld [vmem:[%s296 + $0x48] sm:$0xff]
      %v304 = vld [vmem:[%s296 + $0x50] sm:$0xff]
      %v305 = vld [vmem:[%s296 + $0x60] sm:$0xff]
      %v306 = vld [vmem:[%s296 + $0x68] sm:$0xff]
      %v307 = vld [vmem:[%s296 + $0x78] sm:$0xff]
      %v308 = vld [vmem:[%s296 + $0x80] sm:$0xff]
      %v309 = vld [vmem:[%s296 + $0x90] sm:$0xff]
      %v310 = vld [vmem:[%s296 + $0x98] sm:$0xff]
      %v311 = vld [vmem:[%s296 + $0xa8] sm:$0xff]
      %v312 = vld [vmem:[%s296 + $0xb0] sm:$0xff]
      %v313 = vld [vmem:[%s296 + $0xc0] sm:$0xff]
      %v314 = vld [vmem:[%s296 + $0xc8] sm:$0xff]
      %v315 = vld [vmem:[%s296 + $0xd8] sm:$0xff]
      %v316 = vld [vmem:[%s296 + $0xe0] sm:$0xff]
      %v317 = vld [vmem:[%s296 + $0xf0] sm:$0xff]
      %v318 = vld [vmem:[%s296 + $0xf8] sm:$0xff]
      %v319 = vld [vmem:[%s296 + $0x108] sm:$0xff]
      %v320 = vld [vmem:[%s296 + $0x110] sm:$0xff]
      %v321 = vld [vmem:[%s296 + $0x120] sm:$0xff]
      %v322 = vld [vmem:[%s296 + $0x128] sm:$0xff]
      %v323 = vld [vmem:[%s296 + $0x138] sm:$0xff]
      %v324 = vld [vmem:[%s296 + $0x140] sm:$0xff]
      %v325 = vld [vmem:[%s296 + $0x150] sm:$0xff]
      %v326 = vld [vmem:[%s296 + $0x158] sm:$0xff]
      %v327 = vld [vmem:[%s296 + $0x168] sm:$0xff]
      %v328 = vld [vmem:[%s296 + $0x170] sm:$0xff]
      %v329 = vld [vmem:[%s296 + $0x1] sm:$0xff]
      %v330 = vld [vmem:[%s296 + $0x9] sm:$0xff]
      %v331 = vld [vmem:[%s296 + $0x19] sm:$0xff]
      %v332 = vld [vmem:[%s296 + $0x21] sm:$0xff]
      %v333 = vld [vmem:[%s296 + $0x31] sm:$0xff]
      %v334 = vld [vmem:[%s296 + $0x39] sm:$0xff]
      %v335 = vld [vmem:[%s296 + $0x49] sm:$0xff]
      %v336 = vld [vmem:[%s296 + $0x51] sm:$0xff]
      %v337 = vld [vmem:[%s296 + $0x61] sm:$0xff]
      %v338 = vld [vmem:[%s296 + $0x69] sm:$0xff]
      %v339 = vld [vmem:[%s296 + $0x79] sm:$0xff]
      %v340 = vld [vmem:[%s296 + $0x81] sm:$0xff]
      %v341 = vld [vmem:[%s296 + $0x91] sm:$0xff]
      %v342 = vld [vmem:[%s296 + $0x99] sm:$0xff]
      %v343 = vld [vmem:[%s296 + $0xa9] sm:$0xff]
      %v344 = vld [vmem:[%s296 + $0xb1] sm:$0xff]
      %v345 = vld [vmem:[%s296 + $0xc1] sm:$0xff]
      %v346 = vld [vmem:[%s296 + $0xc9] sm:$0xff]
      %v347 = vld [vmem:[%s296 + $0xd9] sm:$0xff]
      %v348 = vld [vmem:[%s296 + $0xe1] sm:$0xff]
      %v349 = vld [vmem:[%s296 + $0xf1] sm:$0xff]
      %v350 = vld [vmem:[%s296 + $0xf9] sm:$0xff]
      %v351 = vld [vmem:[%s296 + $0x109] sm:$0xff]
      %v352 = vld [vmem:[%s296 + $0x111] sm:$0xff]
      %v353 = vld [vmem:[%s296 + $0x121] sm:$0xff]
      %v354 = vld [vmem:[%s296 + $0x129] sm:$0xff]
      %v355 = vld [vmem:[%s296 + $0x139] sm:$0xff]
      %v356 = vld [vmem:[%s296 + $0x141] sm:$0xff]
      %v357 = vld [vmem:[%s296 + $0x151] sm:$0xff]
      %v358 = vld [vmem:[%s296 + $0x159] sm:$0xff]
      %v359 = vld [vmem:[%s296 + $0x169] sm:$0xff]
      %v360 = vld [vmem:[%s296 + $0x171] sm:$0xff]
      %v361 = vld [vmem:[%s296 + $0x2] sm:$0xff]
      %v362 = vld [vmem:[%s296 + $0xa] sm:$0xff]
      %v363 = vld [vmem:[%s296 + $0x1a] sm:$0xff]
      %v364 = vld [vmem:[%s296 + $0x22] sm:$0xff]
      %v365 = vld [vmem:[%s296 + $0x32] sm:$0xff]
      %v366 = vld [vmem:[%s296 + $0x3a] sm:$0xff]
      %v367 = vld [vmem:[%s296 + $0x4a] sm:$0xff]
      %v368 = vld [vmem:[%s296 + $0x52] sm:$0xff]
      %v369 = vld [vmem:[%s296 + $0x62] sm:$0xff]
      %v370 = vld [vmem:[%s296 + $0x6a] sm:$0xff]
      %v371 = vld [vmem:[%s296 + $0x7a] sm:$0xff]
      %v372 = vld [vmem:[%s296 + $0x82] sm:$0xff]
      %v373 = vld [vmem:[%s296 + $0x92] sm:$0xff]
      %v374 = vld [vmem:[%s296 + $0x9a] sm:$0xff]
      %v375 = vld [vmem:[%s296 + $0xaa] sm:$0xff]
      %v376 = vld [vmem:[%s296 + $0xb2] sm:$0xff]
      %v377 = vld [vmem:[%s296 + $0xc2] sm:$0xff]
      %v378 = vld [vmem:[%s296 + $0xca] sm:$0xff]
      %v379 = vld [vmem:[%s296 + $0xda] sm:$0xff]
      %v380 = vld [vmem:[%s296 + $0xe2] sm:$0xff]
      %v381 = vld [vmem:[%s296 + $0xf2] sm:$0xff]
      %v382 = vld [vmem:[%s296 + $0xfa] sm:$0xff]
      %v383 = vld [vmem:[%s296 + $0x10a] sm:$0xff]
      %v384 = vld [vmem:[%s296 + $0x112] sm:$0xff]
      %v385 = vld [vmem:[%s296 + $0x122] sm:$0xff]
      %v386 = vld [vmem:[%s296 + $0x12a] sm:$0xff]
      %v387 = vld [vmem:[%s296 + $0x13a] sm:$0xff]
      %v388 = vld [vmem:[%s296 + $0x142] sm:$0xff]
      %v389 = vld [vmem:[%s296 + $0x152] sm:$0xff]
      %v390 = vld [vmem:[%s296 + $0x15a] sm:$0xff]
      %v391 = vld [vmem:[%s296 + $0x16a] sm:$0xff]
      %v392 = vld [vmem:[%s296 + $0x172] sm:$0xff]
      %s393 = scalar_lea.vmem %s192, 48
      %v394 = vld [vmem:[%s393] sm:$0xff]
      %v395 = vld [vmem:[%s393 + $0x8] sm:$0xff]
      %v396 = vld [vmem:[%s393 + $0x18] sm:$0xff]
      %v397 = vld [vmem:[%s393 + $0x20] sm:$0xff]
      %v398 = vld [vmem:[%s393 + $0x30] sm:$0xff]
      %v399 = vld [vmem:[%s393 + $0x38] sm:$0xff]
      %v400 = vld [vmem:[%s393 + $0x48] sm:$0xff]
      %v401 = vld [vmem:[%s393 + $0x50] sm:$0xff]
      %v402 = vld [vmem:[%s393 + $0x60] sm:$0xff]
      %v403 = vld [vmem:[%s393 + $0x68] sm:$0xff]
      %v404 = vld [vmem:[%s393 + $0x78] sm:$0xff]
      %v405 = vld [vmem:[%s393 + $0x80] sm:$0xff]
      %v406 = vld [vmem:[%s393 + $0x90] sm:$0xff]
      %v407 = vld [vmem:[%s393 + $0x98] sm:$0xff]
      %v408 = vld [vmem:[%s393 + $0xa8] sm:$0xff]
      %v409 = vld [vmem:[%s393 + $0xb0] sm:$0xff]
      %v410 = vld [vmem:[%s393 + $0xc0] sm:$0xff]
      %v411 = vld [vmem:[%s393 + $0xc8] sm:$0xff]
      %v412 = vld [vmem:[%s393 + $0xd8] sm:$0xff]
      %v413 = vld [vmem:[%s393 + $0xe0] sm:$0xff]
      %v414 = vld [vmem:[%s393 + $0xf0] sm:$0xff]
      %v415 = vld [vmem:[%s393 + $0xf8] sm:$0xff]
      %v416 = vld [vmem:[%s393 + $0x108] sm:$0xff]
      %v417 = vld [vmem:[%s393 + $0x110] sm:$0xff]
      %v418 = vld [vmem:[%s393 + $0x120] sm:$0xff]
      %v419 = vld [vmem:[%s393 + $0x128] sm:$0xff]
      %v420 = vld [vmem:[%s393 + $0x138] sm:$0xff]
      %v421 = vld [vmem:[%s393 + $0x140] sm:$0xff]
      %v422 = vld [vmem:[%s393 + $0x150] sm:$0xff]
      %v423 = vld [vmem:[%s393 + $0x158] sm:$0xff]
      %v424 = vld [vmem:[%s393 + $0x168] sm:$0xff]
      %v425 = vld [vmem:[%s393 + $0x170] sm:$0xff]
      %v426 = vld [vmem:[%s393 + $0x1] sm:$0xff]
      %v427 = vld [vmem:[%s393 + $0x9] sm:$0xff]
      %v428 = vld [vmem:[%s393 + $0x19] sm:$0xff]
      %v429 = vld [vmem:[%s393 + $0x21] sm:$0xff]
      %v430 = vld [vmem:[%s393 + $0x31] sm:$0xff]
      %v431 = vld [vmem:[%s393 + $0x39] sm:$0xff]
      %v432 = vld [vmem:[%s393 + $0x49] sm:$0xff]
      %v433 = vld [vmem:[%s393 + $0x51] sm:$0xff]
      %v434 = vld [vmem:[%s393 + $0x61] sm:$0xff]
      %v435 = vld [vmem:[%s393 + $0x69] sm:$0xff]
      %v436 = vld [vmem:[%s393 + $0x79] sm:$0xff]
      %v437 = vld [vmem:[%s393 + $0x81] sm:$0xff]
      %v438 = vld [vmem:[%s393 + $0x91] sm:$0xff]
      %v439 = vld [vmem:[%s393 + $0x99] sm:$0xff]
      %v440 = vld [vmem:[%s393 + $0xa9] sm:$0xff]
      %v441 = vld [vmem:[%s393 + $0xb1] sm:$0xff]
      %v442 = vld [vmem:[%s393 + $0xc1] sm:$0xff]
      %v443 = vld [vmem:[%s393 + $0xc9] sm:$0xff]
      %v444 = vld [vmem:[%s393 + $0xd9] sm:$0xff]
      %v445 = vld [vmem:[%s393 + $0xe1] sm:$0xff]
      %v446 = vld [vmem:[%s393 + $0xf1] sm:$0xff]
      %v447 = vld [vmem:[%s393 + $0xf9] sm:$0xff]
      %v448 = vld [vmem:[%s393 + $0x109] sm:$0xff]
      %v449 = vld [vmem:[%s393 + $0x111] sm:$0xff]
      %v450 = vld [vmem:[%s393 + $0x121] sm:$0xff]
      %v451 = vld [vmem:[%s393 + $0x129] sm:$0xff]
      %v452 = vld [vmem:[%s393 + $0x139] sm:$0xff]
      %v453 = vld [vmem:[%s393 + $0x141] sm:$0xff]
      %v454 = vld [vmem:[%s393 + $0x151] sm:$0xff]
      %v455 = vld [vmem:[%s393 + $0x159] sm:$0xff]
      %v456 = vld [vmem:[%s393 + $0x169] sm:$0xff]
      %v457 = vld [vmem:[%s393 + $0x171] sm:$0xff]
      %v458 = vld [vmem:[%s393 + $0x2] sm:$0xff]
      %v459 = vld [vmem:[%s393 + $0xa] sm:$0xff]
      %v460 = vld [vmem:[%s393 + $0x1a] sm:$0xff]
      %v461 = vld [vmem:[%s393 + $0x22] sm:$0xff]
      %v462 = vld [vmem:[%s393 + $0x32] sm:$0xff]
      %v463 = vld [vmem:[%s393 + $0x3a] sm:$0xff]
      %v464 = vld [vmem:[%s393 + $0x4a] sm:$0xff]
      %v465 = vld [vmem:[%s393 + $0x52] sm:$0xff]
      %v466 = vld [vmem:[%s393 + $0x62] sm:$0xff]
      %v467 = vld [vmem:[%s393 + $0x6a] sm:$0xff]
      %v468 = vld [vmem:[%s393 + $0x7a] sm:$0xff]
      %v469 = vld [vmem:[%s393 + $0x82] sm:$0xff]
      %v470 = vld [vmem:[%s393 + $0x92] sm:$0xff]
      %v471 = vld [vmem:[%s393 + $0x9a] sm:$0xff]
      %v472 = vld [vmem:[%s393 + $0xaa] sm:$0xff]
      %v473 = vld [vmem:[%s393 + $0xb2] sm:$0xff]
      %v474 = vld [vmem:[%s393 + $0xc2] sm:$0xff]
      %v475 = vld [vmem:[%s393 + $0xca] sm:$0xff]
      %v476 = vld [vmem:[%s393 + $0xda] sm:$0xff]
      %v477 = vld [vmem:[%s393 + $0xe2] sm:$0xff]
      %v478 = vld [vmem:[%s393 + $0xf2] sm:$0xff]
      %v479 = vld [vmem:[%s393 + $0xfa] sm:$0xff]
      %v480 = vld [vmem:[%s393 + $0x10a] sm:$0xff]
      %v481 = vld [vmem:[%s393 + $0x112] sm:$0xff]
      %v482 = vld [vmem:[%s393 + $0x122] sm:$0xff]
      %v483 = vld [vmem:[%s393 + $0x12a] sm:$0xff]
      %v484 = vld [vmem:[%s393 + $0x13a] sm:$0xff]
      %v485 = vld [vmem:[%s393 + $0x142] sm:$0xff]
      %v486 = vld [vmem:[%s393 + $0x152] sm:$0xff]
      %v487 = vld [vmem:[%s393 + $0x15a] sm:$0xff]
      %v488 = vld [vmem:[%s393 + $0x16a] sm:$0xff]
      %v489 = vld [vmem:[%s393 + $0x172] sm:$0xff]
      %522 = vrot.lane.b32.xlu0 %v297, 4
      %v523 = vpop.permute.xlu0 %522
      %524 = vrot.lane.b32.xlu0 %v298, 4
      %v525 = vpop.permute.xlu0 %524
      %526 = vrot.lane.b32.xlu0 %v299, 4
      %v527 = vpop.permute.xlu0 %526
      %528 = vrot.lane.b32.xlu0 %v300, 4
      %v529 = vpop.permute.xlu0 %528
      %530 = vrot.lane.b32.xlu0 %v301, 4
      %v531 = vpop.permute.xlu0 %530
      %532 = vrot.lane.b32.xlu0 %v302, 4
      %v533 = vpop.permute.xlu0 %532
      %534 = vrot.lane.b32.xlu0 %v303, 4
      %v535 = vpop.permute.xlu0 %534
      %536 = vrot.lane.b32.xlu0 %v304, 4
      %v537 = vpop.permute.xlu0 %536
      %538 = vrot.lane.b32.xlu0 %v305, 4
      %v539 = vpop.permute.xlu0 %538
      %540 = vrot.lane.b32.xlu0 %v306, 4
      %v541 = vpop.permute.xlu0 %540
      %542 = vrot.lane.b32.xlu0 %v307, 4
      %v543 = vpop.permute.xlu0 %542
      %544 = vrot.lane.b32.xlu0 %v308, 4
      %v545 = vpop.permute.xlu0 %544
      %546 = vrot.lane.b32.xlu0 %v309, 4
      %v547 = vpop.permute.xlu0 %546
      %548 = vrot.lane.b32.xlu0 %v310, 4
      %v549 = vpop.permute.xlu0 %548
      %550 = vrot.lane.b32.xlu0 %v311, 4
      %v551 = vpop.permute.xlu0 %550
      %552 = vrot.lane.b32.xlu0 %v312, 4
      %v553 = vpop.permute.xlu0 %552
      %554 = vrot.lane.b32.xlu0 %v313, 4
      %v555 = vpop.permute.xlu0 %554
      %556 = vrot.lane.b32.xlu0 %v314, 4
      %v557 = vpop.permute.xlu0 %556
      %558 = vrot.lane.b32.xlu0 %v315, 4
      %v559 = vpop.permute.xlu0 %558
      %560 = vrot.lane.b32.xlu0 %v316, 4
      %v561 = vpop.permute.xlu0 %560
      %562 = vrot.lane.b32.xlu0 %v317, 4
      %v563 = vpop.permute.xlu0 %562
      %564 = vrot.lane.b32.xlu0 %v318, 4
      %v565 = vpop.permute.xlu0 %564
      %566 = vrot.lane.b32.xlu0 %v319, 4
      %v567 = vpop.permute.xlu0 %566
      %568 = vrot.lane.b32.xlu0 %v320, 4
      %v569 = vpop.permute.xlu0 %568
      %570 = vrot.lane.b32.xlu0 %v321, 4
      %v571 = vpop.permute.xlu0 %570
      %572 = vrot.lane.b32.xlu0 %v322, 4
      %v573 = vpop.permute.xlu0 %572
      %574 = vrot.lane.b32.xlu0 %v323, 4
      %v575 = vpop.permute.xlu0 %574
      %576 = vrot.lane.b32.xlu0 %v324, 4
      %v577 = vpop.permute.xlu0 %576
      %578 = vrot.lane.b32.xlu0 %v325, 4
      %v579 = vpop.permute.xlu0 %578
      %580 = vrot.lane.b32.xlu0 %v326, 4
      %v581 = vpop.permute.xlu0 %580
      %582 = vrot.lane.b32.xlu0 %v327, 4
      %v583 = vpop.permute.xlu0 %582
      %584 = vrot.lane.b32.xlu0 %v328, 4
      %v585 = vpop.permute.xlu0 %584
      %650 = vrot.lane.b32.xlu0 %v232, 8
      %v651 = vpop.permute.xlu0 %650
      %652 = vrot.lane.b32.xlu0 %v233, 8
      %v653 = vpop.permute.xlu0 %652
      %654 = vrot.lane.b32.xlu0 %v234, 8
      %v655 = vpop.permute.xlu0 %654
      %656 = vrot.lane.b32.xlu0 %v235, 8
      %v657 = vpop.permute.xlu0 %656
      %658 = vrot.lane.b32.xlu0 %v236, 8
      %v659 = vpop.permute.xlu0 %658
      %660 = vrot.lane.b32.xlu0 %v237, 8
      %v661 = vpop.permute.xlu0 %660
      %662 = vrot.lane.b32.xlu0 %v238, 8
      %v663 = vpop.permute.xlu0 %662
      %664 = vrot.lane.b32.xlu0 %v239, 8
      %v665 = vpop.permute.xlu0 %664
      %666 = vrot.lane.b32.xlu0 %v240, 8
      %v667 = vpop.permute.xlu0 %666
      %668 = vrot.lane.b32.xlu0 %v241, 8
      %v669 = vpop.permute.xlu0 %668
      %670 = vrot.lane.b32.xlu0 %v242, 8
      %v671 = vpop.permute.xlu0 %670
      %672 = vrot.lane.b32.xlu0 %v243, 8
      %v673 = vpop.permute.xlu0 %672
      %674 = vrot.lane.b32.xlu0 %v244, 8
      %v675 = vpop.permute.xlu0 %674
      %676 = vrot.lane.b32.xlu0 %v245, 8
      %v677 = vpop.permute.xlu0 %676
      %678 = vrot.lane.b32.xlu0 %v246, 8
      %v679 = vpop.permute.xlu0 %678
      %680 = vrot.lane.b32.xlu0 %v247, 8
      %v681 = vpop.permute.xlu0 %680
      %682 = vrot.lane.b32.xlu0 %v248, 8
      %v683 = vpop.permute.xlu0 %682
      %684 = vrot.lane.b32.xlu0 %v249, 8
      %v685 = vpop.permute.xlu0 %684
      %686 = vrot.lane.b32.xlu0 %v250, 8
      %v687 = vpop.permute.xlu0 %686
      %688 = vrot.lane.b32.xlu0 %v251, 8
      %v689 = vpop.permute.xlu0 %688
      %690 = vrot.lane.b32.xlu0 %v252, 8
      %v691 = vpop.permute.xlu0 %690
      %692 = vrot.lane.b32.xlu0 %v253, 8
      %v693 = vpop.permute.xlu0 %692
      %694 = vrot.lane.b32.xlu0 %v254, 8
      %v695 = vpop.permute.xlu0 %694
      %696 = vrot.lane.b32.xlu0 %v255, 8
      %v697 = vpop.permute.xlu0 %696
      %698 = vrot.lane.b32.xlu0 %v256, 8
      %v699 = vpop.permute.xlu0 %698
      %700 = vrot.lane.b32.xlu0 %v257, 8
      %v701 = vpop.permute.xlu0 %700
      %702 = vrot.lane.b32.xlu0 %v258, 8
      %v703 = vpop.permute.xlu0 %702
      %704 = vrot.lane.b32.xlu0 %v259, 8
      %v705 = vpop.permute.xlu0 %704
      %706 = vrot.lane.b32.xlu0 %v260, 8
      %v707 = vpop.permute.xlu0 %706
      %708 = vrot.lane.b32.xlu0 %v261, 8
      %v709 = vpop.permute.xlu0 %708
      %710 = vrot.lane.b32.xlu0 %v262, 8
      %v711 = vpop.permute.xlu0 %710
      %712 = vrot.lane.b32.xlu0 %v263, 8
      %v713 = vpop.permute.xlu0 %712
      %778 = vrot.lane.b32.xlu0 %v200, 12
      %v779 = vpop.permute.xlu0 %778
      %780 = vrot.lane.b32.xlu0 %v201, 12
      %v781 = vpop.permute.xlu0 %780
      %782 = vrot.lane.b32.xlu0 %v202, 12
      %v783 = vpop.permute.xlu0 %782
      %784 = vrot.lane.b32.xlu0 %v203, 12
      %v785 = vpop.permute.xlu0 %784
      %786 = vrot.lane.b32.xlu0 %v204, 12
      %v787 = vpop.permute.xlu0 %786
      %788 = vrot.lane.b32.xlu0 %v205, 12
      %v789 = vpop.permute.xlu0 %788
      %790 = vrot.lane.b32.xlu0 %v206, 12
      %v791 = vpop.permute.xlu0 %790
      %792 = vrot.lane.b32.xlu0 %v207, 12
      %v793 = vpop.permute.xlu0 %792
      %794 = vrot.lane.b32.xlu0 %v208, 12
      %v795 = vpop.permute.xlu0 %794
      %796 = vrot.lane.b32.xlu0 %v209, 12
      %v797 = vpop.permute.xlu0 %796
      %798 = vrot.lane.b32.xlu0 %v210, 12
      %v799 = vpop.permute.xlu0 %798
      %800 = vrot.lane.b32.xlu0 %v211, 12
      %v801 = vpop.permute.xlu0 %800
      %802 = vrot.lane.b32.xlu0 %v212, 12
      %v803 = vpop.permute.xlu0 %802
      %804 = vrot.lane.b32.xlu0 %v213, 12
      %v805 = vpop.permute.xlu0 %804
      %806 = vrot.lane.b32.xlu0 %v214, 12
      %v807 = vpop.permute.xlu0 %806
      %808 = vrot.lane.b32.xlu0 %v215, 12
      %v809 = vpop.permute.xlu0 %808
      %810 = vrot.lane.b32.xlu0 %v216, 12
      %v811 = vpop.permute.xlu0 %810
      %812 = vrot.lane.b32.xlu0 %v217, 12
      %v813 = vpop.permute.xlu0 %812
      %814 = vrot.lane.b32.xlu0 %v218, 12
      %v815 = vpop.permute.xlu0 %814
      %816 = vrot.lane.b32.xlu0 %v219, 12
      %v817 = vpop.permute.xlu0 %816
      %818 = vrot.lane.b32.xlu0 %v220, 12
      %v819 = vpop.permute.xlu0 %818
      %820 = vrot.lane.b32.xlu0 %v221, 12
      %v821 = vpop.permute.xlu0 %820
      %822 = vrot.lane.b32.xlu0 %v222, 12
      %v823 = vpop.permute.xlu0 %822
      %824 = vrot.lane.b32.xlu0 %v223, 12
      %v825 = vpop.permute.xlu0 %824
      %826 = vrot.lane.b32.xlu0 %v224, 12
      %v827 = vpop.permute.xlu0 %826
      %828 = vrot.lane.b32.xlu0 %v225, 12
      %v829 = vpop.permute.xlu0 %828
      %830 = vrot.lane.b32.xlu0 %v226, 12
      %v831 = vpop.permute.xlu0 %830
      %832 = vrot.lane.b32.xlu0 %v227, 12
      %v833 = vpop.permute.xlu0 %832
      %834 = vrot.lane.b32.xlu0 %v228, 12
      %v835 = vpop.permute.xlu0 %834
      %836 = vrot.lane.b32.xlu0 %v229, 12
      %v837 = vpop.permute.xlu0 %836
      %838 = vrot.lane.b32.xlu0 %v230, 12
      %v839 = vpop.permute.xlu0 %838
      %840 = vrot.lane.b32.xlu0 %v231, 12
      %v841 = vpop.permute.xlu0 %840
      %vm874 = vcmask 31744
      %v875 = vsel %vm874, %v329, %v523
      %v876 = vsel %vm874, %v330, %v525
      %v877 = vsel %vm874, %v331, %v527
      %v878 = vsel %vm874, %v332, %v529
      %v879 = vsel %vm874, %v333, %v531
      %v880 = vsel %vm874, %v334, %v533
      %v881 = vsel %vm874, %v335, %v535
      %v882 = vsel %vm874, %v336, %v537
      %v883 = vsel %vm874, %v337, %v539
      %v884 = vsel %vm874, %v338, %v541
      %v885 = vsel %vm874, %v339, %v543
      %v886 = vsel %vm874, %v340, %v545
      %v887 = vsel %vm874, %v341, %v547
      %v888 = vsel %vm874, %v342, %v549
      %v889 = vsel %vm874, %v343, %v551
      %v890 = vsel %vm874, %v344, %v553
      %v891 = vsel %vm874, %v345, %v555
      %v892 = vsel %vm874, %v346, %v557
      %v893 = vsel %vm874, %v347, %v559
      %v894 = vsel %vm874, %v348, %v561
      %v895 = vsel %vm874, %v349, %v563
      %v896 = vsel %vm874, %v350, %v565
      %v897 = vsel %vm874, %v351, %v567
      %v898 = vsel %vm874, %v352, %v569
      %v899 = vsel %vm874, %v353, %v571
      %v900 = vsel %vm874, %v354, %v573
      %v901 = vsel %vm874, %v355, %v575
      %v902 = vsel %vm874, %v356, %v577
      %v903 = vsel %vm874, %v357, %v579
      %v904 = vsel %vm874, %v358, %v581
      %v905 = vsel %vm874, %v359, %v583
      %v906 = vsel %vm874, %v360, %v585
      %vm907 = vcmask 64512
      %v908 = vsel %vm907, %v875, %v651
      %v909 = vsel %vm907, %v876, %v653
      %v910 = vsel %vm907, %v877, %v655
      %v911 = vsel %vm907, %v878, %v657
      %v912 = vsel %vm907, %v879, %v659
      %v913 = vsel %vm907, %v880, %v661
      %v914 = vsel %vm907, %v881, %v663
      %v915 = vsel %vm907, %v882, %v665
      %v916 = vsel %vm907, %v883, %v667
      %v917 = vsel %vm907, %v884, %v669
      %v918 = vsel %vm907, %v885, %v671
      %v919 = vsel %vm907, %v886, %v673
      %v920 = vsel %vm907, %v887, %v675
      %v921 = vsel %vm907, %v888, %v677
      %v922 = vsel %vm907, %v889, %v679
      %v923 = vsel %vm907, %v890, %v681
      %v924 = vsel %vm907, %v891, %v683
      %v925 = vsel %vm907, %v892, %v685
      %v926 = vsel %vm907, %v893, %v687
      %v927 = vsel %vm907, %v894, %v689
      %v928 = vsel %vm907, %v895, %v691
      %v929 = vsel %vm907, %v896, %v693
      %v930 = vsel %vm907, %v897, %v695
      %v931 = vsel %vm907, %v898, %v697
      %v932 = vsel %vm907, %v899, %v699
      %v933 = vsel %vm907, %v900, %v701
      %v934 = vsel %vm907, %v901, %v703
      %v935 = vsel %vm907, %v902, %v705
      %v936 = vsel %vm907, %v903, %v707
      %v937 = vsel %vm907, %v904, %v709
      %v938 = vsel %vm907, %v905, %v711
      %v939 = vsel %vm907, %v906, %v713
      %vm940 = vcmask 97280
      %v941 = vsel %vm940, %v908, %v779
      %v942 = vsel %vm940, %v909, %v781
      %v943 = vsel %vm940, %v910, %v783
      %v944 = vsel %vm940, %v911, %v785
      %v945 = vsel %vm940, %v912, %v787
      %v946 = vsel %vm940, %v913, %v789
      %v947 = vsel %vm940, %v914, %v791
      %v948 = vsel %vm940, %v915, %v793
      %v949 = vsel %vm940, %v916, %v795
      %v950 = vsel %vm940, %v917, %v797
      %v951 = vsel %vm940, %v918, %v799
      %v952 = vsel %vm940, %v919, %v801
      %v953 = vsel %vm940, %v920, %v803
      %v954 = vsel %vm940, %v921, %v805
      %v955 = vsel %vm940, %v922, %v807
      %v956 = vsel %vm940, %v923, %v809
      %v957 = vsel %vm940, %v924, %v811
      %v958 = vsel %vm940, %v925, %v813
      %v959 = vsel %vm940, %v926, %v815
      %v960 = vsel %vm940, %v927, %v817
      %v961 = vsel %vm940, %v928, %v819
      %v962 = vsel %vm940, %v929, %v821
      %v963 = vsel %vm940, %v930, %v823
      %v964 = vsel %vm940, %v931, %v825
      %v965 = vsel %vm940, %v932, %v827
      %v966 = vsel %vm940, %v933, %v829
      %v967 = vsel %vm940, %v934, %v831
      %v968 = vsel %vm940, %v935, %v833
      %v969 = vsel %vm940, %v936, %v835
      %v970 = vsel %vm940, %v937, %v837
      %v971 = vsel %vm940, %v938, %v839
      %v972 = vsel %vm940, %v939, %v841
      %v973 = vld [vmem:[%s1] sm:$0xff]
      %v974 = vld [vmem:[%s1 + $0x8] sm:$0xff]
      %vm975 = vcmask 130048
      %v977 = vsel %vm975, %v941, 0
      %v980 = vsel %vm975, %v942, 0
      %v983 = vsel %vm975, %v943, 0
      %v986 = vsel %vm975, %v944, 0
      %v989 = vsel %vm975, %v945, 0
      %v992 = vsel %vm975, %v946, 0
      %v995 = vsel %vm975, %v947, 0
      %v998 = vsel %vm975, %v948, 0
      %v1001 = vsel %vm975, %v949, 0
      %v1004 = vsel %vm975, %v950, 0
      %v1007 = vsel %vm975, %v951, 0
      %v1010 = vsel %vm975, %v952, 0
      %v1013 = vsel %vm975, %v953, 0
      %v1016 = vsel %vm975, %v954, 0
      %v1019 = vsel %vm975, %v955, 0
      %v1022 = vsel %vm975, %v956, 0
      %v1025 = vsel %vm975, %v957, 0
      %v1028 = vsel %vm975, %v958, 0
      %v1031 = vsel %vm975, %v959, 0
      %v1034 = vsel %vm975, %v960, 0
      %v1037 = vsel %vm975, %v961, 0
      %v1040 = vsel %vm975, %v962, 0
      %v1043 = vsel %vm975, %v963, 0
      %v1046 = vsel %vm975, %v964, 0
      %v1049 = vsel %vm975, %v965, 0
      %v1052 = vsel %vm975, %v966, 0
      %v1055 = vsel %vm975, %v967, 0
      %v1058 = vsel %vm975, %v968, 0
      %v1061 = vsel %vm975, %v969, 0
      %v1064 = vsel %vm975, %v970, 0
      %v1067 = vsel %vm975, %v971, 0
      %v1070 = vsel %vm975, %v972, 0
      %1072 = vmatpush.msra.mxu0 0.0
      %1073 = vmatpush.msra.mxu0 0.0
      %1074 = vmatpush.msra.mxu0 0.0
      %1075 = vmatpush.msra.mxu0 0.0
      %1076 = vmatpush.msra.mxu0 0.0
      %1077 = vmatpush.msra.mxu0 0.0
      %1078 = vmatpush.msra.mxu0 0.0
      %1079 = vmatpush.msra.mxu0 0.0
      %1080 = vmatpush.msra.mxu0 0.0
      %1081 = vmatpush.msra.mxu0 0.0
      %1082 = vmatpush.msra.mxu0 0.0
      %1083 = vmatpush.msra.mxu0 0.0
      %1084 = vmatpush.msra.mxu0 0.0
      %1085 = vmatpush.msra.mxu0 0.0
      %1086 = vmatpush.msra.mxu0 %v974
      %1087 = vmatpush.msra.mxu0 %v973
      %1088 = vmatmul.f32.gmra.mxu0 %v977
      %v1089 = vpop.f32.mrf.mxu0
      %v1090 = vadd.f32 0.0, %v1089
      %1091 = vmatmul.f32.gmra.mxu0 %v980
      %v1092 = vpop.f32.mrf.mxu0
      %v1093 = vadd.f32 0.0, %v1092
      %1094 = vmatmul.f32.gmra.mxu0 %v983
      %v1095 = vpop.f32.mrf.mxu0
      %v1096 = vadd.f32 0.0, %v1095
      %1097 = vmatmul.f32.gmra.mxu0 %v986
      %v1098 = vpop.f32.mrf.mxu0
      %v1099 = vadd.f32 0.0, %v1098
      %1100 = vmatmul.f32.gmra.mxu0 %v989
      %v1101 = vpop.f32.mrf.mxu0
      %v1102 = vadd.f32 0.0, %v1101
      %1103 = vmatmul.f32.gmra.mxu0 %v992
      %v1104 = vpop.f32.mrf.mxu0
      %v1105 = vadd.f32 0.0, %v1104
      %1106 = vmatmul.f32.gmra.mxu0 %v995
      %v1107 = vpop.f32.mrf.mxu0
      %v1108 = vadd.f32 0.0, %v1107
      %1109 = vmatmul.f32.gmra.mxu0 %v998
      %v1110 = vpop.f32.mrf.mxu0
      %v1111 = vadd.f32 0.0, %v1110
      %1112 = vmatmul.f32.gmra.mxu0 %v1001
      %v1113 = vpop.f32.mrf.mxu0
      %v1114 = vadd.f32 0.0, %v1113
      %1115 = vmatmul.f32.gmra.mxu0 %v1004
      %v1116 = vpop.f32.mrf.mxu0
      %v1117 = vadd.f32 0.0, %v1116
      %1118 = vmatmul.f32.gmra.mxu0 %v1007
      %v1119 = vpop.f32.mrf.mxu0
      %v1120 = vadd.f32 0.0, %v1119
      %1121 = vmatmul.f32.gmra.mxu0 %v1010
      %v1122 = vpop.f32.mrf.mxu0
      %v1123 = vadd.f32 0.0, %v1122
      %1124 = vmatmul.f32.gmra.mxu0 %v1013
      %v1125 = vpop.f32.mrf.mxu0
      %v1126 = vadd.f32 0.0, %v1125
      %1127 = vmatmul.f32.gmra.mxu0 %v1016
      %v1128 = vpop.f32.mrf.mxu0
      %v1129 = vadd.f32 0.0, %v1128
      %1130 = vmatmul.f32.gmra.mxu0 %v1019
      %v1131 = vpop.f32.mrf.mxu0
      %v1132 = vadd.f32 0.0, %v1131
      %1133 = vmatmul.f32.gmra.mxu0 %v1022
      %v1134 = vpop.f32.mrf.mxu0
      %v1135 = vadd.f32 0.0, %v1134
      %1136 = vmatmul.f32.gmra.mxu0 %v1025
      %v1137 = vpop.f32.mrf.mxu0
      %v1138 = vadd.f32 0.0, %v1137
      %1139 = vmatmul.f32.gmra.mxu0 %v1028
      %v1140 = vpop.f32.mrf.mxu0
      %v1141 = vadd.f32 0.0, %v1140
      %1142 = vmatmul.f32.gmra.mxu0 %v1031
      %v1143 = vpop.f32.mrf.mxu0
      %v1144 = vadd.f32 0.0, %v1143
      %1145 = vmatmul.f32.gmra.mxu0 %v1034
      %v1146 = vpop.f32.mrf.mxu0
      %v1147 = vadd.f32 0.0, %v1146
      %1148 = vmatmul.f32.gmra.mxu0 %v1037
      %v1149 = vpop.f32.mrf.mxu0
      %v1150 = vadd.f32 0.0, %v1149
      %1151 = vmatmul.f32.gmra.mxu0 %v1040
      %v1152 = vpop.f32.mrf.mxu0
      %v1153 = vadd.f32 0.0, %v1152
      %1154 = vmatmul.f32.gmra.mxu0 %v1043
      %v1155 = vpop.f32.mrf.mxu0
      %v1156 = vadd.f32 0.0, %v1155
      %1157 = vmatmul.f32.gmra.mxu0 %v1046
      %v1158 = vpop.f32.mrf.mxu0
      %v1159 = vadd.f32 0.0, %v1158
      %1160 = vmatmul.f32.gmra.mxu0 %v1049
      %v1161 = vpop.f32.mrf.mxu0
      %v1162 = vadd.f32 0.0, %v1161
      %1163 = vmatmul.f32.gmra.mxu0 %v1052
      %v1164 = vpop.f32.mrf.mxu0
      %v1165 = vadd.f32 0.0, %v1164
      %1166 = vmatmul.f32.gmra.mxu0 %v1055
      %v1167 = vpop.f32.mrf.mxu0
      %v1168 = vadd.f32 0.0, %v1167
      %1169 = vmatmul.f32.gmra.mxu0 %v1058
      %v1170 = vpop.f32.mrf.mxu0
      %v1171 = vadd.f32 0.0, %v1170
      %1172 = vmatmul.f32.gmra.mxu0 %v1061
      %v1173 = vpop.f32.mrf.mxu0
      %v1174 = vadd.f32 0.0, %v1173
      %1175 = vmatmul.f32.gmra.mxu0 %v1064
      %v1176 = vpop.f32.mrf.mxu0
      %v1177 = vadd.f32 0.0, %v1176
      %1178 = vmatmul.f32.gmra.mxu0 %v1067
      %v1179 = vpop.f32.mrf.mxu0
      %v1180 = vadd.f32 0.0, %v1179
      %1181 = vmatmul.f32.gmra.mxu0 %v1070
      %v1182 = vpop.f32.mrf.mxu0
      %v1183 = vadd.f32 0.0, %v1182
      %1184 = vdwg.mxu0
      %v1186 = vperm.slane %v198, 0
      %v1188 = vmul.f32 %v1090, %v1186
      %v1189 = vmul.f32 %v1093, %v1186
      %v1190 = vmul.f32 %v1096, %v1186
      %v1191 = vmul.f32 %v1099, %v1186
      %v1192 = vmul.f32 %v1102, %v1186
      %v1193 = vmul.f32 %v1105, %v1186
      %v1194 = vmul.f32 %v1108, %v1186
      %v1195 = vmul.f32 %v1111, %v1186
      %v1196 = vmul.f32 %v1114, %v1186
      %v1197 = vmul.f32 %v1117, %v1186
      %v1198 = vmul.f32 %v1120, %v1186
      %v1199 = vmul.f32 %v1123, %v1186
      %v1200 = vmul.f32 %v1126, %v1186
      %v1201 = vmul.f32 %v1129, %v1186
      %v1202 = vmul.f32 %v1132, %v1186
      %v1203 = vmul.f32 %v1135, %v1186
      %v1204 = vmul.f32 %v1138, %v1186
      %v1205 = vmul.f32 %v1141, %v1186
      %v1206 = vmul.f32 %v1144, %v1186
      %v1207 = vmul.f32 %v1147, %v1186
      %v1208 = vmul.f32 %v1150, %v1186
      %v1209 = vmul.f32 %v1153, %v1186
      %v1210 = vmul.f32 %v1156, %v1186
      %v1211 = vmul.f32 %v1159, %v1186
      %v1212 = vmul.f32 %v1162, %v1186
      %v1213 = vmul.f32 %v1165, %v1186
      %v1214 = vmul.f32 %v1168, %v1186
      %v1215 = vmul.f32 %v1171, %v1186
      %v1216 = vmul.f32 %v1174, %v1186
      %v1217 = vmul.f32 %v1177, %v1186
      %v1218 = vmul.f32 %v1180, %v1186
      %v1219 = vmul.f32 %v1183, %v1186
      %v1221 = vperm.slane %v199, 0
      %v1223 = vadd.f32 %v1188, %v1221
      %v1224 = vadd.f32 %v1189, %v1221
      %v1225 = vadd.f32 %v1190, %v1221
      %v1226 = vadd.f32 %v1191, %v1221
      %v1227 = vadd.f32 %v1192, %v1221
      %v1228 = vadd.f32 %v1193, %v1221
      %v1229 = vadd.f32 %v1194, %v1221
      %v1230 = vadd.f32 %v1195, %v1221
      %v1231 = vadd.f32 %v1196, %v1221
      %v1232 = vadd.f32 %v1197, %v1221
      %v1233 = vadd.f32 %v1198, %v1221
      %v1234 = vadd.f32 %v1199, %v1221
      %v1235 = vadd.f32 %v1200, %v1221
      %v1236 = vadd.f32 %v1201, %v1221
      %v1237 = vadd.f32 %v1202, %v1221
      %v1238 = vadd.f32 %v1203, %v1221
      %v1239 = vadd.f32 %v1204, %v1221
      %v1240 = vadd.f32 %v1205, %v1221
      %v1241 = vadd.f32 %v1206, %v1221
      %v1242 = vadd.f32 %v1207, %v1221
      %v1243 = vadd.f32 %v1208, %v1221
      %v1244 = vadd.f32 %v1209, %v1221
      %v1245 = vadd.f32 %v1210, %v1221
      %v1246 = vadd.f32 %v1211, %v1221
      %v1247 = vadd.f32 %v1212, %v1221
      %v1248 = vadd.f32 %v1213, %v1221
      %v1249 = vadd.f32 %v1214, %v1221
      %v1250 = vadd.f32 %v1215, %v1221
      %v1251 = vadd.f32 %v1216, %v1221
      %v1252 = vadd.f32 %v1217, %v1221
      %v1253 = vadd.f32 %v1218, %v1221
      %v1254 = vadd.f32 %v1219, %v1221
      %vm1255 = vcmp.ge.f32.partialorder %v1223, 0.0
      %vm1256 = vcmp.ge.f32.partialorder %v1224, 0.0
      %vm1257 = vcmp.ge.f32.partialorder %v1225, 0.0
      %vm1258 = vcmp.ge.f32.partialorder %v1226, 0.0
      %vm1259 = vcmp.ge.f32.partialorder %v1227, 0.0
      %vm1260 = vcmp.ge.f32.partialorder %v1228, 0.0
      %vm1261 = vcmp.ge.f32.partialorder %v1229, 0.0
      %vm1262 = vcmp.ge.f32.partialorder %v1230, 0.0
      %vm1263 = vcmp.ge.f32.partialorder %v1231, 0.0
      %vm1264 = vcmp.ge.f32.partialorder %v1232, 0.0
      %vm1265 = vcmp.ge.f32.partialorder %v1233, 0.0
      %vm1266 = vcmp.ge.f32.partialorder %v1234, 0.0
      %vm1267 = vcmp.ge.f32.partialorder %v1235, 0.0
      %vm1268 = vcmp.ge.f32.partialorder %v1236, 0.0
      %vm1269 = vcmp.ge.f32.partialorder %v1237, 0.0
      %vm1270 = vcmp.ge.f32.partialorder %v1238, 0.0
      %vm1271 = vcmp.ge.f32.partialorder %v1239, 0.0
      %vm1272 = vcmp.ge.f32.partialorder %v1240, 0.0
      %vm1273 = vcmp.ge.f32.partialorder %v1241, 0.0
      %vm1274 = vcmp.ge.f32.partialorder %v1242, 0.0
      %vm1275 = vcmp.ge.f32.partialorder %v1243, 0.0
      %vm1276 = vcmp.ge.f32.partialorder %v1244, 0.0
      %vm1277 = vcmp.ge.f32.partialorder %v1245, 0.0
      %vm1278 = vcmp.ge.f32.partialorder %v1246, 0.0
      %vm1279 = vcmp.ge.f32.partialorder %v1247, 0.0
      %vm1280 = vcmp.ge.f32.partialorder %v1248, 0.0
      %vm1281 = vcmp.ge.f32.partialorder %v1249, 0.0
      %vm1282 = vcmp.ge.f32.partialorder %v1250, 0.0
      %vm1283 = vcmp.ge.f32.partialorder %v1251, 0.0
      %vm1284 = vcmp.ge.f32.partialorder %v1252, 0.0
      %vm1285 = vcmp.ge.f32.partialorder %v1253, 0.0
      %vm1286 = vcmp.ge.f32.partialorder %v1254, 0.0
      %v1287 = vmul.f32 %v1223, 0.2
      %v1288 = vmul.f32 %v1224, 0.2
      %v1289 = vmul.f32 %v1225, 0.2
      %v1290 = vmul.f32 %v1226, 0.2
      %v1291 = vmul.f32 %v1227, 0.2
      %v1292 = vmul.f32 %v1228, 0.2
      %v1293 = vmul.f32 %v1229, 0.2
      %v1294 = vmul.f32 %v1230, 0.2
      %v1295 = vmul.f32 %v1231, 0.2
      %v1296 = vmul.f32 %v1232, 0.2
      %v1297 = vmul.f32 %v1233, 0.2
      %v1298 = vmul.f32 %v1234, 0.2
      %v1299 = vmul.f32 %v1235, 0.2
      %v1300 = vmul.f32 %v1236, 0.2
      %v1301 = vmul.f32 %v1237, 0.2
      %v1302 = vmul.f32 %v1238, 0.2
      %v1303 = vmul.f32 %v1239, 0.2
      %v1304 = vmul.f32 %v1240, 0.2
      %v1305 = vmul.f32 %v1241, 0.2
      %v1306 = vmul.f32 %v1242, 0.2
      %v1307 = vmul.f32 %v1243, 0.2
      %v1308 = vmul.f32 %v1244, 0.2
      %v1309 = vmul.f32 %v1245, 0.2
      %v1310 = vmul.f32 %v1246, 0.2
      %v1311 = vmul.f32 %v1247, 0.2
      %v1312 = vmul.f32 %v1248, 0.2
      %v1313 = vmul.f32 %v1249, 0.2
      %v1314 = vmul.f32 %v1250, 0.2
      %v1315 = vmul.f32 %v1251, 0.2
      %v1316 = vmul.f32 %v1252, 0.2
      %v1317 = vmul.f32 %v1253, 0.2
      %v1318 = vmul.f32 %v1254, 0.2
      %v1319 = vsel %vm1255, %v1223, %v1287
      %v1320 = vsel %vm1256, %v1224, %v1288
      %v1321 = vsel %vm1257, %v1225, %v1289
      %v1322 = vsel %vm1258, %v1226, %v1290
      %v1323 = vsel %vm1259, %v1227, %v1291
      %v1324 = vsel %vm1260, %v1228, %v1292
      %v1325 = vsel %vm1261, %v1229, %v1293
      %v1326 = vsel %vm1262, %v1230, %v1294
      %v1327 = vsel %vm1263, %v1231, %v1295
      %v1328 = vsel %vm1264, %v1232, %v1296
      %v1329 = vsel %vm1265, %v1233, %v1297
      %v1330 = vsel %vm1266, %v1234, %v1298
      %v1331 = vsel %vm1267, %v1235, %v1299
      %v1332 = vsel %vm1268, %v1236, %v1300
      %v1333 = vsel %vm1269, %v1237, %v1301
      %v1334 = vsel %vm1270, %v1238, %v1302
      %v1335 = vsel %vm1271, %v1239, %v1303
      %v1336 = vsel %vm1272, %v1240, %v1304
      %v1337 = vsel %vm1273, %v1241, %v1305
      %v1338 = vsel %vm1274, %v1242, %v1306
      %v1339 = vsel %vm1275, %v1243, %v1307
      %v1340 = vsel %vm1276, %v1244, %v1308
      %v1341 = vsel %vm1277, %v1245, %v1309
      %v1342 = vsel %vm1278, %v1246, %v1310
      %v1343 = vsel %vm1279, %v1247, %v1311
      %v1344 = vsel %vm1280, %v1248, %v1312
      %v1345 = vsel %vm1281, %v1249, %v1313
      %v1346 = vsel %vm1282, %v1250, %v1314
      %v1347 = vsel %vm1283, %v1251, %v1315
      %v1348 = vsel %vm1284, %v1252, %v1316
      %v1349 = vsel %vm1285, %v1253, %v1317
      %v1350 = vsel %vm1286, %v1254, %v1318
      %1383 = vrot.lane.b32.xlu0 %v361, 4
      %v1384 = vpop.permute.xlu0 %1383
      %1385 = vrot.lane.b32.xlu0 %v362, 4
      %v1386 = vpop.permute.xlu0 %1385
      %1387 = vrot.lane.b32.xlu0 %v363, 4
      %v1388 = vpop.permute.xlu0 %1387
      %1389 = vrot.lane.b32.xlu0 %v364, 4
      %v1390 = vpop.permute.xlu0 %1389
      %1391 = vrot.lane.b32.xlu0 %v365, 4
      %v1392 = vpop.permute.xlu0 %1391
      %1393 = vrot.lane.b32.xlu0 %v366, 4
      %v1394 = vpop.permute.xlu0 %1393
      %1395 = vrot.lane.b32.xlu0 %v367, 4
      %v1396 = vpop.permute.xlu0 %1395
      %1397 = vrot.lane.b32.xlu0 %v368, 4
      %v1398 = vpop.permute.xlu0 %1397
      %1399 = vrot.lane.b32.xlu0 %v369, 4
      %v1400 = vpop.permute.xlu0 %1399
      %1401 = vrot.lane.b32.xlu0 %v370, 4
      %v1402 = vpop.permute.xlu0 %1401
      %1403 = vrot.lane.b32.xlu0 %v371, 4
      %v1404 = vpop.permute.xlu0 %1403
      %1405 = vrot.lane.b32.xlu0 %v372, 4
      %v1406 = vpop.permute.xlu0 %1405
      %1407 = vrot.lane.b32.xlu0 %v373, 4
      %v1408 = vpop.permute.xlu0 %1407
      %1409 = vrot.lane.b32.xlu0 %v374, 4
      %v1410 = vpop.permute.xlu0 %1409
      %1411 = vrot.lane.b32.xlu0 %v375, 4
      %v1412 = vpop.permute.xlu0 %1411
      %1413 = vrot.lane.b32.xlu0 %v376, 4
      %v1414 = vpop.permute.xlu0 %1413
      %1415 = vrot.lane.b32.xlu0 %v377, 4
      %v1416 = vpop.permute.xlu0 %1415
      %1417 = vrot.lane.b32.xlu0 %v378, 4
      %v1418 = vpop.permute.xlu0 %1417
      %1419 = vrot.lane.b32.xlu0 %v379, 4
      %v1420 = vpop.permute.xlu0 %1419
      %1421 = vrot.lane.b32.xlu0 %v380, 4
      %v1422 = vpop.permute.xlu0 %1421
      %1423 = vrot.lane.b32.xlu0 %v381, 4
      %v1424 = vpop.permute.xlu0 %1423
      %1425 = vrot.lane.b32.xlu0 %v382, 4
      %v1426 = vpop.permute.xlu0 %1425
      %1427 = vrot.lane.b32.xlu0 %v383, 4
      %v1428 = vpop.permute.xlu0 %1427
      %1429 = vrot.lane.b32.xlu0 %v384, 4
      %v1430 = vpop.permute.xlu0 %1429
      %1431 = vrot.lane.b32.xlu0 %v385, 4
      %v1432 = vpop.permute.xlu0 %1431
      %1433 = vrot.lane.b32.xlu0 %v386, 4
      %v1434 = vpop.permute.xlu0 %1433
      %1435 = vrot.lane.b32.xlu0 %v387, 4
      %v1436 = vpop.permute.xlu0 %1435
      %1437 = vrot.lane.b32.xlu0 %v388, 4
      %v1438 = vpop.permute.xlu0 %1437
      %1439 = vrot.lane.b32.xlu0 %v389, 4
      %v1440 = vpop.permute.xlu0 %1439
      %1441 = vrot.lane.b32.xlu0 %v390, 4
      %v1442 = vpop.permute.xlu0 %1441
      %1443 = vrot.lane.b32.xlu0 %v391, 4
      %v1444 = vpop.permute.xlu0 %1443
      %1445 = vrot.lane.b32.xlu0 %v392, 4
      %v1446 = vpop.permute.xlu0 %1445
      %1511 = vrot.lane.b32.xlu0 %v264, 12
      %v1512 = vpop.permute.xlu0 %1511
      %1513 = vrot.lane.b32.xlu0 %v265, 12
      %v1514 = vpop.permute.xlu0 %1513
      %1515 = vrot.lane.b32.xlu0 %v266, 12
      %v1516 = vpop.permute.xlu0 %1515
      %1517 = vrot.lane.b32.xlu0 %v267, 12
      %v1518 = vpop.permute.xlu0 %1517
      %1519 = vrot.lane.b32.xlu0 %v268, 12
      %v1520 = vpop.permute.xlu0 %1519
      %1521 = vrot.lane.b32.xlu0 %v269, 12
      %v1522 = vpop.permute.xlu0 %1521
      %1523 = vrot.lane.b32.xlu0 %v270, 12
      %v1524 = vpop.permute.xlu0 %1523
      %1525 = vrot.lane.b32.xlu0 %v271, 12
      %v1526 = vpop.permute.xlu0 %1525
      %1527 = vrot.lane.b32.xlu0 %v272, 12
      %v1528 = vpop.permute.xlu0 %1527
      %1529 = vrot.lane.b32.xlu0 %v273, 12
      %v1530 = vpop.permute.xlu0 %1529
      %1531 = vrot.lane.b32.xlu0 %v274, 12
      %v1532 = vpop.permute.xlu0 %1531
      %1533 = vrot.lane.b32.xlu0 %v275, 12
      %v1534 = vpop.permute.xlu0 %1533
      %1535 = vrot.lane.b32.xlu0 %v276, 12
      %v1536 = vpop.permute.xlu0 %1535
      %1537 = vrot.lane.b32.xlu0 %v277, 12
      %v1538 = vpop.permute.xlu0 %1537
      %1539 = vrot.lane.b32.xlu0 %v278, 12
      %v1540 = vpop.permute.xlu0 %1539
      %1541 = vrot.lane.b32.xlu0 %v279, 12
      %v1542 = vpop.permute.xlu0 %1541
      %1543 = vrot.lane.b32.xlu0 %v280, 12
      %v1544 = vpop.permute.xlu0 %1543
      %1545 = vrot.lane.b32.xlu0 %v281, 12
      %v1546 = vpop.permute.xlu0 %1545
      %1547 = vrot.lane.b32.xlu0 %v282, 12
      %v1548 = vpop.permute.xlu0 %1547
      %1549 = vrot.lane.b32.xlu0 %v283, 12
      %v1550 = vpop.permute.xlu0 %1549
      %1551 = vrot.lane.b32.xlu0 %v284, 12
      %v1552 = vpop.permute.xlu0 %1551
      %1553 = vrot.lane.b32.xlu0 %v285, 12
      %v1554 = vpop.permute.xlu0 %1553
      %1555 = vrot.lane.b32.xlu0 %v286, 12
      %v1556 = vpop.permute.xlu0 %1555
      %1557 = vrot.lane.b32.xlu0 %v287, 12
      %v1558 = vpop.permute.xlu0 %1557
      %1559 = vrot.lane.b32.xlu0 %v288, 12
      %v1560 = vpop.permute.xlu0 %1559
      %1561 = vrot.lane.b32.xlu0 %v289, 12
      %v1562 = vpop.permute.xlu0 %1561
      %1563 = vrot.lane.b32.xlu0 %v290, 12
      %v1564 = vpop.permute.xlu0 %1563
      %1565 = vrot.lane.b32.xlu0 %v291, 12
      %v1566 = vpop.permute.xlu0 %1565
      %1567 = vrot.lane.b32.xlu0 %v292, 12
      %v1568 = vpop.permute.xlu0 %1567
      %1569 = vrot.lane.b32.xlu0 %v293, 12
      %v1570 = vpop.permute.xlu0 %1569
      %1571 = vrot.lane.b32.xlu0 %v294, 12
      %v1572 = vpop.permute.xlu0 %1571
      %1573 = vrot.lane.b32.xlu0 %v295, 12
      %v1574 = vpop.permute.xlu0 %1573
      %v1607 = vsel %vm874, %v329, %v1384
      %v1608 = vsel %vm874, %v330, %v1386
      %v1609 = vsel %vm874, %v331, %v1388
      %v1610 = vsel %vm874, %v332, %v1390
      %v1611 = vsel %vm874, %v333, %v1392
      %v1612 = vsel %vm874, %v334, %v1394
      %v1613 = vsel %vm874, %v335, %v1396
      %v1614 = vsel %vm874, %v336, %v1398
      %v1615 = vsel %vm874, %v337, %v1400
      %v1616 = vsel %vm874, %v338, %v1402
      %v1617 = vsel %vm874, %v339, %v1404
      %v1618 = vsel %vm874, %v340, %v1406
      %v1619 = vsel %vm874, %v341, %v1408
      %v1620 = vsel %vm874, %v342, %v1410
      %v1621 = vsel %vm874, %v343, %v1412
      %v1622 = vsel %vm874, %v344, %v1414
      %v1623 = vsel %vm874, %v345, %v1416
      %v1624 = vsel %vm874, %v346, %v1418
      %v1625 = vsel %vm874, %v347, %v1420
      %v1626 = vsel %vm874, %v348, %v1422
      %v1627 = vsel %vm874, %v349, %v1424
      %v1628 = vsel %vm874, %v350, %v1426
      %v1629 = vsel %vm874, %v351, %v1428
      %v1630 = vsel %vm874, %v352, %v1430
      %v1631 = vsel %vm874, %v353, %v1432
      %v1632 = vsel %vm874, %v354, %v1434
      %v1633 = vsel %vm874, %v355, %v1436
      %v1634 = vsel %vm874, %v356, %v1438
      %v1635 = vsel %vm874, %v357, %v1440
      %v1636 = vsel %vm874, %v358, %v1442
      %v1637 = vsel %vm874, %v359, %v1444
      %v1638 = vsel %vm874, %v360, %v1446
      %v1639 = vsel %vm907, %v1607, %v651
      %v1640 = vsel %vm907, %v1608, %v653
      %v1641 = vsel %vm907, %v1609, %v655
      %v1642 = vsel %vm907, %v1610, %v657
      %v1643 = vsel %vm907, %v1611, %v659
      %v1644 = vsel %vm907, %v1612, %v661
      %v1645 = vsel %vm907, %v1613, %v663
      %v1646 = vsel %vm907, %v1614, %v665
      %v1647 = vsel %vm907, %v1615, %v667
      %v1648 = vsel %vm907, %v1616, %v669
      %v1649 = vsel %vm907, %v1617, %v671
      %v1650 = vsel %vm907, %v1618, %v673
      %v1651 = vsel %vm907, %v1619, %v675
      %v1652 = vsel %vm907, %v1620, %v677
      %v1653 = vsel %vm907, %v1621, %v679
      %v1654 = vsel %vm907, %v1622, %v681
      %v1655 = vsel %vm907, %v1623, %v683
      %v1656 = vsel %vm907, %v1624, %v685
      %v1657 = vsel %vm907, %v1625, %v687
      %v1658 = vsel %vm907, %v1626, %v689
      %v1659 = vsel %vm907, %v1627, %v691
      %v1660 = vsel %vm907, %v1628, %v693
      %v1661 = vsel %vm907, %v1629, %v695
      %v1662 = vsel %vm907, %v1630, %v697
      %v1663 = vsel %vm907, %v1631, %v699
      %v1664 = vsel %vm907, %v1632, %v701
      %v1665 = vsel %vm907, %v1633, %v703
      %v1666 = vsel %vm907, %v1634, %v705
      %v1667 = vsel %vm907, %v1635, %v707
      %v1668 = vsel %vm907, %v1636, %v709
      %v1669 = vsel %vm907, %v1637, %v711
      %v1670 = vsel %vm907, %v1638, %v713
      %v1671 = vsel %vm940, %v1639, %v1512
      %v1672 = vsel %vm940, %v1640, %v1514
      %v1673 = vsel %vm940, %v1641, %v1516
      %v1674 = vsel %vm940, %v1642, %v1518
      %v1675 = vsel %vm940, %v1643, %v1520
      %v1676 = vsel %vm940, %v1644, %v1522
      %v1677 = vsel %vm940, %v1645, %v1524
      %v1678 = vsel %vm940, %v1646, %v1526
      %v1679 = vsel %vm940, %v1647, %v1528
      %v1680 = vsel %vm940, %v1648, %v1530
      %v1681 = vsel %vm940, %v1649, %v1532
      %v1682 = vsel %vm940, %v1650, %v1534
      %v1683 = vsel %vm940, %v1651, %v1536
      %v1684 = vsel %vm940, %v1652, %v1538
      %v1685 = vsel %vm940, %v1653, %v1540
      %v1686 = vsel %vm940, %v1654, %v1542
      %v1687 = vsel %vm940, %v1655, %v1544
      %v1688 = vsel %vm940, %v1656, %v1546
      %v1689 = vsel %vm940, %v1657, %v1548
      %v1690 = vsel %vm940, %v1658, %v1550
      %v1691 = vsel %vm940, %v1659, %v1552
      %v1692 = vsel %vm940, %v1660, %v1554
      %v1693 = vsel %vm940, %v1661, %v1556
      %v1694 = vsel %vm940, %v1662, %v1558
      %v1695 = vsel %vm940, %v1663, %v1560
      %v1696 = vsel %vm940, %v1664, %v1562
      %v1697 = vsel %vm940, %v1665, %v1564
      %v1698 = vsel %vm940, %v1666, %v1566
      %v1699 = vsel %vm940, %v1667, %v1568
      %v1700 = vsel %vm940, %v1668, %v1570
      %v1701 = vsel %vm940, %v1669, %v1572
      %v1702 = vsel %vm940, %v1670, %v1574
      %s1703 = scalar_lea.vmem %s1, 16
      %v1704 = vld [vmem:[%s1703] sm:$0xff]
      %v1705 = vld [vmem:[%s1703 + $0x8] sm:$0xff]
      %v1707 = vsel %vm975, %v1671, 0
      %v1710 = vsel %vm975, %v1672, 0
      %v1713 = vsel %vm975, %v1673, 0
      %v1716 = vsel %vm975, %v1674, 0
      %v1719 = vsel %vm975, %v1675, 0
      %v1722 = vsel %vm975, %v1676, 0
      %v1725 = vsel %vm975, %v1677, 0
      %v1728 = vsel %vm975, %v1678, 0
      %v1731 = vsel %vm975, %v1679, 0
      %v1734 = vsel %vm975, %v1680, 0
      %v1737 = vsel %vm975, %v1681, 0
      %v1740 = vsel %vm975, %v1682, 0
      %v1743 = vsel %vm975, %v1683, 0
      %v1746 = vsel %vm975, %v1684, 0
      %v1749 = vsel %vm975, %v1685, 0
      %v1752 = vsel %vm975, %v1686, 0
      %v1755 = vsel %vm975, %v1687, 0
      %v1758 = vsel %vm975, %v1688, 0
      %v1761 = vsel %vm975, %v1689, 0
      %v1764 = vsel %vm975, %v1690, 0
      %v1767 = vsel %vm975, %v1691, 0
      %v1770 = vsel %vm975, %v1692, 0
      %v1773 = vsel %vm975, %v1693, 0
      %v1776 = vsel %vm975, %v1694, 0
      %v1779 = vsel %vm975, %v1695, 0
      %v1782 = vsel %vm975, %v1696, 0
      %v1785 = vsel %vm975, %v1697, 0
      %v1788 = vsel %vm975, %v1698, 0
      %v1791 = vsel %vm975, %v1699, 0
      %v1794 = vsel %vm975, %v1700, 0
      %v1797 = vsel %vm975, %v1701, 0
      %v1800 = vsel %vm975, %v1702, 0
      %1802 = vmatpush.msra.mxu0 0.0
      %1803 = vmatpush.msra.mxu0 0.0
      %1804 = vmatpush.msra.mxu0 0.0
      %1805 = vmatpush.msra.mxu0 0.0
      %1806 = vmatpush.msra.mxu0 0.0
      %1807 = vmatpush.msra.mxu0 0.0
      %1808 = vmatpush.msra.mxu0 0.0
      %1809 = vmatpush.msra.mxu0 0.0
      %1810 = vmatpush.msra.mxu0 0.0
      %1811 = vmatpush.msra.mxu0 0.0
      %1812 = vmatpush.msra.mxu0 0.0
      %1813 = vmatpush.msra.mxu0 0.0
      %1814 = vmatpush.msra.mxu0 0.0
      %1815 = vmatpush.msra.mxu0 0.0
      %1816 = vmatpush.msra.mxu0 %v1705
      %1817 = vmatpush.msra.mxu0 %v1704
      %1818 = vmatmul.f32.gmra.mxu0 %v1707
      %v1819 = vpop.f32.mrf.mxu0
      %v1820 = vadd.f32 0.0, %v1819
      %1821 = vmatmul.f32.gmra.mxu0 %v1710
      %v1822 = vpop.f32.mrf.mxu0
      %v1823 = vadd.f32 0.0, %v1822
      %1824 = vmatmul.f32.gmra.mxu0 %v1713
      %v1825 = vpop.f32.mrf.mxu0
      %v1826 = vadd.f32 0.0, %v1825
      %1827 = vmatmul.f32.gmra.mxu0 %v1716
      %v1828 = vpop.f32.mrf.mxu0
      %v1829 = vadd.f32 0.0, %v1828
      %1830 = vmatmul.f32.gmra.mxu0 %v1719
      %v1831 = vpop.f32.mrf.mxu0
      %v1832 = vadd.f32 0.0, %v1831
      %1833 = vmatmul.f32.gmra.mxu0 %v1722
      %v1834 = vpop.f32.mrf.mxu0
      %v1835 = vadd.f32 0.0, %v1834
      %1836 = vmatmul.f32.gmra.mxu0 %v1725
      %v1837 = vpop.f32.mrf.mxu0
      %v1838 = vadd.f32 0.0, %v1837
      %1839 = vmatmul.f32.gmra.mxu0 %v1728
      %v1840 = vpop.f32.mrf.mxu0
      %v1841 = vadd.f32 0.0, %v1840
      %1842 = vmatmul.f32.gmra.mxu0 %v1731
      %v1843 = vpop.f32.mrf.mxu0
      %v1844 = vadd.f32 0.0, %v1843
      %1845 = vmatmul.f32.gmra.mxu0 %v1734
      %v1846 = vpop.f32.mrf.mxu0
      %v1847 = vadd.f32 0.0, %v1846
      %1848 = vmatmul.f32.gmra.mxu0 %v1737
      %v1849 = vpop.f32.mrf.mxu0
      %v1850 = vadd.f32 0.0, %v1849
      %1851 = vmatmul.f32.gmra.mxu0 %v1740
      %v1852 = vpop.f32.mrf.mxu0
      %v1853 = vadd.f32 0.0, %v1852
      %1854 = vmatmul.f32.gmra.mxu0 %v1743
      %v1855 = vpop.f32.mrf.mxu0
      %v1856 = vadd.f32 0.0, %v1855
      %1857 = vmatmul.f32.gmra.mxu0 %v1746
      %v1858 = vpop.f32.mrf.mxu0
      %v1859 = vadd.f32 0.0, %v1858
      %1860 = vmatmul.f32.gmra.mxu0 %v1749
      %v1861 = vpop.f32.mrf.mxu0
      %v1862 = vadd.f32 0.0, %v1861
      %1863 = vmatmul.f32.gmra.mxu0 %v1752
      %v1864 = vpop.f32.mrf.mxu0
      %v1865 = vadd.f32 0.0, %v1864
      %1866 = vmatmul.f32.gmra.mxu0 %v1755
      %v1867 = vpop.f32.mrf.mxu0
      %v1868 = vadd.f32 0.0, %v1867
      %1869 = vmatmul.f32.gmra.mxu0 %v1758
      %v1870 = vpop.f32.mrf.mxu0
      %v1871 = vadd.f32 0.0, %v1870
      %1872 = vmatmul.f32.gmra.mxu0 %v1761
      %v1873 = vpop.f32.mrf.mxu0
      %v1874 = vadd.f32 0.0, %v1873
      %1875 = vmatmul.f32.gmra.mxu0 %v1764
      %v1876 = vpop.f32.mrf.mxu0
      %v1877 = vadd.f32 0.0, %v1876
      %1878 = vmatmul.f32.gmra.mxu0 %v1767
      %v1879 = vpop.f32.mrf.mxu0
      %v1880 = vadd.f32 0.0, %v1879
      %1881 = vmatmul.f32.gmra.mxu0 %v1770
      %v1882 = vpop.f32.mrf.mxu0
      %v1883 = vadd.f32 0.0, %v1882
      %1884 = vmatmul.f32.gmra.mxu0 %v1773
      %v1885 = vpop.f32.mrf.mxu0
      %v1886 = vadd.f32 0.0, %v1885
      %1887 = vmatmul.f32.gmra.mxu0 %v1776
      %v1888 = vpop.f32.mrf.mxu0
      %v1889 = vadd.f32 0.0, %v1888
      %1890 = vmatmul.f32.gmra.mxu0 %v1779
      %v1891 = vpop.f32.mrf.mxu0
      %v1892 = vadd.f32 0.0, %v1891
      %1893 = vmatmul.f32.gmra.mxu0 %v1782
      %v1894 = vpop.f32.mrf.mxu0
      %v1895 = vadd.f32 0.0, %v1894
      %1896 = vmatmul.f32.gmra.mxu0 %v1785
      %v1897 = vpop.f32.mrf.mxu0
      %v1898 = vadd.f32 0.0, %v1897
      %1899 = vmatmul.f32.gmra.mxu0 %v1788
      %v1900 = vpop.f32.mrf.mxu0
      %v1901 = vadd.f32 0.0, %v1900
      %1902 = vmatmul.f32.gmra.mxu0 %v1791
      %v1903 = vpop.f32.mrf.mxu0
      %v1904 = vadd.f32 0.0, %v1903
      %1905 = vmatmul.f32.gmra.mxu0 %v1794
      %v1906 = vpop.f32.mrf.mxu0
      %v1907 = vadd.f32 0.0, %v1906
      %1908 = vmatmul.f32.gmra.mxu0 %v1797
      %v1909 = vpop.f32.mrf.mxu0
      %v1910 = vadd.f32 0.0, %v1909
      %1911 = vmatmul.f32.gmra.mxu0 %v1800
      %v1912 = vpop.f32.mrf.mxu0
      %v1913 = vadd.f32 0.0, %v1912
      %1914 = vdwg.mxu0
      %v1915 = vmul.f32 %v1820, %v1186
      %v1916 = vmul.f32 %v1823, %v1186
      %v1917 = vmul.f32 %v1826, %v1186
      %v1918 = vmul.f32 %v1829, %v1186
      %v1919 = vmul.f32 %v1832, %v1186
      %v1920 = vmul.f32 %v1835, %v1186
      %v1921 = vmul.f32 %v1838, %v1186
      %v1922 = vmul.f32 %v1841, %v1186
      %v1923 = vmul.f32 %v1844, %v1186
      %v1924 = vmul.f32 %v1847, %v1186
      %v1925 = vmul.f32 %v1850, %v1186
      %v1926 = vmul.f32 %v1853, %v1186
      %v1927 = vmul.f32 %v1856, %v1186
      %v1928 = vmul.f32 %v1859, %v1186
      %v1929 = vmul.f32 %v1862, %v1186
      %v1930 = vmul.f32 %v1865, %v1186
      %v1931 = vmul.f32 %v1868, %v1186
      %v1932 = vmul.f32 %v1871, %v1186
      %v1933 = vmul.f32 %v1874, %v1186
      %v1934 = vmul.f32 %v1877, %v1186
      %v1935 = vmul.f32 %v1880, %v1186
      %v1936 = vmul.f32 %v1883, %v1186
      %v1937 = vmul.f32 %v1886, %v1186
      %v1938 = vmul.f32 %v1889, %v1186
      %v1939 = vmul.f32 %v1892, %v1186
      %v1940 = vmul.f32 %v1895, %v1186
      %v1941 = vmul.f32 %v1898, %v1186
      %v1942 = vmul.f32 %v1901, %v1186
      %v1943 = vmul.f32 %v1904, %v1186
      %v1944 = vmul.f32 %v1907, %v1186
      %v1945 = vmul.f32 %v1910, %v1186
      %v1946 = vmul.f32 %v1913, %v1186
      %v1947 = vadd.f32 %v1915, %v1221
      %v1948 = vadd.f32 %v1916, %v1221
      %v1949 = vadd.f32 %v1917, %v1221
      %v1950 = vadd.f32 %v1918, %v1221
      %v1951 = vadd.f32 %v1919, %v1221
      %v1952 = vadd.f32 %v1920, %v1221
      %v1953 = vadd.f32 %v1921, %v1221
      %v1954 = vadd.f32 %v1922, %v1221
      %v1955 = vadd.f32 %v1923, %v1221
      %v1956 = vadd.f32 %v1924, %v1221
      %v1957 = vadd.f32 %v1925, %v1221
      %v1958 = vadd.f32 %v1926, %v1221
      %v1959 = vadd.f32 %v1927, %v1221
      %v1960 = vadd.f32 %v1928, %v1221
      %v1961 = vadd.f32 %v1929, %v1221
      %v1962 = vadd.f32 %v1930, %v1221
      %v1963 = vadd.f32 %v1931, %v1221
      %v1964 = vadd.f32 %v1932, %v1221
      %v1965 = vadd.f32 %v1933, %v1221
      %v1966 = vadd.f32 %v1934, %v1221
      %v1967 = vadd.f32 %v1935, %v1221
      %v1968 = vadd.f32 %v1936, %v1221
      %v1969 = vadd.f32 %v1937, %v1221
      %v1970 = vadd.f32 %v1938, %v1221
      %v1971 = vadd.f32 %v1939, %v1221
      %v1972 = vadd.f32 %v1940, %v1221
      %v1973 = vadd.f32 %v1941, %v1221
      %v1974 = vadd.f32 %v1942, %v1221
      %v1975 = vadd.f32 %v1943, %v1221
      %v1976 = vadd.f32 %v1944, %v1221
      %v1977 = vadd.f32 %v1945, %v1221
      %v1978 = vadd.f32 %v1946, %v1221
      %vm1979 = vcmp.ge.f32.partialorder %v1947, 0.0
      %vm1980 = vcmp.ge.f32.partialorder %v1948, 0.0
      %vm1981 = vcmp.ge.f32.partialorder %v1949, 0.0
      %vm1982 = vcmp.ge.f32.partialorder %v1950, 0.0
      %vm1983 = vcmp.ge.f32.partialorder %v1951, 0.0
      %vm1984 = vcmp.ge.f32.partialorder %v1952, 0.0
      %vm1985 = vcmp.ge.f32.partialorder %v1953, 0.0
      %vm1986 = vcmp.ge.f32.partialorder %v1954, 0.0
      %vm1987 = vcmp.ge.f32.partialorder %v1955, 0.0
      %vm1988 = vcmp.ge.f32.partialorder %v1956, 0.0
      %vm1989 = vcmp.ge.f32.partialorder %v1957, 0.0
      %vm1990 = vcmp.ge.f32.partialorder %v1958, 0.0
      %vm1991 = vcmp.ge.f32.partialorder %v1959, 0.0
      %vm1992 = vcmp.ge.f32.partialorder %v1960, 0.0
      %vm1993 = vcmp.ge.f32.partialorder %v1961, 0.0
      %vm1994 = vcmp.ge.f32.partialorder %v1962, 0.0
      %vm1995 = vcmp.ge.f32.partialorder %v1963, 0.0
      %vm1996 = vcmp.ge.f32.partialorder %v1964, 0.0
      %vm1997 = vcmp.ge.f32.partialorder %v1965, 0.0
      %vm1998 = vcmp.ge.f32.partialorder %v1966, 0.0
      %vm1999 = vcmp.ge.f32.partialorder %v1967, 0.0
      %vm2000 = vcmp.ge.f32.partialorder %v1968, 0.0
      %vm2001 = vcmp.ge.f32.partialorder %v1969, 0.0
      %vm2002 = vcmp.ge.f32.partialorder %v1970, 0.0
      %vm2003 = vcmp.ge.f32.partialorder %v1971, 0.0
      %vm2004 = vcmp.ge.f32.partialorder %v1972, 0.0
      %vm2005 = vcmp.ge.f32.partialorder %v1973, 0.0
      %vm2006 = vcmp.ge.f32.partialorder %v1974, 0.0
      %vm2007 = vcmp.ge.f32.partialorder %v1975, 0.0
      %vm2008 = vcmp.ge.f32.partialorder %v1976, 0.0
      %vm2009 = vcmp.ge.f32.partialorder %v1977, 0.0
      %vm2010 = vcmp.ge.f32.partialorder %v1978, 0.0
      %v2011 = vmul.f32 %v1947, 0.2
      %v2012 = vmul.f32 %v1948, 0.2
      %v2013 = vmul.f32 %v1949, 0.2
      %v2014 = vmul.f32 %v1950, 0.2
      %v2015 = vmul.f32 %v1951, 0.2
      %v2016 = vmul.f32 %v1952, 0.2
      %v2017 = vmul.f32 %v1953, 0.2
      %v2018 = vmul.f32 %v1954, 0.2
      %v2019 = vmul.f32 %v1955, 0.2
      %v2020 = vmul.f32 %v1956, 0.2
      %v2021 = vmul.f32 %v1957, 0.2
      %v2022 = vmul.f32 %v1958, 0.2
      %v2023 = vmul.f32 %v1959, 0.2
      %v2024 = vmul.f32 %v1960, 0.2
      %v2025 = vmul.f32 %v1961, 0.2
      %v2026 = vmul.f32 %v1962, 0.2
      %v2027 = vmul.f32 %v1963, 0.2
      %v2028 = vmul.f32 %v1964, 0.2
      %v2029 = vmul.f32 %v1965, 0.2
      %v2030 = vmul.f32 %v1966, 0.2
      %v2031 = vmul.f32 %v1967, 0.2
      %v2032 = vmul.f32 %v1968, 0.2
      %v2033 = vmul.f32 %v1969, 0.2
      %v2034 = vmul.f32 %v1970, 0.2
      %v2035 = vmul.f32 %v1971, 0.2
      %v2036 = vmul.f32 %v1972, 0.2
      %v2037 = vmul.f32 %v1973, 0.2
      %v2038 = vmul.f32 %v1974, 0.2
      %v2039 = vmul.f32 %v1975, 0.2
      %v2040 = vmul.f32 %v1976, 0.2
      %v2041 = vmul.f32 %v1977, 0.2
      %v2042 = vmul.f32 %v1978, 0.2
      %v2043 = vsel %vm1979, %v1947, %v2011
      %v2044 = vsel %vm1980, %v1948, %v2012
      %v2045 = vsel %vm1981, %v1949, %v2013
      %v2046 = vsel %vm1982, %v1950, %v2014
      %v2047 = vsel %vm1983, %v1951, %v2015
      %v2048 = vsel %vm1984, %v1952, %v2016
      %v2049 = vsel %vm1985, %v1953, %v2017
      %v2050 = vsel %vm1986, %v1954, %v2018
      %v2051 = vsel %vm1987, %v1955, %v2019
      %v2052 = vsel %vm1988, %v1956, %v2020
      %v2053 = vsel %vm1989, %v1957, %v2021
      %v2054 = vsel %vm1990, %v1958, %v2022
      %v2055 = vsel %vm1991, %v1959, %v2023
      %v2056 = vsel %vm1992, %v1960, %v2024
      %v2057 = vsel %vm1993, %v1961, %v2025
      %v2058 = vsel %vm1994, %v1962, %v2026
      %v2059 = vsel %vm1995, %v1963, %v2027
      %v2060 = vsel %vm1996, %v1964, %v2028
      %v2061 = vsel %vm1997, %v1965, %v2029
      %v2062 = vsel %vm1998, %v1966, %v2030
      %v2063 = vsel %vm1999, %v1967, %v2031
      %v2064 = vsel %vm2000, %v1968, %v2032
      %v2065 = vsel %vm2001, %v1969, %v2033
      %v2066 = vsel %vm2002, %v1970, %v2034
      %v2067 = vsel %vm2003, %v1971, %v2035
      %v2068 = vsel %vm2004, %v1972, %v2036
      %v2069 = vsel %vm2005, %v1973, %v2037
      %v2070 = vsel %vm2006, %v1974, %v2038
      %v2071 = vsel %vm2007, %v1975, %v2039
      %v2072 = vsel %vm2008, %v1976, %v2040
      %v2073 = vsel %vm2009, %v1977, %v2041
      %v2074 = vsel %vm2010, %v1978, %v2042
      %2107 = vrot.lane.b32.xlu0 %v2043, 8
      %v2108 = vpop.permute.xlu0 %2107
      %2109 = vrot.lane.b32.xlu0 %v2044, 8
      %v2110 = vpop.permute.xlu0 %2109
      %2111 = vrot.lane.b32.xlu0 %v2045, 8
      %v2112 = vpop.permute.xlu0 %2111
      %2113 = vrot.lane.b32.xlu0 %v2046, 8
      %v2114 = vpop.permute.xlu0 %2113
      %2115 = vrot.lane.b32.xlu0 %v2047, 8
      %v2116 = vpop.permute.xlu0 %2115
      %2117 = vrot.lane.b32.xlu0 %v2048, 8
      %v2118 = vpop.permute.xlu0 %2117
      %2119 = vrot.lane.b32.xlu0 %v2049, 8
      %v2120 = vpop.permute.xlu0 %2119
      %2121 = vrot.lane.b32.xlu0 %v2050, 8
      %v2122 = vpop.permute.xlu0 %2121
      %2123 = vrot.lane.b32.xlu0 %v2051, 8
      %v2124 = vpop.permute.xlu0 %2123
      %2125 = vrot.lane.b32.xlu0 %v2052, 8
      %v2126 = vpop.permute.xlu0 %2125
      %2127 = vrot.lane.b32.xlu0 %v2053, 8
      %v2128 = vpop.permute.xlu0 %2127
      %2129 = vrot.lane.b32.xlu0 %v2054, 8
      %v2130 = vpop.permute.xlu0 %2129
      %2131 = vrot.lane.b32.xlu0 %v2055, 8
      %v2132 = vpop.permute.xlu0 %2131
      %2133 = vrot.lane.b32.xlu0 %v2056, 8
      %v2134 = vpop.permute.xlu0 %2133
      %2135 = vrot.lane.b32.xlu0 %v2057, 8
      %v2136 = vpop.permute.xlu0 %2135
      %2137 = vrot.lane.b32.xlu0 %v2058, 8
      %v2138 = vpop.permute.xlu0 %2137
      %2139 = vrot.lane.b32.xlu0 %v2059, 8
      %v2140 = vpop.permute.xlu0 %2139
      %2141 = vrot.lane.b32.xlu0 %v2060, 8
      %v2142 = vpop.permute.xlu0 %2141
      %2143 = vrot.lane.b32.xlu0 %v2061, 8
      %v2144 = vpop.permute.xlu0 %2143
      %2145 = vrot.lane.b32.xlu0 %v2062, 8
      %v2146 = vpop.permute.xlu0 %2145
      %2147 = vrot.lane.b32.xlu0 %v2063, 8
      %v2148 = vpop.permute.xlu0 %2147
      %2149 = vrot.lane.b32.xlu0 %v2064, 8
      %v2150 = vpop.permute.xlu0 %2149
      %2151 = vrot.lane.b32.xlu0 %v2065, 8
      %v2152 = vpop.permute.xlu0 %2151
      %2153 = vrot.lane.b32.xlu0 %v2066, 8
      %v2154 = vpop.permute.xlu0 %2153
      %2155 = vrot.lane.b32.xlu0 %v2067, 8
      %v2156 = vpop.permute.xlu0 %2155
      %2157 = vrot.lane.b32.xlu0 %v2068, 8
      %v2158 = vpop.permute.xlu0 %2157
      %2159 = vrot.lane.b32.xlu0 %v2069, 8
      %v2160 = vpop.permute.xlu0 %2159
      %2161 = vrot.lane.b32.xlu0 %v2070, 8
      %v2162 = vpop.permute.xlu0 %2161
      %2163 = vrot.lane.b32.xlu0 %v2071, 8
      %v2164 = vpop.permute.xlu0 %2163
      %2165 = vrot.lane.b32.xlu0 %v2072, 8
      %v2166 = vpop.permute.xlu0 %2165
      %2167 = vrot.lane.b32.xlu0 %v2073, 8
      %v2168 = vpop.permute.xlu0 %2167
      %2169 = vrot.lane.b32.xlu0 %v2074, 8
      %v2170 = vpop.permute.xlu0 %2169
      %v2203 = vsel %vm907, %v1319, %v2108
      %v2204 = vsel %vm907, %v1320, %v2110
      %v2205 = vsel %vm907, %v1321, %v2112
      %v2206 = vsel %vm907, %v1322, %v2114
      %v2207 = vsel %vm907, %v1323, %v2116
      %v2208 = vsel %vm907, %v1324, %v2118
      %v2209 = vsel %vm907, %v1325, %v2120
      %v2210 = vsel %vm907, %v1326, %v2122
      %v2211 = vsel %vm907, %v1327, %v2124
      %v2212 = vsel %vm907, %v1328, %v2126
      %v2213 = vsel %vm907, %v1329, %v2128
      %v2214 = vsel %vm907, %v1330, %v2130
      %v2215 = vsel %vm907, %v1331, %v2132
      %v2216 = vsel %vm907, %v1332, %v2134
      %v2217 = vsel %vm907, %v1333, %v2136
      %v2218 = vsel %vm907, %v1334, %v2138
      %v2219 = vsel %vm907, %v1335, %v2140
      %v2220 = vsel %vm907, %v1336, %v2142
      %v2221 = vsel %vm907, %v1337, %v2144
      %v2222 = vsel %vm907, %v1338, %v2146
      %v2223 = vsel %vm907, %v1339, %v2148
      %v2224 = vsel %vm907, %v1340, %v2150
      %v2225 = vsel %vm907, %v1341, %v2152
      %v2226 = vsel %vm907, %v1342, %v2154
      %v2227 = vsel %vm907, %v1343, %v2156
      %v2228 = vsel %vm907, %v1344, %v2158
      %v2229 = vsel %vm907, %v1345, %v2160
      %v2230 = vsel %vm907, %v1346, %v2162
      %v2231 = vsel %vm907, %v1347, %v2164
      %v2232 = vsel %vm907, %v1348, %v2166
      %v2233 = vsel %vm907, %v1349, %v2168
      %v2234 = vsel %vm907, %v1350, %v2170
      %2235 = vst.msk [vmem:[%s197] sm:$0xff] %vm975, %v2203
      %2236 = vst.msk [vmem:[%s197 + $0x8] sm:$0xff] %vm975, %v2204
      %2237 = vst.msk [vmem:[%s197 + $0x20] sm:$0xff] %vm975, %v2205
      %2238 = vst.msk [vmem:[%s197 + $0x28] sm:$0xff] %vm975, %v2206
      %2239 = vst.msk [vmem:[%s197 + $0x40] sm:$0xff] %vm975, %v2207
      %2240 = vst.msk [vmem:[%s197 + $0x48] sm:$0xff] %vm975, %v2208
      %2241 = vst.msk [vmem:[%s197 + $0x60] sm:$0xff] %vm975, %v2209
      %2242 = vst.msk [vmem:[%s197 + $0x68] sm:$0xff] %vm975, %v2210
      %2243 = vst.msk [vmem:[%s197 + $0x80] sm:$0xff] %vm975, %v2211
      %2244 = vst.msk [vmem:[%s197 + $0x88] sm:$0xff] %vm975, %v2212
      %2245 = vst.msk [vmem:[%s197 + $0xa0] sm:$0xff] %vm975, %v2213
      %2246 = vst.msk [vmem:[%s197 + $0xa8] sm:$0xff] %vm975, %v2214
      %2247 = vst.msk [vmem:[%s197 + $0xc0] sm:$0xff] %vm975, %v2215
      %2248 = vst.msk [vmem:[%s197 + $0xc8] sm:$0xff] %vm975, %v2216
      %2249 = vst.msk [vmem:[%s197 + $0xe0] sm:$0xff] %vm975, %v2217
      %2250 = vst.msk [vmem:[%s197 + $0xe8] sm:$0xff] %vm975, %v2218
      %2251 = vst.msk [vmem:[%s197 + $0x100] sm:$0xff] %vm975, %v2219
      %2252 = vst.msk [vmem:[%s197 + $0x108] sm:$0xff] %vm975, %v2220
      %2253 = vst.msk [vmem:[%s197 + $0x120] sm:$0xff] %vm975, %v2221
      %2254 = vst.msk [vmem:[%s197 + $0x128] sm:$0xff] %vm975, %v2222
      %2255 = vst.msk [vmem:[%s197 + $0x140] sm:$0xff] %vm975, %v2223
      %2256 = vst.msk [vmem:[%s197 + $0x148] sm:$0xff] %vm975, %v2224
      %2257 = vst.msk [vmem:[%s197 + $0x160] sm:$0xff] %vm975, %v2225
      %2258 = vst.msk [vmem:[%s197 + $0x168] sm:$0xff] %vm975, %v2226
      %2259 = vst.msk [vmem:[%s197 + $0x180] sm:$0xff] %vm975, %v2227
      %2260 = vst.msk [vmem:[%s197 + $0x188] sm:$0xff] %vm975, %v2228
      %2261 = vst.msk [vmem:[%s197 + $0x1a0] sm:$0xff] %vm975, %v2229
      %2262 = vst.msk [vmem:[%s197 + $0x1a8] sm:$0xff] %vm975, %v2230
      %2263 = vst.msk [vmem:[%s197 + $0x1c0] sm:$0xff] %vm975, %v2231
      %2264 = vst.msk [vmem:[%s197 + $0x1c8] sm:$0xff] %vm975, %v2232
      %2265 = vst.msk [vmem:[%s197 + $0x1e0] sm:$0xff] %vm975, %v2233
      %2266 = vst.msk [vmem:[%s197 + $0x1e8] sm:$0xff] %vm975, %v2234
      %2299 = vrot.lane.b32.xlu0 %v426, 8
      %v2300 = vpop.permute.xlu0 %2299
      %2301 = vrot.lane.b32.xlu0 %v427, 8
      %v2302 = vpop.permute.xlu0 %2301
      %2303 = vrot.lane.b32.xlu0 %v428, 8
      %v2304 = vpop.permute.xlu0 %2303
      %2305 = vrot.lane.b32.xlu0 %v429, 8
      %v2306 = vpop.permute.xlu0 %2305
      %2307 = vrot.lane.b32.xlu0 %v430, 8
      %v2308 = vpop.permute.xlu0 %2307
      %2309 = vrot.lane.b32.xlu0 %v431, 8
      %v2310 = vpop.permute.xlu0 %2309
      %2311 = vrot.lane.b32.xlu0 %v432, 8
      %v2312 = vpop.permute.xlu0 %2311
      %2313 = vrot.lane.b32.xlu0 %v433, 8
      %v2314 = vpop.permute.xlu0 %2313
      %2315 = vrot.lane.b32.xlu0 %v434, 8
      %v2316 = vpop.permute.xlu0 %2315
      %2317 = vrot.lane.b32.xlu0 %v435, 8
      %v2318 = vpop.permute.xlu0 %2317
      %2319 = vrot.lane.b32.xlu0 %v436, 8
      %v2320 = vpop.permute.xlu0 %2319
      %2321 = vrot.lane.b32.xlu0 %v437, 8
      %v2322 = vpop.permute.xlu0 %2321
      %2323 = vrot.lane.b32.xlu0 %v438, 8
      %v2324 = vpop.permute.xlu0 %2323
      %2325 = vrot.lane.b32.xlu0 %v439, 8
      %v2326 = vpop.permute.xlu0 %2325
      %2327 = vrot.lane.b32.xlu0 %v440, 8
      %v2328 = vpop.permute.xlu0 %2327
      %2329 = vrot.lane.b32.xlu0 %v441, 8
      %v2330 = vpop.permute.xlu0 %2329
      %2331 = vrot.lane.b32.xlu0 %v442, 8
      %v2332 = vpop.permute.xlu0 %2331
      %2333 = vrot.lane.b32.xlu0 %v443, 8
      %v2334 = vpop.permute.xlu0 %2333
      %2335 = vrot.lane.b32.xlu0 %v444, 8
      %v2336 = vpop.permute.xlu0 %2335
      %2337 = vrot.lane.b32.xlu0 %v445, 8
      %v2338 = vpop.permute.xlu0 %2337
      %2339 = vrot.lane.b32.xlu0 %v446, 8
      %v2340 = vpop.permute.xlu0 %2339
      %2341 = vrot.lane.b32.xlu0 %v447, 8
      %v2342 = vpop.permute.xlu0 %2341
      %2343 = vrot.lane.b32.xlu0 %v448, 8
      %v2344 = vpop.permute.xlu0 %2343
      %2345 = vrot.lane.b32.xlu0 %v449, 8
      %v2346 = vpop.permute.xlu0 %2345
      %2347 = vrot.lane.b32.xlu0 %v450, 8
      %v2348 = vpop.permute.xlu0 %2347
      %2349 = vrot.lane.b32.xlu0 %v451, 8
      %v2350 = vpop.permute.xlu0 %2349
      %2351 = vrot.lane.b32.xlu0 %v452, 8
      %v2352 = vpop.permute.xlu0 %2351
      %2353 = vrot.lane.b32.xlu0 %v453, 8
      %v2354 = vpop.permute.xlu0 %2353
      %2355 = vrot.lane.b32.xlu0 %v454, 8
      %v2356 = vpop.permute.xlu0 %2355
      %2357 = vrot.lane.b32.xlu0 %v455, 8
      %v2358 = vpop.permute.xlu0 %2357
      %2359 = vrot.lane.b32.xlu0 %v456, 8
      %v2360 = vpop.permute.xlu0 %2359
      %2361 = vrot.lane.b32.xlu0 %v457, 8
      %v2362 = vpop.permute.xlu0 %2361
      %2427 = vrot.lane.b32.xlu0 %v394, 12
      %v2428 = vpop.permute.xlu0 %2427
      %2429 = vrot.lane.b32.xlu0 %v395, 12
      %v2430 = vpop.permute.xlu0 %2429
      %2431 = vrot.lane.b32.xlu0 %v396, 12
      %v2432 = vpop.permute.xlu0 %2431
      %2433 = vrot.lane.b32.xlu0 %v397, 12
      %v2434 = vpop.permute.xlu0 %2433
      %2435 = vrot.lane.b32.xlu0 %v398, 12
      %v2436 = vpop.permute.xlu0 %2435
      %2437 = vrot.lane.b32.xlu0 %v399, 12
      %v2438 = vpop.permute.xlu0 %2437
      %2439 = vrot.lane.b32.xlu0 %v400, 12
      %v2440 = vpop.permute.xlu0 %2439
      %2441 = vrot.lane.b32.xlu0 %v401, 12
      %v2442 = vpop.permute.xlu0 %2441
      %2443 = vrot.lane.b32.xlu0 %v402, 12
      %v2444 = vpop.permute.xlu0 %2443
      %2445 = vrot.lane.b32.xlu0 %v403, 12
      %v2446 = vpop.permute.xlu0 %2445
      %2447 = vrot.lane.b32.xlu0 %v404, 12
      %v2448 = vpop.permute.xlu0 %2447
      %2449 = vrot.lane.b32.xlu0 %v405, 12
      %v2450 = vpop.permute.xlu0 %2449
      %2451 = vrot.lane.b32.xlu0 %v406, 12
      %v2452 = vpop.permute.xlu0 %2451
      %2453 = vrot.lane.b32.xlu0 %v407, 12
      %v2454 = vpop.permute.xlu0 %2453
      %2455 = vrot.lane.b32.xlu0 %v408, 12
      %v2456 = vpop.permute.xlu0 %2455
      %2457 = vrot.lane.b32.xlu0 %v409, 12
      %v2458 = vpop.permute.xlu0 %2457
      %2459 = vrot.lane.b32.xlu0 %v410, 12
      %v2460 = vpop.permute.xlu0 %2459
      %2461 = vrot.lane.b32.xlu0 %v411, 12
      %v2462 = vpop.permute.xlu0 %2461
      %2463 = vrot.lane.b32.xlu0 %v412, 12
      %v2464 = vpop.permute.xlu0 %2463
      %2465 = vrot.lane.b32.xlu0 %v413, 12
      %v2466 = vpop.permute.xlu0 %2465
      %2467 = vrot.lane.b32.xlu0 %v414, 12
      %v2468 = vpop.permute.xlu0 %2467
      %2469 = vrot.lane.b32.xlu0 %v415, 12
      %v2470 = vpop.permute.xlu0 %2469
      %2471 = vrot.lane.b32.xlu0 %v416, 12
      %v2472 = vpop.permute.xlu0 %2471
      %2473 = vrot.lane.b32.xlu0 %v417, 12
      %v2474 = vpop.permute.xlu0 %2473
      %2475 = vrot.lane.b32.xlu0 %v418, 12
      %v2476 = vpop.permute.xlu0 %2475
      %2477 = vrot.lane.b32.xlu0 %v419, 12
      %v2478 = vpop.permute.xlu0 %2477
      %2479 = vrot.lane.b32.xlu0 %v420, 12
      %v2480 = vpop.permute.xlu0 %2479
      %2481 = vrot.lane.b32.xlu0 %v421, 12
      %v2482 = vpop.permute.xlu0 %2481
      %2483 = vrot.lane.b32.xlu0 %v422, 12
      %v2484 = vpop.permute.xlu0 %2483
      %2485 = vrot.lane.b32.xlu0 %v423, 12
      %v2486 = vpop.permute.xlu0 %2485
      %2487 = vrot.lane.b32.xlu0 %v424, 12
      %v2488 = vpop.permute.xlu0 %2487
      %2489 = vrot.lane.b32.xlu0 %v425, 12
      %v2490 = vpop.permute.xlu0 %2489
      %v2523 = vsel %vm907, %v875, %v2300
      %v2524 = vsel %vm907, %v876, %v2302
      %v2525 = vsel %vm907, %v877, %v2304
      %v2526 = vsel %vm907, %v878, %v2306
      %v2527 = vsel %vm907, %v879, %v2308
      %v2528 = vsel %vm907, %v880, %v2310
      %v2529 = vsel %vm907, %v881, %v2312
      %v2530 = vsel %vm907, %v882, %v2314
      %v2531 = vsel %vm907, %v883, %v2316
      %v2532 = vsel %vm907, %v884, %v2318
      %v2533 = vsel %vm907, %v885, %v2320
      %v2534 = vsel %vm907, %v886, %v2322
      %v2535 = vsel %vm907, %v887, %v2324
      %v2536 = vsel %vm907, %v888, %v2326
      %v2537 = vsel %vm907, %v889, %v2328
      %v2538 = vsel %vm907, %v890, %v2330
      %v2539 = vsel %vm907, %v891, %v2332
      %v2540 = vsel %vm907, %v892, %v2334
      %v2541 = vsel %vm907, %v893, %v2336
      %v2542 = vsel %vm907, %v894, %v2338
      %v2543 = vsel %vm907, %v895, %v2340
      %v2544 = vsel %vm907, %v896, %v2342
      %v2545 = vsel %vm907, %v897, %v2344
      %v2546 = vsel %vm907, %v898, %v2346
      %v2547 = vsel %vm907, %v899, %v2348
      %v2548 = vsel %vm907, %v900, %v2350
      %v2549 = vsel %vm907, %v901, %v2352
      %v2550 = vsel %vm907, %v902, %v2354
      %v2551 = vsel %vm907, %v903, %v2356
      %v2552 = vsel %vm907, %v904, %v2358
      %v2553 = vsel %vm907, %v905, %v2360
      %v2554 = vsel %vm907, %v906, %v2362
      %v2555 = vsel %vm940, %v2523, %v2428
      %v2556 = vsel %vm940, %v2524, %v2430
      %v2557 = vsel %vm940, %v2525, %v2432
      %v2558 = vsel %vm940, %v2526, %v2434
      %v2559 = vsel %vm940, %v2527, %v2436
      %v2560 = vsel %vm940, %v2528, %v2438
      %v2561 = vsel %vm940, %v2529, %v2440
      %v2562 = vsel %vm940, %v2530, %v2442
      %v2563 = vsel %vm940, %v2531, %v2444
      %v2564 = vsel %vm940, %v2532, %v2446
      %v2565 = vsel %vm940, %v2533, %v2448
      %v2566 = vsel %vm940, %v2534, %v2450
      %v2567 = vsel %vm940, %v2535, %v2452
      %v2568 = vsel %vm940, %v2536, %v2454
      %v2569 = vsel %vm940, %v2537, %v2456
      %v2570 = vsel %vm940, %v2538, %v2458
      %v2571 = vsel %vm940, %v2539, %v2460
      %v2572 = vsel %vm940, %v2540, %v2462
      %v2573 = vsel %vm940, %v2541, %v2464
      %v2574 = vsel %vm940, %v2542, %v2466
      %v2575 = vsel %vm940, %v2543, %v2468
      %v2576 = vsel %vm940, %v2544, %v2470
      %v2577 = vsel %vm940, %v2545, %v2472
      %v2578 = vsel %vm940, %v2546, %v2474
      %v2579 = vsel %vm940, %v2547, %v2476
      %v2580 = vsel %vm940, %v2548, %v2478
      %v2581 = vsel %vm940, %v2549, %v2480
      %v2582 = vsel %vm940, %v2550, %v2482
      %v2583 = vsel %vm940, %v2551, %v2484
      %v2584 = vsel %vm940, %v2552, %v2486
      %v2585 = vsel %vm940, %v2553, %v2488
      %v2586 = vsel %vm940, %v2554, %v2490
      %s2587 = scalar_lea.vmem %s1, 32
      %v2588 = vld [vmem:[%s2587] sm:$0xff]
      %v2589 = vld [vmem:[%s2587 + $0x8] sm:$0xff]
      %v2591 = vsel %vm975, %v2555, 0
      %v2594 = vsel %vm975, %v2556, 0
      %v2597 = vsel %vm975, %v2557, 0
      %v2600 = vsel %vm975, %v2558, 0
      %v2603 = vsel %vm975, %v2559, 0
      %v2606 = vsel %vm975, %v2560, 0
      %v2609 = vsel %vm975, %v2561, 0
      %v2612 = vsel %vm975, %v2562, 0
      %v2615 = vsel %vm975, %v2563, 0
      %v2618 = vsel %vm975, %v2564, 0
      %v2621 = vsel %vm975, %v2565, 0
      %v2624 = vsel %vm975, %v2566, 0
      %v2627 = vsel %vm975, %v2567, 0
      %v2630 = vsel %vm975, %v2568, 0
      %v2633 = vsel %vm975, %v2569, 0
      %v2636 = vsel %vm975, %v2570, 0
      %v2639 = vsel %vm975, %v2571, 0
      %v2642 = vsel %vm975, %v2572, 0
      %v2645 = vsel %vm975, %v2573, 0
      %v2648 = vsel %vm975, %v2574, 0
      %v2651 = vsel %vm975, %v2575, 0
      %v2654 = vsel %vm975, %v2576, 0
      %v2657 = vsel %vm975, %v2577, 0
      %v2660 = vsel %vm975, %v2578, 0
      %v2663 = vsel %vm975, %v2579, 0
      %v2666 = vsel %vm975, %v2580, 0
      %v2669 = vsel %vm975, %v2581, 0
      %v2672 = vsel %vm975, %v2582, 0
      %v2675 = vsel %vm975, %v2583, 0
      %v2678 = vsel %vm975, %v2584, 0
      %v2681 = vsel %vm975, %v2585, 0
      %v2684 = vsel %vm975, %v2586, 0
      %2686 = vmatpush.msra.mxu0 0.0
      %2687 = vmatpush.msra.mxu0 0.0
      %2688 = vmatpush.msra.mxu0 0.0
      %2689 = vmatpush.msra.mxu0 0.0
      %2690 = vmatpush.msra.mxu0 0.0
      %2691 = vmatpush.msra.mxu0 0.0
      %2692 = vmatpush.msra.mxu0 0.0
      %2693 = vmatpush.msra.mxu0 0.0
      %2694 = vmatpush.msra.mxu0 0.0
      %2695 = vmatpush.msra.mxu0 0.0
      %2696 = vmatpush.msra.mxu0 0.0
      %2697 = vmatpush.msra.mxu0 0.0
      %2698 = vmatpush.msra.mxu0 0.0
      %2699 = vmatpush.msra.mxu0 0.0
      %2700 = vmatpush.msra.mxu0 %v2589
      %2701 = vmatpush.msra.mxu0 %v2588
      %2702 = vmatmul.f32.gmra.mxu0 %v2591
      %v2703 = vpop.f32.mrf.mxu0
      %v2704 = vadd.f32 0.0, %v2703
      %2705 = vmatmul.f32.gmra.mxu0 %v2594
      %v2706 = vpop.f32.mrf.mxu0
      %v2707 = vadd.f32 0.0, %v2706
      %2708 = vmatmul.f32.gmra.mxu0 %v2597
      %v2709 = vpop.f32.mrf.mxu0
      %v2710 = vadd.f32 0.0, %v2709
      %2711 = vmatmul.f32.gmra.mxu0 %v2600
      %v2712 = vpop.f32.mrf.mxu0
      %v2713 = vadd.f32 0.0, %v2712
      %2714 = vmatmul.f32.gmra.mxu0 %v2603
      %v2715 = vpop.f32.mrf.mxu0
      %v2716 = vadd.f32 0.0, %v2715
      %2717 = vmatmul.f32.gmra.mxu0 %v2606
      %v2718 = vpop.f32.mrf.mxu0
      %v2719 = vadd.f32 0.0, %v2718
      %2720 = vmatmul.f32.gmra.mxu0 %v2609
      %v2721 = vpop.f32.mrf.mxu0
      %v2722 = vadd.f32 0.0, %v2721
      %2723 = vmatmul.f32.gmra.mxu0 %v2612
      %v2724 = vpop.f32.mrf.mxu0
      %v2725 = vadd.f32 0.0, %v2724
      %2726 = vmatmul.f32.gmra.mxu0 %v2615
      %v2727 = vpop.f32.mrf.mxu0
      %v2728 = vadd.f32 0.0, %v2727
      %2729 = vmatmul.f32.gmra.mxu0 %v2618
      %v2730 = vpop.f32.mrf.mxu0
      %v2731 = vadd.f32 0.0, %v2730
      %2732 = vmatmul.f32.gmra.mxu0 %v2621
      %v2733 = vpop.f32.mrf.mxu0
      %v2734 = vadd.f32 0.0, %v2733
      %2735 = vmatmul.f32.gmra.mxu0 %v2624
      %v2736 = vpop.f32.mrf.mxu0
      %v2737 = vadd.f32 0.0, %v2736
      %2738 = vmatmul.f32.gmra.mxu0 %v2627
      %v2739 = vpop.f32.mrf.mxu0
      %v2740 = vadd.f32 0.0, %v2739
      %2741 = vmatmul.f32.gmra.mxu0 %v2630
      %v2742 = vpop.f32.mrf.mxu0
      %v2743 = vadd.f32 0.0, %v2742
      %2744 = vmatmul.f32.gmra.mxu0 %v2633
      %v2745 = vpop.f32.mrf.mxu0
      %v2746 = vadd.f32 0.0, %v2745
      %2747 = vmatmul.f32.gmra.mxu0 %v2636
      %v2748 = vpop.f32.mrf.mxu0
      %v2749 = vadd.f32 0.0, %v2748
      %2750 = vmatmul.f32.gmra.mxu0 %v2639
      %v2751 = vpop.f32.mrf.mxu0
      %v2752 = vadd.f32 0.0, %v2751
      %2753 = vmatmul.f32.gmra.mxu0 %v2642
      %v2754 = vpop.f32.mrf.mxu0
      %v2755 = vadd.f32 0.0, %v2754
      %2756 = vmatmul.f32.gmra.mxu0 %v2645
      %v2757 = vpop.f32.mrf.mxu0
      %v2758 = vadd.f32 0.0, %v2757
      %2759 = vmatmul.f32.gmra.mxu0 %v2648
      %v2760 = vpop.f32.mrf.mxu0
      %v2761 = vadd.f32 0.0, %v2760
      %2762 = vmatmul.f32.gmra.mxu0 %v2651
      %v2763 = vpop.f32.mrf.mxu0
      %v2764 = vadd.f32 0.0, %v2763
      %2765 = vmatmul.f32.gmra.mxu0 %v2654
      %v2766 = vpop.f32.mrf.mxu0
      %v2767 = vadd.f32 0.0, %v2766
      %2768 = vmatmul.f32.gmra.mxu0 %v2657
      %v2769 = vpop.f32.mrf.mxu0
      %v2770 = vadd.f32 0.0, %v2769
      %2771 = vmatmul.f32.gmra.mxu0 %v2660
      %v2772 = vpop.f32.mrf.mxu0
      %v2773 = vadd.f32 0.0, %v2772
      %2774 = vmatmul.f32.gmra.mxu0 %v2663
      %v2775 = vpop.f32.mrf.mxu0
      %v2776 = vadd.f32 0.0, %v2775
      %2777 = vmatmul.f32.gmra.mxu0 %v2666
      %v2778 = vpop.f32.mrf.mxu0
      %v2779 = vadd.f32 0.0, %v2778
      %2780 = vmatmul.f32.gmra.mxu0 %v2669
      %v2781 = vpop.f32.mrf.mxu0
      %v2782 = vadd.f32 0.0, %v2781
      %2783 = vmatmul.f32.gmra.mxu0 %v2672
      %v2784 = vpop.f32.mrf.mxu0
      %v2785 = vadd.f32 0.0, %v2784
      %2786 = vmatmul.f32.gmra.mxu0 %v2675
      %v2787 = vpop.f32.mrf.mxu0
      %v2788 = vadd.f32 0.0, %v2787
      %2789 = vmatmul.f32.gmra.mxu0 %v2678
      %v2790 = vpop.f32.mrf.mxu0
      %v2791 = vadd.f32 0.0, %v2790
      %2792 = vmatmul.f32.gmra.mxu0 %v2681
      %v2793 = vpop.f32.mrf.mxu0
      %v2794 = vadd.f32 0.0, %v2793
      %2795 = vmatmul.f32.gmra.mxu0 %v2684
      %v2796 = vpop.f32.mrf.mxu0
      %v2797 = vadd.f32 0.0, %v2796
      %2798 = vdwg.mxu0
      %v2799 = vmul.f32 %v2704, %v1186
      %v2800 = vmul.f32 %v2707, %v1186
      %v2801 = vmul.f32 %v2710, %v1186
      %v2802 = vmul.f32 %v2713, %v1186
      %v2803 = vmul.f32 %v2716, %v1186
      %v2804 = vmul.f32 %v2719, %v1186
      %v2805 = vmul.f32 %v2722, %v1186
      %v2806 = vmul.f32 %v2725, %v1186
      %v2807 = vmul.f32 %v2728, %v1186
      %v2808 = vmul.f32 %v2731, %v1186
      %v2809 = vmul.f32 %v2734, %v1186
      %v2810 = vmul.f32 %v2737, %v1186
      %v2811 = vmul.f32 %v2740, %v1186
      %v2812 = vmul.f32 %v2743, %v1186
      %v2813 = vmul.f32 %v2746, %v1186
      %v2814 = vmul.f32 %v2749, %v1186
      %v2815 = vmul.f32 %v2752, %v1186
      %v2816 = vmul.f32 %v2755, %v1186
      %v2817 = vmul.f32 %v2758, %v1186
      %v2818 = vmul.f32 %v2761, %v1186
      %v2819 = vmul.f32 %v2764, %v1186
      %v2820 = vmul.f32 %v2767, %v1186
      %v2821 = vmul.f32 %v2770, %v1186
      %v2822 = vmul.f32 %v2773, %v1186
      %v2823 = vmul.f32 %v2776, %v1186
      %v2824 = vmul.f32 %v2779, %v1186
      %v2825 = vmul.f32 %v2782, %v1186
      %v2826 = vmul.f32 %v2785, %v1186
      %v2827 = vmul.f32 %v2788, %v1186
      %v2828 = vmul.f32 %v2791, %v1186
      %v2829 = vmul.f32 %v2794, %v1186
      %v2830 = vmul.f32 %v2797, %v1186
      %v2831 = vadd.f32 %v2799, %v1221
      %v2832 = vadd.f32 %v2800, %v1221
      %v2833 = vadd.f32 %v2801, %v1221
      %v2834 = vadd.f32 %v2802, %v1221
      %v2835 = vadd.f32 %v2803, %v1221
      %v2836 = vadd.f32 %v2804, %v1221
      %v2837 = vadd.f32 %v2805, %v1221
      %v2838 = vadd.f32 %v2806, %v1221
      %v2839 = vadd.f32 %v2807, %v1221
      %v2840 = vadd.f32 %v2808, %v1221
      %v2841 = vadd.f32 %v2809, %v1221
      %v2842 = vadd.f32 %v2810, %v1221
      %v2843 = vadd.f32 %v2811, %v1221
      %v2844 = vadd.f32 %v2812, %v1221
      %v2845 = vadd.f32 %v2813, %v1221
      %v2846 = vadd.f32 %v2814, %v1221
      %v2847 = vadd.f32 %v2815, %v1221
      %v2848 = vadd.f32 %v2816, %v1221
      %v2849 = vadd.f32 %v2817, %v1221
      %v2850 = vadd.f32 %v2818, %v1221
      %v2851 = vadd.f32 %v2819, %v1221
      %v2852 = vadd.f32 %v2820, %v1221
      %v2853 = vadd.f32 %v2821, %v1221
      %v2854 = vadd.f32 %v2822, %v1221
      %v2855 = vadd.f32 %v2823, %v1221
      %v2856 = vadd.f32 %v2824, %v1221
      %v2857 = vadd.f32 %v2825, %v1221
      %v2858 = vadd.f32 %v2826, %v1221
      %v2859 = vadd.f32 %v2827, %v1221
      %v2860 = vadd.f32 %v2828, %v1221
      %v2861 = vadd.f32 %v2829, %v1221
      %v2862 = vadd.f32 %v2830, %v1221
      %vm2863 = vcmp.ge.f32.partialorder %v2831, 0.0
      %vm2864 = vcmp.ge.f32.partialorder %v2832, 0.0
      %vm2865 = vcmp.ge.f32.partialorder %v2833, 0.0
      %vm2866 = vcmp.ge.f32.partialorder %v2834, 0.0
      %vm2867 = vcmp.ge.f32.partialorder %v2835, 0.0
      %vm2868 = vcmp.ge.f32.partialorder %v2836, 0.0
      %vm2869 = vcmp.ge.f32.partialorder %v2837, 0.0
      %vm2870 = vcmp.ge.f32.partialorder %v2838, 0.0
      %vm2871 = vcmp.ge.f32.partialorder %v2839, 0.0
      %vm2872 = vcmp.ge.f32.partialorder %v2840, 0.0
      %vm2873 = vcmp.ge.f32.partialorder %v2841, 0.0
      %vm2874 = vcmp.ge.f32.partialorder %v2842, 0.0
      %vm2875 = vcmp.ge.f32.partialorder %v2843, 0.0
      %vm2876 = vcmp.ge.f32.partialorder %v2844, 0.0
      %vm2877 = vcmp.ge.f32.partialorder %v2845, 0.0
      %vm2878 = vcmp.ge.f32.partialorder %v2846, 0.0
      %vm2879 = vcmp.ge.f32.partialorder %v2847, 0.0
      %vm2880 = vcmp.ge.f32.partialorder %v2848, 0.0
      %vm2881 = vcmp.ge.f32.partialorder %v2849, 0.0
      %vm2882 = vcmp.ge.f32.partialorder %v2850, 0.0
      %vm2883 = vcmp.ge.f32.partialorder %v2851, 0.0
      %vm2884 = vcmp.ge.f32.partialorder %v2852, 0.0
      %vm2885 = vcmp.ge.f32.partialorder %v2853, 0.0
      %vm2886 = vcmp.ge.f32.partialorder %v2854, 0.0
      %vm2887 = vcmp.ge.f32.partialorder %v2855, 0.0
      %vm2888 = vcmp.ge.f32.partialorder %v2856, 0.0
      %vm2889 = vcmp.ge.f32.partialorder %v2857, 0.0
      %vm2890 = vcmp.ge.f32.partialorder %v2858, 0.0
      %vm2891 = vcmp.ge.f32.partialorder %v2859, 0.0
      %vm2892 = vcmp.ge.f32.partialorder %v2860, 0.0
      %vm2893 = vcmp.ge.f32.partialorder %v2861, 0.0
      %vm2894 = vcmp.ge.f32.partialorder %v2862, 0.0
      %v2895 = vmul.f32 %v2831, 0.2
      %v2896 = vmul.f32 %v2832, 0.2
      %v2897 = vmul.f32 %v2833, 0.2
      %v2898 = vmul.f32 %v2834, 0.2
      %v2899 = vmul.f32 %v2835, 0.2
      %v2900 = vmul.f32 %v2836, 0.2
      %v2901 = vmul.f32 %v2837, 0.2
      %v2902 = vmul.f32 %v2838, 0.2
      %v2903 = vmul.f32 %v2839, 0.2
      %v2904 = vmul.f32 %v2840, 0.2
      %v2905 = vmul.f32 %v2841, 0.2
      %v2906 = vmul.f32 %v2842, 0.2
      %v2907 = vmul.f32 %v2843, 0.2
      %v2908 = vmul.f32 %v2844, 0.2
      %v2909 = vmul.f32 %v2845, 0.2
      %v2910 = vmul.f32 %v2846, 0.2
      %v2911 = vmul.f32 %v2847, 0.2
      %v2912 = vmul.f32 %v2848, 0.2
      %v2913 = vmul.f32 %v2849, 0.2
      %v2914 = vmul.f32 %v2850, 0.2
      %v2915 = vmul.f32 %v2851, 0.2
      %v2916 = vmul.f32 %v2852, 0.2
      %v2917 = vmul.f32 %v2853, 0.2
      %v2918 = vmul.f32 %v2854, 0.2
      %v2919 = vmul.f32 %v2855, 0.2
      %v2920 = vmul.f32 %v2856, 0.2
      %v2921 = vmul.f32 %v2857, 0.2
      %v2922 = vmul.f32 %v2858, 0.2
      %v2923 = vmul.f32 %v2859, 0.2
      %v2924 = vmul.f32 %v2860, 0.2
      %v2925 = vmul.f32 %v2861, 0.2
      %v2926 = vmul.f32 %v2862, 0.2
      %v2927 = vsel %vm2863, %v2831, %v2895
      %v2928 = vsel %vm2864, %v2832, %v2896
      %v2929 = vsel %vm2865, %v2833, %v2897
      %v2930 = vsel %vm2866, %v2834, %v2898
      %v2931 = vsel %vm2867, %v2835, %v2899
      %v2932 = vsel %vm2868, %v2836, %v2900
      %v2933 = vsel %vm2869, %v2837, %v2901
      %v2934 = vsel %vm2870, %v2838, %v2902
      %v2935 = vsel %vm2871, %v2839, %v2903
      %v2936 = vsel %vm2872, %v2840, %v2904
      %v2937 = vsel %vm2873, %v2841, %v2905
      %v2938 = vsel %vm2874, %v2842, %v2906
      %v2939 = vsel %vm2875, %v2843, %v2907
      %v2940 = vsel %vm2876, %v2844, %v2908
      %v2941 = vsel %vm2877, %v2845, %v2909
      %v2942 = vsel %vm2878, %v2846, %v2910
      %v2943 = vsel %vm2879, %v2847, %v2911
      %v2944 = vsel %vm2880, %v2848, %v2912
      %v2945 = vsel %vm2881, %v2849, %v2913
      %v2946 = vsel %vm2882, %v2850, %v2914
      %v2947 = vsel %vm2883, %v2851, %v2915
      %v2948 = vsel %vm2884, %v2852, %v2916
      %v2949 = vsel %vm2885, %v2853, %v2917
      %v2950 = vsel %vm2886, %v2854, %v2918
      %v2951 = vsel %vm2887, %v2855, %v2919
      %v2952 = vsel %vm2888, %v2856, %v2920
      %v2953 = vsel %vm2889, %v2857, %v2921
      %v2954 = vsel %vm2890, %v2858, %v2922
      %v2955 = vsel %vm2891, %v2859, %v2923
      %v2956 = vsel %vm2892, %v2860, %v2924
      %v2957 = vsel %vm2893, %v2861, %v2925
      %v2958 = vsel %vm2894, %v2862, %v2926
      %2991 = vrot.lane.b32.xlu0 %v458, 12
      %v2992 = vpop.permute.xlu0 %2991
      %2993 = vrot.lane.b32.xlu0 %v459, 12
      %v2994 = vpop.permute.xlu0 %2993
      %2995 = vrot.lane.b32.xlu0 %v460, 12
      %v2996 = vpop.permute.xlu0 %2995
      %2997 = vrot.lane.b32.xlu0 %v461, 12
      %v2998 = vpop.permute.xlu0 %2997
      %2999 = vrot.lane.b32.xlu0 %v462, 12
      %v3000 = vpop.permute.xlu0 %2999
      %3001 = vrot.lane.b32.xlu0 %v463, 12
      %v3002 = vpop.permute.xlu0 %3001
      %3003 = vrot.lane.b32.xlu0 %v464, 12
      %v3004 = vpop.permute.xlu0 %3003
      %3005 = vrot.lane.b32.xlu0 %v465, 12
      %v3006 = vpop.permute.xlu0 %3005
      %3007 = vrot.lane.b32.xlu0 %v466, 12
      %v3008 = vpop.permute.xlu0 %3007
      %3009 = vrot.lane.b32.xlu0 %v467, 12
      %v3010 = vpop.permute.xlu0 %3009
      %3011 = vrot.lane.b32.xlu0 %v468, 12
      %v3012 = vpop.permute.xlu0 %3011
      %3013 = vrot.lane.b32.xlu0 %v469, 12
      %v3014 = vpop.permute.xlu0 %3013
      %3015 = vrot.lane.b32.xlu0 %v470, 12
      %v3016 = vpop.permute.xlu0 %3015
      %3017 = vrot.lane.b32.xlu0 %v471, 12
      %v3018 = vpop.permute.xlu0 %3017
      %3019 = vrot.lane.b32.xlu0 %v472, 12
      %v3020 = vpop.permute.xlu0 %3019
      %3021 = vrot.lane.b32.xlu0 %v473, 12
      %v3022 = vpop.permute.xlu0 %3021
      %3023 = vrot.lane.b32.xlu0 %v474, 12
      %v3024 = vpop.permute.xlu0 %3023
      %3025 = vrot.lane.b32.xlu0 %v475, 12
      %v3026 = vpop.permute.xlu0 %3025
      %3027 = vrot.lane.b32.xlu0 %v476, 12
      %v3028 = vpop.permute.xlu0 %3027
      %3029 = vrot.lane.b32.xlu0 %v477, 12
      %v3030 = vpop.permute.xlu0 %3029
      %3031 = vrot.lane.b32.xlu0 %v478, 12
      %v3032 = vpop.permute.xlu0 %3031
      %3033 = vrot.lane.b32.xlu0 %v479, 12
      %v3034 = vpop.permute.xlu0 %3033
      %3035 = vrot.lane.b32.xlu0 %v480, 12
      %v3036 = vpop.permute.xlu0 %3035
      %3037 = vrot.lane.b32.xlu0 %v481, 12
      %v3038 = vpop.permute.xlu0 %3037
      %3039 = vrot.lane.b32.xlu0 %v482, 12
      %v3040 = vpop.permute.xlu0 %3039
      %3041 = vrot.lane.b32.xlu0 %v483, 12
      %v3042 = vpop.permute.xlu0 %3041
      %3043 = vrot.lane.b32.xlu0 %v484, 12
      %v3044 = vpop.permute.xlu0 %3043
      %3045 = vrot.lane.b32.xlu0 %v485, 12
      %v3046 = vpop.permute.xlu0 %3045
      %3047 = vrot.lane.b32.xlu0 %v486, 12
      %v3048 = vpop.permute.xlu0 %3047
      %3049 = vrot.lane.b32.xlu0 %v487, 12
      %v3050 = vpop.permute.xlu0 %3049
      %3051 = vrot.lane.b32.xlu0 %v488, 12
      %v3052 = vpop.permute.xlu0 %3051
      %3053 = vrot.lane.b32.xlu0 %v489, 12
      %v3054 = vpop.permute.xlu0 %3053
      %v3087 = vsel %vm907, %v1607, %v2300
      %v3088 = vsel %vm907, %v1608, %v2302
      %v3089 = vsel %vm907, %v1609, %v2304
      %v3090 = vsel %vm907, %v1610, %v2306
      %v3091 = vsel %vm907, %v1611, %v2308
      %v3092 = vsel %vm907, %v1612, %v2310
      %v3093 = vsel %vm907, %v1613, %v2312
      %v3094 = vsel %vm907, %v1614, %v2314
      %v3095 = vsel %vm907, %v1615, %v2316
      %v3096 = vsel %vm907, %v1616, %v2318
      %v3097 = vsel %vm907, %v1617, %v2320
      %v3098 = vsel %vm907, %v1618, %v2322
      %v3099 = vsel %vm907, %v1619, %v2324
      %v3100 = vsel %vm907, %v1620, %v2326
      %v3101 = vsel %vm907, %v1621, %v2328
      %v3102 = vsel %vm907, %v1622, %v2330
      %v3103 = vsel %vm907, %v1623, %v2332
      %v3104 = vsel %vm907, %v1624, %v2334
      %v3105 = vsel %vm907, %v1625, %v2336
      %v3106 = vsel %vm907, %v1626, %v2338
      %v3107 = vsel %vm907, %v1627, %v2340
      %v3108 = vsel %vm907, %v1628, %v2342
      %v3109 = vsel %vm907, %v1629, %v2344
      %v3110 = vsel %vm907, %v1630, %v2346
      %v3111 = vsel %vm907, %v1631, %v2348
      %v3112 = vsel %vm907, %v1632, %v2350
      %v3113 = vsel %vm907, %v1633, %v2352
      %v3114 = vsel %vm907, %v1634, %v2354
      %v3115 = vsel %vm907, %v1635, %v2356
      %v3116 = vsel %vm907, %v1636, %v2358
      %v3117 = vsel %vm907, %v1637, %v2360
      %v3118 = vsel %vm907, %v1638, %v2362
      %v3119 = vsel %vm940, %v3087, %v2992
      %v3120 = vsel %vm940, %v3088, %v2994
      %v3121 = vsel %vm940, %v3089, %v2996
      %v3122 = vsel %vm940, %v3090, %v2998
      %v3123 = vsel %vm940, %v3091, %v3000
      %v3124 = vsel %vm940, %v3092, %v3002
      %v3125 = vsel %vm940, %v3093, %v3004
      %v3126 = vsel %vm940, %v3094, %v3006
      %v3127 = vsel %vm940, %v3095, %v3008
      %v3128 = vsel %vm940, %v3096, %v3010
      %v3129 = vsel %vm940, %v3097, %v3012
      %v3130 = vsel %vm940, %v3098, %v3014
      %v3131 = vsel %vm940, %v3099, %v3016
      %v3132 = vsel %vm940, %v3100, %v3018
      %v3133 = vsel %vm940, %v3101, %v3020
      %v3134 = vsel %vm940, %v3102, %v3022
      %v3135 = vsel %vm940, %v3103, %v3024
      %v3136 = vsel %vm940, %v3104, %v3026
      %v3137 = vsel %vm940, %v3105, %v3028
      %v3138 = vsel %vm940, %v3106, %v3030
      %v3139 = vsel %vm940, %v3107, %v3032
      %v3140 = vsel %vm940, %v3108, %v3034
      %v3141 = vsel %vm940, %v3109, %v3036
      %v3142 = vsel %vm940, %v3110, %v3038
      %v3143 = vsel %vm940, %v3111, %v3040
      %v3144 = vsel %vm940, %v3112, %v3042
      %v3145 = vsel %vm940, %v3113, %v3044
      %v3146 = vsel %vm940, %v3114, %v3046
      %v3147 = vsel %vm940, %v3115, %v3048
      %v3148 = vsel %vm940, %v3116, %v3050
      %v3149 = vsel %vm940, %v3117, %v3052
      %v3150 = vsel %vm940, %v3118, %v3054
      %s3151 = scalar_lea.vmem %s1, 48
      %v3152 = vld [vmem:[%s3151] sm:$0xff]
      %v3153 = vld [vmem:[%s3151 + $0x8] sm:$0xff]
      %v3155 = vsel %vm975, %v3119, 0
      %v3158 = vsel %vm975, %v3120, 0
      %v3161 = vsel %vm975, %v3121, 0
      %v3164 = vsel %vm975, %v3122, 0
      %v3167 = vsel %vm975, %v3123, 0
      %v3170 = vsel %vm975, %v3124, 0
      %v3173 = vsel %vm975, %v3125, 0
      %v3176 = vsel %vm975, %v3126, 0
      %v3179 = vsel %vm975, %v3127, 0
      %v3182 = vsel %vm975, %v3128, 0
      %v3185 = vsel %vm975, %v3129, 0
      %v3188 = vsel %vm975, %v3130, 0
      %v3191 = vsel %vm975, %v3131, 0
      %v3194 = vsel %vm975, %v3132, 0
      %v3197 = vsel %vm975, %v3133, 0
      %v3200 = vsel %vm975, %v3134, 0
      %v3203 = vsel %vm975, %v3135, 0
      %v3206 = vsel %vm975, %v3136, 0
      %v3209 = vsel %vm975, %v3137, 0
      %v3212 = vsel %vm975, %v3138, 0
      %v3215 = vsel %vm975, %v3139, 0
      %v3218 = vsel %vm975, %v3140, 0
      %v3221 = vsel %vm975, %v3141, 0
      %v3224 = vsel %vm975, %v3142, 0
      %v3227 = vsel %vm975, %v3143, 0
      %v3230 = vsel %vm975, %v3144, 0
      %v3233 = vsel %vm975, %v3145, 0
      %v3236 = vsel %vm975, %v3146, 0
      %v3239 = vsel %vm975, %v3147, 0
      %v3242 = vsel %vm975, %v3148, 0
      %v3245 = vsel %vm975, %v3149, 0
      %v3248 = vsel %vm975, %v3150, 0
      %3250 = vmatpush.msra.mxu0 0.0
      %3251 = vmatpush.msra.mxu0 0.0
      %3252 = vmatpush.msra.mxu0 0.0
      %3253 = vmatpush.msra.mxu0 0.0
      %3254 = vmatpush.msra.mxu0 0.0
      %3255 = vmatpush.msra.mxu0 0.0
      %3256 = vmatpush.msra.mxu0 0.0
      %3257 = vmatpush.msra.mxu0 0.0
      %3258 = vmatpush.msra.mxu0 0.0
      %3259 = vmatpush.msra.mxu0 0.0
      %3260 = vmatpush.msra.mxu0 0.0
      %3261 = vmatpush.msra.mxu0 0.0
      %3262 = vmatpush.msra.mxu0 0.0
      %3263 = vmatpush.msra.mxu0 0.0
      %3264 = vmatpush.msra.mxu0 %v3153
      %3265 = vmatpush.msra.mxu0 %v3152
      %3266 = vmatmul.f32.gmra.mxu0 %v3155
      %v3267 = vpop.f32.mrf.mxu0
      %v3268 = vadd.f32 0.0, %v3267
      %3269 = vmatmul.f32.gmra.mxu0 %v3158
      %v3270 = vpop.f32.mrf.mxu0
      %v3271 = vadd.f32 0.0, %v3270
      %3272 = vmatmul.f32.gmra.mxu0 %v3161
      %v3273 = vpop.f32.mrf.mxu0
      %v3274 = vadd.f32 0.0, %v3273
      %3275 = vmatmul.f32.gmra.mxu0 %v3164
      %v3276 = vpop.f32.mrf.mxu0
      %v3277 = vadd.f32 0.0, %v3276
      %3278 = vmatmul.f32.gmra.mxu0 %v3167
      %v3279 = vpop.f32.mrf.mxu0
      %v3280 = vadd.f32 0.0, %v3279
      %3281 = vmatmul.f32.gmra.mxu0 %v3170
      %v3282 = vpop.f32.mrf.mxu0
      %v3283 = vadd.f32 0.0, %v3282
      %3284 = vmatmul.f32.gmra.mxu0 %v3173
      %v3285 = vpop.f32.mrf.mxu0
      %v3286 = vadd.f32 0.0, %v3285
      %3287 = vmatmul.f32.gmra.mxu0 %v3176
      %v3288 = vpop.f32.mrf.mxu0
      %v3289 = vadd.f32 0.0, %v3288
      %3290 = vmatmul.f32.gmra.mxu0 %v3179
      %v3291 = vpop.f32.mrf.mxu0
      %v3292 = vadd.f32 0.0, %v3291
      %3293 = vmatmul.f32.gmra.mxu0 %v3182
      %v3294 = vpop.f32.mrf.mxu0
      %v3295 = vadd.f32 0.0, %v3294
      %3296 = vmatmul.f32.gmra.mxu0 %v3185
      %v3297 = vpop.f32.mrf.mxu0
      %v3298 = vadd.f32 0.0, %v3297
      %3299 = vmatmul.f32.gmra.mxu0 %v3188
      %v3300 = vpop.f32.mrf.mxu0
      %v3301 = vadd.f32 0.0, %v3300
      %3302 = vmatmul.f32.gmra.mxu0 %v3191
      %v3303 = vpop.f32.mrf.mxu0
      %v3304 = vadd.f32 0.0, %v3303
      %3305 = vmatmul.f32.gmra.mxu0 %v3194
      %v3306 = vpop.f32.mrf.mxu0
      %v3307 = vadd.f32 0.0, %v3306
      %3308 = vmatmul.f32.gmra.mxu0 %v3197
      %v3309 = vpop.f32.mrf.mxu0
      %v3310 = vadd.f32 0.0, %v3309
      %3311 = vmatmul.f32.gmra.mxu0 %v3200
      %v3312 = vpop.f32.mrf.mxu0
      %v3313 = vadd.f32 0.0, %v3312
      %3314 = vmatmul.f32.gmra.mxu0 %v3203
      %v3315 = vpop.f32.mrf.mxu0
      %v3316 = vadd.f32 0.0, %v3315
      %3317 = vmatmul.f32.gmra.mxu0 %v3206
      %v3318 = vpop.f32.mrf.mxu0
      %v3319 = vadd.f32 0.0, %v3318
      %3320 = vmatmul.f32.gmra.mxu0 %v3209
      %v3321 = vpop.f32.mrf.mxu0
      %v3322 = vadd.f32 0.0, %v3321
      %3323 = vmatmul.f32.gmra.mxu0 %v3212
      %v3324 = vpop.f32.mrf.mxu0
      %v3325 = vadd.f32 0.0, %v3324
      %3326 = vmatmul.f32.gmra.mxu0 %v3215
      %v3327 = vpop.f32.mrf.mxu0
      %v3328 = vadd.f32 0.0, %v3327
      %3329 = vmatmul.f32.gmra.mxu0 %v3218
      %v3330 = vpop.f32.mrf.mxu0
      %v3331 = vadd.f32 0.0, %v3330
      %3332 = vmatmul.f32.gmra.mxu0 %v3221
      %v3333 = vpop.f32.mrf.mxu0
      %v3334 = vadd.f32 0.0, %v3333
      %3335 = vmatmul.f32.gmra.mxu0 %v3224
      %v3336 = vpop.f32.mrf.mxu0
      %v3337 = vadd.f32 0.0, %v3336
      %3338 = vmatmul.f32.gmra.mxu0 %v3227
      %v3339 = vpop.f32.mrf.mxu0
      %v3340 = vadd.f32 0.0, %v3339
      %3341 = vmatmul.f32.gmra.mxu0 %v3230
      %v3342 = vpop.f32.mrf.mxu0
      %v3343 = vadd.f32 0.0, %v3342
      %3344 = vmatmul.f32.gmra.mxu0 %v3233
      %v3345 = vpop.f32.mrf.mxu0
      %v3346 = vadd.f32 0.0, %v3345
      %3347 = vmatmul.f32.gmra.mxu0 %v3236
      %v3348 = vpop.f32.mrf.mxu0
      %v3349 = vadd.f32 0.0, %v3348
      %3350 = vmatmul.f32.gmra.mxu0 %v3239
      %v3351 = vpop.f32.mrf.mxu0
      %v3352 = vadd.f32 0.0, %v3351
      %3353 = vmatmul.f32.gmra.mxu0 %v3242
      %v3354 = vpop.f32.mrf.mxu0
      %v3355 = vadd.f32 0.0, %v3354
      %3356 = vmatmul.f32.gmra.mxu0 %v3245
      %v3357 = vpop.f32.mrf.mxu0
      %v3358 = vadd.f32 0.0, %v3357
      %3359 = vmatmul.f32.gmra.mxu0 %v3248
      %v3360 = vpop.f32.mrf.mxu0
      %v3361 = vadd.f32 0.0, %v3360
      %3362 = vdwg.mxu0
      %v3363 = vmul.f32 %v3268, %v1186
      %v3364 = vmul.f32 %v3271, %v1186
      %v3365 = vmul.f32 %v3274, %v1186
      %v3366 = vmul.f32 %v3277, %v1186
      %v3367 = vmul.f32 %v3280, %v1186
      %v3368 = vmul.f32 %v3283, %v1186
      %v3369 = vmul.f32 %v3286, %v1186
      %v3370 = vmul.f32 %v3289, %v1186
      %v3371 = vmul.f32 %v3292, %v1186
      %v3372 = vmul.f32 %v3295, %v1186
      %v3373 = vmul.f32 %v3298, %v1186
      %v3374 = vmul.f32 %v3301, %v1186
      %v3375 = vmul.f32 %v3304, %v1186
      %v3376 = vmul.f32 %v3307, %v1186
      %v3377 = vmul.f32 %v3310, %v1186
      %v3378 = vmul.f32 %v3313, %v1186
      %v3379 = vmul.f32 %v3316, %v1186
      %v3380 = vmul.f32 %v3319, %v1186
      %v3381 = vmul.f32 %v3322, %v1186
      %v3382 = vmul.f32 %v3325, %v1186
      %v3383 = vmul.f32 %v3328, %v1186
      %v3384 = vmul.f32 %v3331, %v1186
      %v3385 = vmul.f32 %v3334, %v1186
      %v3386 = vmul.f32 %v3337, %v1186
      %v3387 = vmul.f32 %v3340, %v1186
      %v3388 = vmul.f32 %v3343, %v1186
      %v3389 = vmul.f32 %v3346, %v1186
      %v3390 = vmul.f32 %v3349, %v1186
      %v3391 = vmul.f32 %v3352, %v1186
      %v3392 = vmul.f32 %v3355, %v1186
      %v3393 = vmul.f32 %v3358, %v1186
      %v3394 = vmul.f32 %v3361, %v1186
      %v3395 = vadd.f32 %v3363, %v1221
      %v3396 = vadd.f32 %v3364, %v1221
      %v3397 = vadd.f32 %v3365, %v1221
      %v3398 = vadd.f32 %v3366, %v1221
      %v3399 = vadd.f32 %v3367, %v1221
      %v3400 = vadd.f32 %v3368, %v1221
      %v3401 = vadd.f32 %v3369, %v1221
      %v3402 = vadd.f32 %v3370, %v1221
      %v3403 = vadd.f32 %v3371, %v1221
      %v3404 = vadd.f32 %v3372, %v1221
      %v3405 = vadd.f32 %v3373, %v1221
      %v3406 = vadd.f32 %v3374, %v1221
      %v3407 = vadd.f32 %v3375, %v1221
      %v3408 = vadd.f32 %v3376, %v1221
      %v3409 = vadd.f32 %v3377, %v1221
      %v3410 = vadd.f32 %v3378, %v1221
      %v3411 = vadd.f32 %v3379, %v1221
      %v3412 = vadd.f32 %v3380, %v1221
      %v3413 = vadd.f32 %v3381, %v1221
      %v3414 = vadd.f32 %v3382, %v1221
      %v3415 = vadd.f32 %v3383, %v1221
      %v3416 = vadd.f32 %v3384, %v1221
      %v3417 = vadd.f32 %v3385, %v1221
      %v3418 = vadd.f32 %v3386, %v1221
      %v3419 = vadd.f32 %v3387, %v1221
      %v3420 = vadd.f32 %v3388, %v1221
      %v3421 = vadd.f32 %v3389, %v1221
      %v3422 = vadd.f32 %v3390, %v1221
      %v3423 = vadd.f32 %v3391, %v1221
      %v3424 = vadd.f32 %v3392, %v1221
      %v3425 = vadd.f32 %v3393, %v1221
      %v3426 = vadd.f32 %v3394, %v1221
      %vm3427 = vcmp.ge.f32.partialorder %v3395, 0.0
      %vm3428 = vcmp.ge.f32.partialorder %v3396, 0.0
      %vm3429 = vcmp.ge.f32.partialorder %v3397, 0.0
      %vm3430 = vcmp.ge.f32.partialorder %v3398, 0.0
      %vm3431 = vcmp.ge.f32.partialorder %v3399, 0.0
      %vm3432 = vcmp.ge.f32.partialorder %v3400, 0.0
      %vm3433 = vcmp.ge.f32.partialorder %v3401, 0.0
      %vm3434 = vcmp.ge.f32.partialorder %v3402, 0.0
      %vm3435 = vcmp.ge.f32.partialorder %v3403, 0.0
      %vm3436 = vcmp.ge.f32.partialorder %v3404, 0.0
      %vm3437 = vcmp.ge.f32.partialorder %v3405, 0.0
      %vm3438 = vcmp.ge.f32.partialorder %v3406, 0.0
      %vm3439 = vcmp.ge.f32.partialorder %v3407, 0.0
      %vm3440 = vcmp.ge.f32.partialorder %v3408, 0.0
      %vm3441 = vcmp.ge.f32.partialorder %v3409, 0.0
      %vm3442 = vcmp.ge.f32.partialorder %v3410, 0.0
      %vm3443 = vcmp.ge.f32.partialorder %v3411, 0.0
      %vm3444 = vcmp.ge.f32.partialorder %v3412, 0.0
      %vm3445 = vcmp.ge.f32.partialorder %v3413, 0.0
      %vm3446 = vcmp.ge.f32.partialorder %v3414, 0.0
      %vm3447 = vcmp.ge.f32.partialorder %v3415, 0.0
      %vm3448 = vcmp.ge.f32.partialorder %v3416, 0.0
      %vm3449 = vcmp.ge.f32.partialorder %v3417, 0.0
      %vm3450 = vcmp.ge.f32.partialorder %v3418, 0.0
      %vm3451 = vcmp.ge.f32.partialorder %v3419, 0.0
      %vm3452 = vcmp.ge.f32.partialorder %v3420, 0.0
      %vm3453 = vcmp.ge.f32.partialorder %v3421, 0.0
      %vm3454 = vcmp.ge.f32.partialorder %v3422, 0.0
      %vm3455 = vcmp.ge.f32.partialorder %v3423, 0.0
      %vm3456 = vcmp.ge.f32.partialorder %v3424, 0.0
      %vm3457 = vcmp.ge.f32.partialorder %v3425, 0.0
      %vm3458 = vcmp.ge.f32.partialorder %v3426, 0.0
      %v3459 = vmul.f32 %v3395, 0.2
      %v3460 = vmul.f32 %v3396, 0.2
      %v3461 = vmul.f32 %v3397, 0.2
      %v3462 = vmul.f32 %v3398, 0.2
      %v3463 = vmul.f32 %v3399, 0.2
      %v3464 = vmul.f32 %v3400, 0.2
      %v3465 = vmul.f32 %v3401, 0.2
      %v3466 = vmul.f32 %v3402, 0.2
      %v3467 = vmul.f32 %v3403, 0.2
      %v3468 = vmul.f32 %v3404, 0.2
      %v3469 = vmul.f32 %v3405, 0.2
      %v3470 = vmul.f32 %v3406, 0.2
      %v3471 = vmul.f32 %v3407, 0.2
      %v3472 = vmul.f32 %v3408, 0.2
      %v3473 = vmul.f32 %v3409, 0.2
      %v3474 = vmul.f32 %v3410, 0.2
      %v3475 = vmul.f32 %v3411, 0.2
      %v3476 = vmul.f32 %v3412, 0.2
      %v3477 = vmul.f32 %v3413, 0.2
      %v3478 = vmul.f32 %v3414, 0.2
      %v3479 = vmul.f32 %v3415, 0.2
      %v3480 = vmul.f32 %v3416, 0.2
      %v3481 = vmul.f32 %v3417, 0.2
      %v3482 = vmul.f32 %v3418, 0.2
      %v3483 = vmul.f32 %v3419, 0.2
      %v3484 = vmul.f32 %v3420, 0.2
      %v3485 = vmul.f32 %v3421, 0.2
      %v3486 = vmul.f32 %v3422, 0.2
      %v3487 = vmul.f32 %v3423, 0.2
      %v3488 = vmul.f32 %v3424, 0.2
      %v3489 = vmul.f32 %v3425, 0.2
      %v3490 = vmul.f32 %v3426, 0.2
      %v3491 = vsel %vm3427, %v3395, %v3459
      %v3492 = vsel %vm3428, %v3396, %v3460
      %v3493 = vsel %vm3429, %v3397, %v3461
      %v3494 = vsel %vm3430, %v3398, %v3462
      %v3495 = vsel %vm3431, %v3399, %v3463
      %v3496 = vsel %vm3432, %v3400, %v3464
      %v3497 = vsel %vm3433, %v3401, %v3465
      %v3498 = vsel %vm3434, %v3402, %v3466
      %v3499 = vsel %vm3435, %v3403, %v3467
      %v3500 = vsel %vm3436, %v3404, %v3468
      %v3501 = vsel %vm3437, %v3405, %v3469
      %v3502 = vsel %vm3438, %v3406, %v3470
      %v3503 = vsel %vm3439, %v3407, %v3471
      %v3504 = vsel %vm3440, %v3408, %v3472
      %v3505 = vsel %vm3441, %v3409, %v3473
      %v3506 = vsel %vm3442, %v3410, %v3474
      %v3507 = vsel %vm3443, %v3411, %v3475
      %v3508 = vsel %vm3444, %v3412, %v3476
      %v3509 = vsel %vm3445, %v3413, %v3477
      %v3510 = vsel %vm3446, %v3414, %v3478
      %v3511 = vsel %vm3447, %v3415, %v3479
      %v3512 = vsel %vm3448, %v3416, %v3480
      %v3513 = vsel %vm3449, %v3417, %v3481
      %v3514 = vsel %vm3450, %v3418, %v3482
      %v3515 = vsel %vm3451, %v3419, %v3483
      %v3516 = vsel %vm3452, %v3420, %v3484
      %v3517 = vsel %vm3453, %v3421, %v3485
      %v3518 = vsel %vm3454, %v3422, %v3486
      %v3519 = vsel %vm3455, %v3423, %v3487
      %v3520 = vsel %vm3456, %v3424, %v3488
      %v3521 = vsel %vm3457, %v3425, %v3489
      %v3522 = vsel %vm3458, %v3426, %v3490
      %3555 = vrot.lane.b32.xlu0 %v3491, 8
      %v3556 = vpop.permute.xlu0 %3555
      %3557 = vrot.lane.b32.xlu0 %v3492, 8
      %v3558 = vpop.permute.xlu0 %3557
      %3559 = vrot.lane.b32.xlu0 %v3493, 8
      %v3560 = vpop.permute.xlu0 %3559
      %3561 = vrot.lane.b32.xlu0 %v3494, 8
      %v3562 = vpop.permute.xlu0 %3561
      %3563 = vrot.lane.b32.xlu0 %v3495, 8
      %v3564 = vpop.permute.xlu0 %3563
      %3565 = vrot.lane.b32.xlu0 %v3496, 8
      %v3566 = vpop.permute.xlu0 %3565
      %3567 = vrot.lane.b32.xlu0 %v3497, 8
      %v3568 = vpop.permute.xlu0 %3567
      %3569 = vrot.lane.b32.xlu0 %v3498, 8
      %v3570 = vpop.permute.xlu0 %3569
      %3571 = vrot.lane.b32.xlu0 %v3499, 8
      %v3572 = vpop.permute.xlu0 %3571
      %3573 = vrot.lane.b32.xlu0 %v3500, 8
      %v3574 = vpop.permute.xlu0 %3573
      %3575 = vrot.lane.b32.xlu0 %v3501, 8
      %v3576 = vpop.permute.xlu0 %3575
      %3577 = vrot.lane.b32.xlu0 %v3502, 8
      %v3578 = vpop.permute.xlu0 %3577
      %3579 = vrot.lane.b32.xlu0 %v3503, 8
      %v3580 = vpop.permute.xlu0 %3579
      %3581 = vrot.lane.b32.xlu0 %v3504, 8
      %v3582 = vpop.permute.xlu0 %3581
      %3583 = vrot.lane.b32.xlu0 %v3505, 8
      %v3584 = vpop.permute.xlu0 %3583
      %3585 = vrot.lane.b32.xlu0 %v3506, 8
      %v3586 = vpop.permute.xlu0 %3585
      %3587 = vrot.lane.b32.xlu0 %v3507, 8
      %v3588 = vpop.permute.xlu0 %3587
      %3589 = vrot.lane.b32.xlu0 %v3508, 8
      %v3590 = vpop.permute.xlu0 %3589
      %3591 = vrot.lane.b32.xlu0 %v3509, 8
      %v3592 = vpop.permute.xlu0 %3591
      %3593 = vrot.lane.b32.xlu0 %v3510, 8
      %v3594 = vpop.permute.xlu0 %3593
      %3595 = vrot.lane.b32.xlu0 %v3511, 8
      %v3596 = vpop.permute.xlu0 %3595
      %3597 = vrot.lane.b32.xlu0 %v3512, 8
      %v3598 = vpop.permute.xlu0 %3597
      %3599 = vrot.lane.b32.xlu0 %v3513, 8
      %v3600 = vpop.permute.xlu0 %3599
      %3601 = vrot.lane.b32.xlu0 %v3514, 8
      %v3602 = vpop.permute.xlu0 %3601
      %3603 = vrot.lane.b32.xlu0 %v3515, 8
      %v3604 = vpop.permute.xlu0 %3603
      %3605 = vrot.lane.b32.xlu0 %v3516, 8
      %v3606 = vpop.permute.xlu0 %3605
      %3607 = vrot.lane.b32.xlu0 %v3517, 8
      %v3608 = vpop.permute.xlu0 %3607
      %3609 = vrot.lane.b32.xlu0 %v3518, 8
      %v3610 = vpop.permute.xlu0 %3609
      %3611 = vrot.lane.b32.xlu0 %v3519, 8
      %v3612 = vpop.permute.xlu0 %3611
      %3613 = vrot.lane.b32.xlu0 %v3520, 8
      %v3614 = vpop.permute.xlu0 %3613
      %3615 = vrot.lane.b32.xlu0 %v3521, 8
      %v3616 = vpop.permute.xlu0 %3615
      %3617 = vrot.lane.b32.xlu0 %v3522, 8
      %v3618 = vpop.permute.xlu0 %3617
      %v3651 = vsel %vm907, %v2927, %v3556
      %v3652 = vsel %vm907, %v2928, %v3558
      %v3653 = vsel %vm907, %v2929, %v3560
      %v3654 = vsel %vm907, %v2930, %v3562
      %v3655 = vsel %vm907, %v2931, %v3564
      %v3656 = vsel %vm907, %v2932, %v3566
      %v3657 = vsel %vm907, %v2933, %v3568
      %v3658 = vsel %vm907, %v2934, %v3570
      %v3659 = vsel %vm907, %v2935, %v3572
      %v3660 = vsel %vm907, %v2936, %v3574
      %v3661 = vsel %vm907, %v2937, %v3576
      %v3662 = vsel %vm907, %v2938, %v3578
      %v3663 = vsel %vm907, %v2939, %v3580
      %v3664 = vsel %vm907, %v2940, %v3582
      %v3665 = vsel %vm907, %v2941, %v3584
      %v3666 = vsel %vm907, %v2942, %v3586
      %v3667 = vsel %vm907, %v2943, %v3588
      %v3668 = vsel %vm907, %v2944, %v3590
      %v3669 = vsel %vm907, %v2945, %v3592
      %v3670 = vsel %vm907, %v2946, %v3594
      %v3671 = vsel %vm907, %v2947, %v3596
      %v3672 = vsel %vm907, %v2948, %v3598
      %v3673 = vsel %vm907, %v2949, %v3600
      %v3674 = vsel %vm907, %v2950, %v3602
      %v3675 = vsel %vm907, %v2951, %v3604
      %v3676 = vsel %vm907, %v2952, %v3606
      %v3677 = vsel %vm907, %v2953, %v3608
      %v3678 = vsel %vm907, %v2954, %v3610
      %v3679 = vsel %vm907, %v2955, %v3612
      %v3680 = vsel %vm907, %v2956, %v3614
      %v3681 = vsel %vm907, %v2957, %v3616
      %v3682 = vsel %vm907, %v2958, %v3618
      %s3683 = scalar_lea.vmem %s197, 16
      %3684 = vst.msk [vmem:[%s3683] sm:$0xff] %vm975, %v3651
      %3685 = vst.msk [vmem:[%s3683 + $0x8] sm:$0xff] %vm975, %v3652
      %3686 = vst.msk [vmem:[%s3683 + $0x20] sm:$0xff] %vm975, %v3653
      %3687 = vst.msk [vmem:[%s3683 + $0x28] sm:$0xff] %vm975, %v3654
      %3688 = vst.msk [vmem:[%s3683 + $0x40] sm:$0xff] %vm975, %v3655
      %3689 = vst.msk [vmem:[%s3683 + $0x48] sm:$0xff] %vm975, %v3656
      %3690 = vst.msk [vmem:[%s3683 + $0x60] sm:$0xff] %vm975, %v3657
      %3691 = vst.msk [vmem:[%s3683 + $0x68] sm:$0xff] %vm975, %v3658
      %3692 = vst.msk [vmem:[%s3683 + $0x80] sm:$0xff] %vm975, %v3659
      %3693 = vst.msk [vmem:[%s3683 + $0x88] sm:$0xff] %vm975, %v3660
      %3694 = vst.msk [vmem:[%s3683 + $0xa0] sm:$0xff] %vm975, %v3661
      %3695 = vst.msk [vmem:[%s3683 + $0xa8] sm:$0xff] %vm975, %v3662
      %3696 = vst.msk [vmem:[%s3683 + $0xc0] sm:$0xff] %vm975, %v3663
      %3697 = vst.msk [vmem:[%s3683 + $0xc8] sm:$0xff] %vm975, %v3664
      %3698 = vst.msk [vmem:[%s3683 + $0xe0] sm:$0xff] %vm975, %v3665
      %3699 = vst.msk [vmem:[%s3683 + $0xe8] sm:$0xff] %vm975, %v3666
      %3700 = vst.msk [vmem:[%s3683 + $0x100] sm:$0xff] %vm975, %v3667
      %3701 = vst.msk [vmem:[%s3683 + $0x108] sm:$0xff] %vm975, %v3668
      %3702 = vst.msk [vmem:[%s3683 + $0x120] sm:$0xff] %vm975, %v3669
      %3703 = vst.msk [vmem:[%s3683 + $0x128] sm:$0xff] %vm975, %v3670
      %3704 = vst.msk [vmem:[%s3683 + $0x140] sm:$0xff] %vm975, %v3671
      %3705 = vst.msk [vmem:[%s3683 + $0x148] sm:$0xff] %vm975, %v3672
      %3706 = vst.msk [vmem:[%s3683 + $0x160] sm:$0xff] %vm975, %v3673
      %3707 = vst.msk [vmem:[%s3683 + $0x168] sm:$0xff] %vm975, %v3674
      %3708 = vst.msk [vmem:[%s3683 + $0x180] sm:$0xff] %vm975, %v3675
      %3709 = vst.msk [vmem:[%s3683 + $0x188] sm:$0xff] %vm975, %v3676
      %3710 = vst.msk [vmem:[%s3683 + $0x1a0] sm:$0xff] %vm975, %v3677
      %3711 = vst.msk [vmem:[%s3683 + $0x1a8] sm:$0xff] %vm975, %v3678
      %3712 = vst.msk [vmem:[%s3683 + $0x1c0] sm:$0xff] %vm975, %v3679
      %3713 = vst.msk [vmem:[%s3683 + $0x1c8] sm:$0xff] %vm975, %v3680
      %3714 = vst.msk [vmem:[%s3683 + $0x1e0] sm:$0xff] %vm975, %v3681
      %3715 = vst.msk [vmem:[%s3683 + $0x1e8] sm:$0xff] %vm975, %v3682
      %p3716 = scmp.lt.s32.totalorder %s15, 1
      %s3717 = scalar_select %p3716, %s15, 1
      %s3718 = smul.addr %s3717, 64
      %s3719 = smul.addr %s3718, 8
      %s3720 = scalar_lea.vmem %s4, %s3719
      // Predicated region
      $region37: #{deconv_block_forward.3} parent=35 // pred_check
        %p3721 = pneg %p122
      $region38: #{deconv_block_forward.3} parent=35 // pred_check_branch
        %3723 = sbr.rel (%p3721) target = $region40
      $region39: #{deconv_block_forward.3} parent=35 // pred_region
        _
      $region40: #{deconv_block_forward.3} parent=35 // pred_fallthru
        _
    $region36: #{deconv_block_forward.3} parent=5 // pred_fallthru
      _
    %p3724 = scmp.le.s32.totalorder 2, %s10
    // Predicated region
    $region41: #{deconv_block_forward.3} parent=5 // pred_check
      %p3725 = pneg %p3724
    $region42: #{deconv_block_forward.3} parent=5 // pred_check_branch
      %3727 = sbr.rel (%p3725) target = $region44
    $region43: #{deconv_block_forward.3} parent=5 // pred_region
      %s3728 = ssub.s32 %s10, 2
      // Predicated region
      $region45: #{deconv_block_forward.3} parent=43 // pred_check
        %p3729 = pneg %p128
      $region46: #{deconv_block_forward.3} parent=43 // pred_check_branch
        %3731 = sbr.rel (%p3729) target = $region48
      $region47: #{deconv_block_forward.3} parent=43 // pred_region
        %p3732 = scmp.lt.s32.totalorder %s16, 1
        %s3733 = scalar_select %p3732, %s16, 1
        %s3734 = smul.addr %s3733, 64
        %s3735 = smul.addr %s3734, 8
        %s3736 = scalar_lea.vmem %s4, %s3735
      $region48: #{deconv_block_forward.3} parent=43 // pred_fallthru
        _
    $region44: #{deconv_block_forward.3} parent=5 // pred_fallthru
      _
  $region6: #{deconv_block_forward.3} parent=0 // loop_footer
    %s14 = sadd.s32 1, %s10
  $region7: #{deconv_block_forward.3} parent=0 // loop_footer_branch
    %9 = sbr.rel target = $region3
  $region8: #{deconv_block_forward.3} parent=0 // loop_exit
    _

</llo_original>
